<compile_context>
chip_gen: v7x
topology: tpu7x:2x2x1
jax: 0.10.0
libtpu: 0.0.40
codegen_flags: <defaults>
</compile_context>

<pallas_src>
import functools

import jax
import jax.numpy as jnp
from jax import lax
from jax.experimental import pallas as pl
from jax.experimental.pallas import tpu as pltpu

_VMEM_LIMIT_BYTES = 48 * 1024 * 1024  # below v7x's 64 MiB physical, ample for v5e/v6e


# ----------------------------------------------------------------------------
# Kernel 1: Conv1d(Cin, Cout, 3, 1, 1) [+ ReLU]   (conv_in / conv_out)
# ----------------------------------------------------------------------------
def _conv3_kernel(T, pad, lead, post_relu, x_ref, w_ref, b_ref, o_ref, xs_ref):
    """One batch element x one output-channel tile.

    x_ref : (1, T, Cin)            input (f32 or bf16)
    w_ref : (3, Cin, tcf)  bf16    conv taps
    b_ref : (1, tcf)       f32     bias
    o_ref : (1, T, tcf)
    xs_ref: (lead + T + pad, Cin) bf16 scratch — zero-padded input window, built once
            (ReLU/cast hoisted out of the tap loop; lead keeps the main store aligned).
    """
    xs_ref[...] = jnp.zeros_like(xs_ref)
    xs_ref[lead:lead + T, :] = x_ref[0].astype(jnp.bfloat16)
    acc = jnp.zeros((T, w_ref.shape[2]), jnp.float32)
    for k in range(3):
        s = lead - pad + k
        acc = acc + jnp.dot(xs_ref[s:s + T, :], w_ref[k],
                            preferred_element_type=jnp.float32)
    out = acc + b_ref[...]
    if post_relu:
        out = jnp.maximum(out, 0.0)
    o_ref[0] = out.astype(o_ref.dtype)


def conv3(x_nlc, w_bf16, b_f32, *, post_relu, out_dtype):
    """Conv1d(Cin, Cout, kernel=3, stride=1, padding=1) [+ ReLU], channels-last."""
    N, T, Cin = x_nlc.shape
    K, _, Cout = w_bf16.shape
    assert K == 3
    pad, lead = 1, 8

    # Lane-dense output-channel tiling when wide (e.g. width=512); full extent otherwise.
    if Cout % 128 == 0 and Cout >= 256:
        tcf = 256 if Cout % 256 == 0 else 128
    else:
        tcf = Cout
    NJ = Cout // tcf

    kernel = functools.partial(_conv3_kernel, T, pad, lead, post_relu)
    return pl.pallas_call(
        kernel,
        grid=(N, NJ),
        in_specs=[
            pl.BlockSpec((1, T, Cin), lambda n, j: (n, 0, 0)),
            pl.BlockSpec((3, Cin, tcf), lambda n, j: (0, 0, j)),
            pl.BlockSpec((1, tcf), lambda n, j: (0, j)),
        ],
        out_specs=pl.BlockSpec((1, T, tcf), lambda n, j: (n, 0, j)),
        out_shape=jax.ShapeDtypeStruct((N, T, Cout), out_dtype),
        scratch_shapes=[pltpu.VMEM((lead + T + pad, Cin), jnp.bfloat16)],
        compiler_params=pltpu.CompilerParams(
            dimension_semantics=("parallel", "parallel"),
            vmem_limit_bytes=_VMEM_LIMIT_BYTES),
    )(x_nlc, w_bf16, b_f32)


# ----------------------------------------------------------------------------
# Kernel 2: one full level, fused:
#   Conv1d(C,C,filter_t,stride_t,pad_t) -> Linear -> ReLU -> Resnet1D(depth blocks)
# ----------------------------------------------------------------------------
def _level_kernel(filter_t, stride, T_out, dilations, lead,
                  xph_ref, dw_ref, db_ref, lw_ref, lb_ref,
                  rw1_ref, rb1_ref, rw2_ref, rb2_ref,
                  o_ref, h_ref, xs_ref):
    """One batch element; everything stays resident in VMEM.

    xph_ref: (stride, 1, T_ph, C) bf16 phase-split padded input:
             xph_ref[p, 0, t] == x_pad[stride*t + p]
    dw_ref : (filter_t, C, C) bf16, db_ref: (1, C) f32     downsampling conv
    lw_ref : (C, C) bf16,           lb_ref: (1, C) f32     per-frame Linear
    rw1_ref: (depth, 3, C, C) bf16, rb1_ref: (depth, 1, C) f32   dilated conv3
    rw2_ref: (depth, C, C) bf16,    rb2_ref: (depth, 1, C) f32   1x1 conv
    o_ref  : (1, T_out, C) bf16
    h_ref  : (T_out, C) f32 scratch                    residual stream
    xs_ref : (lead + T_out + max_dil, C) bf16 scratch  padded relu(h) window
    """
    C = dw_ref.shape[2]

    # ---- downsampling conv: filter_t taps, each a (T_out,C)x(C,C) MXU matmul ----
    acc = jnp.zeros((T_out, C), jnp.float32)
    for k in range(filter_t):
        ph, sh = k % stride, k // stride
        acc = acc + jnp.dot(xph_ref[ph, 0, sh:sh + T_out, :], dw_ref[k],
                            preferred_element_type=jnp.float32)
    h = acc + db_ref[...]

    # ---- FCpermute -> Linear -> ReLU -> FCpermute (permutes are identity in NTC) ----
    h = jnp.dot(h.astype(jnp.bfloat16), lw_ref[...],
                preferred_element_type=jnp.float32) + lb_ref[...]
    h_ref[...] = jnp.maximum(h, 0.0)

    # ---- Resnet1D: depth x (relu -> dilated conv3 -> relu -> conv1x1 -> +residual) ----
    for d, dil in enumerate(dilations):
        # padded relu(h) window built once per block; residual lives in h_ref (no DMA)
        xs_ref[...] = jnp.zeros_like(xs_ref)
        xs_ref[lead:lead + T_out, :] = jnp.maximum(h_ref[...], 0.0).astype(jnp.bfloat16)
        acc = jnp.zeros((T_out, C), jnp.float32)
        for k in range(3):
            s = lead + (k - 1) * dil
            acc = acc + jnp.dot(xs_ref[s:s + T_out, :], rw1_ref[d, k],
                                preferred_element_type=jnp.float32)
        t = jnp.maximum(acc + rb1_ref[d], 0.0)
        t = jnp.dot(t.astype(jnp.bfloat16), rw2_ref[d],
                    preferred_element_type=jnp.float32) + rb2_ref[d]
        h_ref[...] = h_ref[...] + t

    o_ref[0] = h_ref[...].astype(o_ref.dtype)


def encoder_level(x_nlc, lvl, *, stride_t, dilations):
    """Fused downsample conv + Linear + ReLU + full Resnet1D stack (one pallas_call)."""
    N, L, C = x_nlc.shape
    filter_t, pad_t = stride_t * 2, stride_t // 2
    depth = lvl['rw1'].shape[0]
    max_dil = max(dilations)
    lead = ((max_dil + 7) // 8) * 8

    T_out = (L + 2 * pad_t - filter_t) // stride_t + 1
    max_sh = (filter_t - 1) // stride_t
    T_ph = T_out + max_sh
    L_target = stride_t * T_ph

    # Phase-split padded layout for the strided conv (one cheap bf16 layout pass in XLA):
    # x_ph[p, n, t, c] == x_pad[n, stride_t*t + p, c]
    right_pad = max(0, L_target - (L + pad_t))
    xp = jnp.pad(x_nlc, ((0, 0), (pad_t, right_pad), (0, 0)))[:, :L_target, :]
    x_ph = xp.reshape(N, T_ph, stride_t, C).transpose(2, 0, 1, 3)

    kernel = functools.partial(_level_kernel, filter_t, stride_t, T_out,
                               tuple(dilations), lead)
    return pl.pallas_call(
        kernel,
        grid=(N,),
        in_specs=[
            pl.BlockSpec((stride_t, 1, T_ph, C), lambda n: (0, n, 0, 0)),
            pl.BlockSpec((filter_t, C, C), lambda n: (0, 0, 0)),
            pl.BlockSpec((1, C), lambda n: (0, 0)),
            pl.BlockSpec((C, C), lambda n: (0, 0)),
            pl.BlockSpec((1, C), lambda n: (0, 0)),
            pl.BlockSpec((depth, 3, C, C), lambda n: (0, 0, 0, 0)),
            pl.BlockSpec((depth, 1, C), lambda n: (0, 0, 0)),
            pl.BlockSpec((depth, C, C), lambda n: (0, 0, 0)),
            pl.BlockSpec((depth, 1, C), lambda n: (0, 0, 0)),
        ],
        out_specs=pl.BlockSpec((1, T_out, C), lambda n: (n, 0, 0)),
        out_shape=jax.ShapeDtypeStruct((N, T_out, C), jnp.bfloat16),
        scratch_shapes=[pltpu.VMEM((T_out, C), jnp.float32),
                        pltpu.VMEM((lead + T_out + max_dil, C), jnp.bfloat16)],
        compiler_params=pltpu.CompilerParams(
            dimension_semantics=("parallel",),
            vmem_limit_bytes=_VMEM_LIMIT_BYTES),
    )(x_ph, lvl['down_w'], lvl['down_b'], lvl['lin_w'], lvl['lin_b'],
      lvl['rw1'], lvl['rb1'], lvl['rw2'], lvl['rb2'])


# ----------------------------------------------------------------------------
# Full encoder forward (channels-last internally, NCW at the boundaries)
# ----------------------------------------------------------------------------
def spatial_mlp_encoder(x_nct, kparams, *, stride_t, depth, dilation_growth_rate):
    # Resnet1D(reverse_dilation=True): dilations d^(depth-1), ..., d^0
    dilations = [dilation_growth_rate ** d for d in reversed(range(depth))]

    h = jnp.transpose(x_nct, (0, 2, 1))           # NCW -> NTC (only boundary transpose)
    # Conv1d(cin, width, 3, 1, 1) + ReLU
    h = conv3(h, kparams['conv_in_w'], kparams['conv_in_b'],
              post_relu=True, out_dtype=jnp.bfloat16)
    # down_t fused levels (down conv + Linear + ReLU + Resnet1D stack, one launch each)
    for lvl in kparams['levels']:
        h = encoder_level(h, lvl, stride_t=stride_t, dilations=dilations)
    # Conv1d(width, output_emb_width, 3, 1, 1)
    h = conv3(h, kparams['conv_out_w'], kparams['conv_out_b'],
              post_relu=False, out_dtype=jnp.float32)
    return jnp.transpose(h, (0, 2, 1))            # NTC -> NCW


# ----------------------------------------------------------------------------
# One-time parameter preparation (outside jit): bf16 weights, stacked res weights
# ----------------------------------------------------------------------------
def prepare_params(params):
    def w(a):  # MXU operand, cast once
        return jnp.asarray(a, jnp.bfloat16)

    def b(a):  # bias, f32, (1, C)
        return jnp.asarray(a, jnp.float32).reshape(1, -1)

    kp = {
        'conv_in_w': w(params['conv_in_w']), 'conv_in_b': b(params['conv_in_b']),
        'conv_out_w': w(params['conv_out_w']), 'conv_out_b': b(params['conv_out_b']),
        'levels': [],
    }
    for blk in params['blocks']:
        kp['levels'].append({
            'down_w': w(blk['down_w']), 'down_b': b(blk['down_b']),
            'lin_w': w(blk['lin_w']), 'lin_b': b(blk['lin_b']),
            'rw1': jnp.stack([w(rp['w1']) for rp in blk['res_blocks']]),
            'rb1': jnp.stack([b(rp['b1']) for rp in blk['res_blocks']]),
            'rw2': jnp.stack([w(rp['w2']) for rp in blk['res_blocks']]),
            'rb2': jnp.stack([b(rp['b2']) for rp in blk['res_blocks']]),
        })
    return kp


# ----------------------------------------------------------------------------
# Pure-JAX reference (mirrors the PyTorch module, fp32 everywhere)
# ----------------------------------------------------------------------------
def _ref_conv1d(x_nlc, w_kio, bias, stride, padding, dilation):
    y = lax.conv_general_dilated(
        x_nlc, w_kio, window_strides=(stride,), padding=[(padding, padding)],
        rhs_dilation=(dilation,), dimension_numbers=('NWC', 'WIO', 'NWC'))
    return y + bias


def reference_forward(x_nct, params, *, stride_t, depth, dilation_growth_rate):
    pad_t = stride_t // 2
    dilations = [dilation_growth_rate ** d for d in reversed(range(depth))]
    h = jnp.transpose(x_nct, (0, 2, 1))
    h = jax.nn.relu(_ref_conv1d(h, params['conv_in_w'], params['conv_in_b'], 1, 1, 1))
    for blk in params['blocks']:
        h = _ref_conv1d(h, blk['down_w'], blk['down_b'], stride_t, pad_t, 1)
        h = jax.nn.relu(h @ blk['lin_w'] + blk['lin_b'])
        for rp, dil in zip(blk['res_blocks'], dilations):
            t = _ref_conv1d(jax.nn.relu(h), rp['w1'], rp['b1'], 1, dil, dil)
            t = jax.nn.relu(t) @ rp['w2'] + rp['b2']
            h = h + t
    h = _ref_conv1d(h, params['conv_out_w'], params['conv_out_b'], 1, 1, 1)
    return jnp.transpose(h, (0, 2, 1))


# ----------------------------------------------------------------------------
# Deterministic synthetic parameters (fp32; converted once via prepare_params)
# ----------------------------------------------------------------------------
class _KeyGen:
    def __init__(self, key):
        self.key = key
        self.i = 0

    def __call__(self, shape, scale=0.05):
        self.i += 1
        return scale * jax.random.normal(jax.random.fold_in(self.key, self.i),
                                         shape, jnp.float32)


def init_params(key, cin, width, cout, down_t, depth, stride_t):
    """Conv weights (K, Cin, Cout) == torch.permute(2,1,0); Linear (in,out) == torch.T."""
    kg = _KeyGen(key)
    filter_t = stride_t * 2
    p = {
        'conv_in_w': kg((3, cin, width)), 'conv_in_b': kg((width,)),
        'conv_out_w': kg((3, width, cout)), 'conv_out_b': kg((cout,)),
        'blocks': [],
    }
    for _ in range(down_t):
        blk = {
            'down_w': kg((filter_t, width, width)), 'down_b': kg((width,)),
            'lin_w': kg((width, width)), 'lin_b': kg((width,)),
            'res_blocks': [],
        }
        for _ in range(depth):
            blk['res_blocks'].append({
                'w1': kg((3, width, width)), 'b1': kg((width,)),   # dilated conv3
                'w2': kg((width, width)), 'b2': kg((width,)),      # 1x1 conv (pointwise)
            })
        p['blocks'].append(blk)
    return p


# ----------------------------------------------------------------------------
if __name__ == "__main__":
    # Small config consistent with the module: Conv1d input is (N, C, T).
    batch, input_emb_width, T = 2, 4, 16
    width, output_emb_width = 32, 16
    down_t, stride_t, depth, dilation_growth_rate = 2, 2, 2, 3

    key = jax.random.PRNGKey(0)
    x = jax.random.normal(jax.random.fold_in(key, 12345),
                          (batch, input_emb_width, T), jnp.float32)
    params = init_params(jax.random.fold_in(key, 1), input_emb_width, width,
                         output_emb_width, down_t, depth, stride_t)
    kparams = prepare_params(params)     # one-time bf16 cast + res-stack weight stacking

    fwd = jax.jit(functools.partial(
        spatial_mlp_encoder, stride_t=stride_t, depth=depth,
        dilation_growth_rate=dilation_growth_rate))
    ref_fwd = jax.jit(functools.partial(
        reference_forward, stride_t=stride_t, depth=depth,
        dilation_growth_rate=dilation_growth_rate))

    out = fwd(x, kparams)
    jax.block_until_ready(out)

    expected_T = T
    for _ in range(down_t):
        expected_T = (expected_T + 2 * (stride_t // 2) - stride_t * 2) // stride_t + 1
    assert out.shape == (batch, output_emb_width, expected_T), out.shape
    assert bool(jnp.all(jnp.isfinite(out)))

    # Numerical check vs fp32 reference (kernel: bf16 MXU operands + bf16 inter-layer
    # activations, fp32 accumulation / bias / residual adds).
    ref = ref_fwd(x, params)
    jax.block_until_ready(ref)
    err = float(jnp.max(jnp.abs(out - ref)))
    scale = float(jnp.max(jnp.abs(ref))) + 1e-6
    assert err <= 1e-2 + 3e-2 * scale, (err, scale)

    print("KERNEL_OK")
</pallas_src>

<mosaic_0001>
module attributes {stable_mosaic.version = 11 : i64} {
  func.func @_conv3_kernel(%arg0: i32, %arg1: i32, %arg2: memref<1x16x4xf32, #tpu.memory_space<vmem>>, %arg3: memref<3x4x32xbf16, #tpu.memory_space<vmem>>, %arg4: memref<1x32xf32, #tpu.memory_space<vmem>>, %arg5: memref<1x16x32xbf16, #tpu.memory_space<vmem>>, %arg6: memref<25x4xbf16, #tpu.memory_space<vmem>>) attributes {dimension_semantics = [#tpu.dimension_semantics<parallel>, #tpu.dimension_semantics<parallel>], iteration_bounds = array<i64: 2, 1>, scalar_prefetch = 0 : i64, scratch_operands = 1 : i64, tpu.core_type = #tpu.core_type<tc>, window_params = [{transform_indices = @transform_0, window_bounds = array<i64: 1, 16, 4>}, {transform_indices = @transform_1, window_bounds = array<i64: 3, 4, 32>}, {transform_indices = @transform_2, window_bounds = array<i64: 1, 32>}, {transform_indices = @transform_3, window_bounds = array<i64: 1, 16, 32>}]} {
    %cst = arith.constant 0.000000e+00 : bf16
    %0 = vector.broadcast %cst : bf16 to vector<25x4xbf16>
    %c0 = arith.constant 0 : index
    %c0_0 = arith.constant 0 : index
    %1 = vector.load %arg6[%c0, %c0_0] : memref<25x4xbf16, #tpu.memory_space<vmem>>, vector<25x4xbf16>
    tpu.vector_store %arg6[%c0, %c0_0], %0 {strides = array<i32>} : memref<25x4xbf16, #tpu.memory_space<vmem>>, vector<25x4xbf16>,
    %c0_1 = arith.constant 0 : index
    %c0_2 = arith.constant 0 : index
    %c0_3 = arith.constant 0 : index
    %2 = vector.load %arg2[%c0_1, %c0_2, %c0_3] : memref<1x16x4xf32, #tpu.memory_space<vmem>>, vector<1x16x4xf32>
    %3 = vector.shape_cast %2 : vector<1x16x4xf32> to vector<16x4xf32>
    %4 = arith.truncf %3 : vector<16x4xf32> to vector<16x4xbf16>
    %c8 = arith.constant 8 : index
    %c0_4 = arith.constant 0 : index
    %5 = vector.load %arg6[%c8, %c0_4] : memref<25x4xbf16, #tpu.memory_space<vmem>>, vector<16x4xbf16>
    tpu.vector_store %arg6[%c8, %c0_4], %4 {strides = array<i32>} : memref<25x4xbf16, #tpu.memory_space<vmem>>, vector<16x4xbf16>,
    %cst_5 = arith.constant 0.000000e+00 : f32
    %6 = vector.broadcast %cst_5 : f32 to vector<16x32xf32>
    %c7 = arith.constant 7 : index
    %c0_6 = arith.constant 0 : index
    %7 = vector.load %arg6[%c7, %c0_6] : memref<25x4xbf16, #tpu.memory_space<vmem>>, vector<16x4xbf16>
    %c0_7 = arith.constant 0 : index
    %c0_8 = arith.constant 0 : index
    %c0_9 = arith.constant 0 : index
    %8 = vector.load %arg3[%c0_7, %c0_8, %c0_9] : memref<3x4x32xbf16, #tpu.memory_space<vmem>>, vector<1x4x32xbf16>
    %9 = vector.shape_cast %8 : vector<1x4x32xbf16> to vector<4x32xbf16>
    %cst_10 = arith.constant dense<0.000000e+00> : vector<16x32xf32>
    %10 = tpu.matmul %7, %9, %cst_10 {dimension_numbers = #tpu.dot_dimension_numbers<[1], [0], [0], [1], [0, 0, 1, 1], [], []>} : vector<16x4xbf16>, vector<4x32xbf16>, vector<16x32xf32> -> vector<16x32xf32>
    %11 = arith.addf %6, %10 : vector<16x32xf32>
    %c8_11 = arith.constant 8 : index
    %c0_12 = arith.constant 0 : index
    %12 = vector.load %arg6[%c8_11, %c0_12] : memref<25x4xbf16, #tpu.memory_space<vmem>>, vector<16x4xbf16>
    %c1 = arith.constant 1 : index
    %c0_13 = arith.constant 0 : index
    %c0_14 = arith.constant 0 : index
    %13 = vector.load %arg3[%c1, %c0_13, %c0_14] : memref<3x4x32xbf16, #tpu.memory_space<vmem>>, vector<1x4x32xbf16>
    %14 = vector.shape_cast %13 : vector<1x4x32xbf16> to vector<4x32xbf16>
    %cst_15 = arith.constant dense<0.000000e+00> : vector<16x32xf32>
    %15 = tpu.matmul %12, %14, %cst_15 {dimension_numbers = #tpu.dot_dimension_numbers<[1], [0], [0], [1], [0, 0, 1, 1], [], []>} : vector<16x4xbf16>, vector<4x32xbf16>, vector<16x32xf32> -> vector<16x32xf32>
    %16 = arith.addf %11, %15 : vector<16x32xf32>
    %c9 = arith.constant 9 : index
    %c0_16 = arith.constant 0 : index
    %17 = vector.load %arg6[%c9, %c0_16] : memref<25x4xbf16, #tpu.memory_space<vmem>>, vector<16x4xbf16>
    %c2 = arith.constant 2 : index
    %c0_17 = arith.constant 0 : index
    %c0_18 = arith.constant 0 : index
    %18 = vector.load %arg3[%c2, %c0_17, %c0_18] : memref<3x4x32xbf16, #tpu.memory_space<vmem>>, vector<1x4x32xbf16>
    %19 = vector.shape_cast %18 : vector<1x4x32xbf16> to vector<4x32xbf16>
    %cst_19 = arith.constant dense<0.000000e+00> : vector<16x32xf32>
    %20 = tpu.matmul %17, %19, %cst_19 {dimension_numbers = #tpu.dot_dimension_numbers<[1], [0], [0], [1], [0, 0, 1, 1], [], []>} : vector<16x4xbf16>, vector<4x32xbf16>, vector<16x32xf32> -> vector<16x32xf32>
    %21 = arith.addf %16, %20 : vector<16x32xf32>
    %c0_20 = arith.constant 0 : index
    %c0_21 = arith.constant 0 : index
    %22 = vector.load %arg4[%c0_20, %c0_21] : memref<1x32xf32, #tpu.memory_space<vmem>>, vector<1x32xf32>
    %23 = vector.broadcast %22 : vector<1x32xf32> to vector<16x32xf32>
    %24 = arith.addf %21, %23 : vector<16x32xf32>
    %cst_22 = arith.constant 0.000000e+00 : f32
    %25 = vector.broadcast %cst_22 : f32 to vector<16x32xf32>
    %26 = arith.maximumf %24, %25 : vector<16x32xf32>
    %27 = arith.truncf %26 : vector<16x32xf32> to vector<16x32xbf16>
    %c0_23 = arith.constant 0 : index
    %c0_24 = arith.constant 0 : index
    %c0_25 = arith.constant 0 : index
    %28 = vector.load %arg5[%c0_23, %c0_24, %c0_25] : memref<1x16x32xbf16, #tpu.memory_space<vmem>>, vector<1x16x32xbf16>
    %29 = vector.shape_cast %28 : vector<1x16x32xbf16> to vector<16x32xbf16>
    %30 = vector.shape_cast %27 : vector<16x32xbf16> to vector<1x16x32xbf16>
    tpu.vector_store %arg5[%c0_23, %c0_24, %c0_25], %30 {strides = array<i32>} : memref<1x16x32xbf16, #tpu.memory_space<vmem>>, vector<1x16x32xbf16>,
    return
  }
  func.func @transform_0(%arg0: i32, %arg1: i32) -> (i32, i32, i32) {
    %c0_i32 = arith.constant 0 : i32
    %c0_i32_0 = arith.constant 0 : i32
    %c0_i32_1 = arith.constant 0 : i32
    return %arg0, %c0_i32, %c0_i32_0 : i32, i32, i32
  }
  func.func @transform_1(%arg0: i32, %arg1: i32) -> (i32, i32, i32) {
    %c0_i32 = arith.constant 0 : i32
    %c0_i32_0 = arith.constant 0 : i32
    %c0_i32_1 = arith.constant 0 : i32
    return %c0_i32, %c0_i32_0, %arg1 : i32, i32, i32
  }
  func.func @transform_2(%arg0: i32, %arg1: i32) -> (i32, i32) {
    %c0_i32 = arith.constant 0 : i32
    %c0_i32_0 = arith.constant 0 : i32
    return %c0_i32, %arg1 : i32, i32
  }
  func.func @transform_3(%arg0: i32, %arg1: i32) -> (i32, i32, i32) {
    %c0_i32 = arith.constant 0 : i32
    %c0_i32_0 = arith.constant 0 : i32
    return %arg0, %c0_i32, %arg1 : i32, i32, i32
  }
}

module attributes {stable_mosaic.version = 11 : i64} {
  func.func @_level_kernel(%arg0: i32, %arg1: memref<2x1x9x32xbf16, #tpu.memory_space<vmem>>, %arg2: memref<4x32x32xbf16, #tpu.memory_space<vmem>>, %arg3: memref<1x32xf32, #tpu.memory_space<vmem>>, %arg4: memref<32x32xbf16, #tpu.memory_space<vmem>>, %arg5: memref<1x32xf32, #tpu.memory_space<vmem>>, %arg6: memref<2x3x32x32xbf16, #tpu.memory_space<vmem>>, %arg7: memref<2x1x32xf32, #tpu.memory_space<vmem>>, %arg8: memref<2x32x32xbf16, #tpu.memory_space<vmem>>, %arg9: memref<2x1x32xf32, #tpu.memory_space<vmem>>, %arg10: memref<1x8x32xbf16, #tpu.memory_space<vmem>>, %arg11: memref<8x32xf32, #tpu.memory_space<vmem>>, %arg12: memref<19x32xbf16, #tpu.memory_space<vmem>>) attributes {dimension_semantics = [#tpu.dimension_semantics<parallel>], iteration_bounds = array<i64: 2>, scalar_prefetch = 0 : i64, scratch_operands = 2 : i64, tpu.core_type = #tpu.core_type<tc>, window_params = [{transform_indices = @transform_0, window_bounds = array<i64: 2, 1, 9, 32>}, {pipeline_mode = #tpu.pipeline_mode<synchronous>, transform_indices = @transform_1, window_bounds = array<i64: 4, 32, 32>}, {pipeline_mode = #tpu.pipeline_mode<synchronous>, transform_indices = @transform_2, window_bounds = array<i64: 1, 32>}, {pipeline_mode = #tpu.pipeline_mode<synchronous>, transform_indices = @transform_3, window_bounds = array<i64: 32, 32>}, {pipeline_mode = #tpu.pipeline_mode<synchronous>, transform_indices = @transform_4, window_bounds = array<i64: 1, 32>}, {pipeline_mode = #tpu.pipeline_mode<synchronous>, transform_indices = @transform_5, window_bounds = array<i64: 2, 3, 32, 32>}, {pipeline_mode = #tpu.pipeline_mode<synchronous>, transform_indices = @transform_6, window_bounds = array<i64: 2, 1, 32>}, {pipeline_mode = #tpu.pipeline_mode<synchronous>, transform_indices = @transform_7, window_bounds = array<i64: 2, 32, 32>}, {pipeline_mode = #tpu.pipeline_mode<synchronous>, transform_indices = @transform_8, window_bounds = array<i64: 2, 1, 32>}, {transform_indices = @transform_9, window_bounds = array<i64: 1, 8, 32>}]} {
    %cst = arith.constant 0.000000e+00 : f32
    %0 = vector.broadcast %cst : f32 to vector<8x32xf32>
    %c0 = arith.constant 0 : index
    %c0_0 = arith.constant 0 : index
    %c0_1 = arith.constant 0 : index
    %c0_2 = arith.constant 0 : index
    %1 = vector.load %arg1[%c0, %c0_0, %c0_1, %c0_2] : memref<2x1x9x32xbf16, #tpu.memory_space<vmem>>, vector<1x1x8x32xbf16>
    %2 = vector.shape_cast %1 : vector<1x1x8x32xbf16> to vector<8x32xbf16>
    %c0_3 = arith.constant 0 : index
    %c0_4 = arith.constant 0 : index
    %c0_5 = arith.constant 0 : index
    %3 = vector.load %arg2[%c0_3, %c0_4, %c0_5] : memref<4x32x32xbf16, #tpu.memory_space<vmem>>, vector<1x32x32xbf16>
    %4 = vector.shape_cast %3 : vector<1x32x32xbf16> to vector<32x32xbf16>
    %cst_6 = arith.constant dense<0.000000e+00> : vector<8x32xf32>
    %5 = tpu.matmul %2, %4, %cst_6 {dimension_numbers = #tpu.dot_dimension_numbers<[1], [0], [0], [1], [0, 0, 1, 1], [], []>} : vector<8x32xbf16>, vector<32x32xbf16>, vector<8x32xf32> -> vector<8x32xf32>
    %6 = arith.addf %0, %5 : vector<8x32xf32>
    %c1 = arith.constant 1 : index
    %c0_7 = arith.constant 0 : index
    %c0_8 = arith.constant 0 : index
    %c0_9 = arith.constant 0 : index
    %7 = vector.load %arg1[%c1, %c0_7, %c0_8, %c0_9] : memref<2x1x9x32xbf16, #tpu.memory_space<vmem>>, vector<1x1x8x32xbf16>
    %8 = vector.shape_cast %7 : vector<1x1x8x32xbf16> to vector<8x32xbf16>
    %c1_10 = arith.constant 1 : index
    %c0_11 = arith.constant 0 : index
    %c0_12 = arith.constant 0 : index
    %9 = vector.load %arg2[%c1_10, %c0_11, %c0_12] : memref<4x32x32xbf16, #tpu.memory_space<vmem>>, vector<1x32x32xbf16>
    %10 = vector.shape_cast %9 : vector<1x32x32xbf16> to vector<32x32xbf16>
    %cst_13 = arith.constant dense<0.000000e+00> : vector<8x32xf32>
    %11 = tpu.matmul %8, %10, %cst_13 {dimension_numbers = #tpu.dot_dimension_numbers<[1], [0], [0], [1], [0, 0, 1, 1], [], []>} : vector<8x32xbf16>, vector<32x32xbf16>, vector<8x32xf32> -> vector<8x32xf32>
    %12 = arith.addf %6, %11 : vector<8x32xf32>
    %c0_14 = arith.constant 0 : index
    %c0_15 = arith.constant 0 : index
    %c1_16 = arith.constant 1 : index
    %c0_17 = arith.constant 0 : index
    %13 = vector.load %arg1[%c0_14, %c0_15, %c1_16, %c0_17] : memref<2x1x9x32xbf16, #tpu.memory_space<vmem>>, vector<1x1x8x32xbf16>
    %14 = vector.shape_cast %13 : vector<1x1x8x32xbf16> to vector<8x32xbf16>
    %c2 = arith.constant 2 : index
    %c0_18 = arith.constant 0 : index
    %c0_19 = arith.constant 0 : index
    %15 = vector.load %arg2[%c2, %c0_18, %c0_19] : memref<4x32x32xbf16, #tpu.memory_space<vmem>>, vector<1x32x32xbf16>
    %16 = vector.shape_cast %15 : vector<1x32x32xbf16> to vector<32x32xbf16>
    %cst_20 = arith.constant dense<0.000000e+00> : vector<8x32xf32>
    %17 = tpu.matmul %14, %16, %cst_20 {dimension_numbers = #tpu.dot_dimension_numbers<[1], [0], [0], [1], [0, 0, 1, 1], [], []>} : vector<8x32xbf16>, vector<32x32xbf16>, vector<8x32xf32> -> vector<8x32xf32>
    %18 = arith.addf %12, %17 : vector<8x32xf32>
    %c1_21 = arith.constant 1 : index
    %c0_22 = arith.constant 0 : index
    %c1_23 = arith.constant 1 : index
    %c0_24 = arith.constant 0 : index
    %19 = vector.load %arg1[%c1_21, %c0_22, %c1_23, %c0_24] : memref<2x1x9x32xbf16, #tpu.memory_space<vmem>>, vector<1x1x8x32xbf16>
    %20 = vector.shape_cast %19 : vector<1x1x8x32xbf16> to vector<8x32xbf16>
    %c3 = arith.constant 3 : index
    %c0_25 = arith.constant 0 : index
    %c0_26 = arith.constant 0 : index
    %21 = vector.load %arg2[%c3, %c0_25, %c0_26] : memref<4x32x32xbf16, #tpu.memory_space<vmem>>, vector<1x32x32xbf16>
    %22 = vector.shape_cast %21 : vector<1x32x32xbf16> to vector<32x32xbf16>
    %cst_27 = arith.constant dense<0.000000e+00> : vector<8x32xf32>
    %23 = tpu.matmul %20, %22, %cst_27 {dimension_numbers = #tpu.dot_dimension_numbers<[1], [0], [0], [1], [0, 0, 1, 1], [], []>} : vector<8x32xbf16>, vector<32x32xbf16>, vector<8x32xf32> -> vector<8x32xf32>
    %24 = arith.addf %18, %23 : vector<8x32xf32>
    %c0_28 = arith.constant 0 : index
    %c0_29 = arith.constant 0 : index
    %25 = vector.load %arg3[%c0_28, %c0_29] : memref<1x32xf32, #tpu.memory_space<vmem>>, vector<1x32xf32>
    %26 = vector.broadcast %25 : vector<1x32xf32> to vector<8x32xf32>
    %27 = arith.addf %24, %26 : vector<8x32xf32>
    %28 = arith.truncf %27 : vector<8x32xf32> to vector<8x32xbf16>
    %c0_30 = arith.constant 0 : index
    %c0_31 = arith.constant 0 : index
    %29 = vector.load %arg4[%c0_30, %c0_31] : memref<32x32xbf16, #tpu.memory_space<vmem>>, vector<32x32xbf16>
    %cst_32 = arith.constant dense<0.000000e+00> : vector<8x32xf32>
    %30 = tpu.matmul %28, %29, %cst_32 {dimension_numbers = #tpu.dot_dimension_numbers<[1], [0], [0], [1], [0, 0, 1, 1], [], []>} : vector<8x32xbf16>, vector<32x32xbf16>, vector<8x32xf32> -> vector<8x32xf32>
    %c0_33 = arith.constant 0 : index
    %c0_34 = arith.constant 0 : index
    %31 = vector.load %arg5[%c0_33, %c0_34] : memref<1x32xf32, #tpu.memory_space<vmem>>, vector<1x32xf32>
    %32 = vector.broadcast %31 : vector<1x32xf32> to vector<8x32xf32>
    %33 = arith.addf %30, %32 : vector<8x32xf32>
    %cst_35 = arith.constant 0.000000e+00 : f32
    %34 = vector.broadcast %cst_35 : f32 to vector<8x32xf32>
    %35 = arith.maximumf %33, %34 : vector<8x32xf32>
    %c0_36 = arith.constant 0 : index
    %c0_37 = arith.constant 0 : index
    %36 = vector.load %arg11[%c0_36, %c0_37] : memref<8x32xf32, #tpu.memory_space<vmem>>, vector<8x32xf32>
    tpu.vector_store %arg11[%c0_36, %c0_37], %35 {strides = array<i32>} : memref<8x32xf32, #tpu.memory_space<vmem>>, vector<8x32xf32>,
    %cst_38 = arith.constant 0.000000e+00 : bf16
    %37 = vector.broadcast %cst_38 : bf16 to vector<19x32xbf16>
    %c0_39 = arith.constant 0 : index
    %c0_40 = arith.constant 0 : index
    %38 = vector.load %arg12[%c0_39, %c0_40] : memref<19x32xbf16, #tpu.memory_space<vmem>>, vector<19x32xbf16>
    tpu.vector_store %arg12[%c0_39, %c0_40], %37 {strides = array<i32>} : memref<19x32xbf16, #tpu.memory_space<vmem>>, vector<19x32xbf16>,
    %c0_41 = arith.constant 0 : index
    %c0_42 = arith.constant 0 : index
    %39 = vector.load %arg11[%c0_41, %c0_42] : memref<8x32xf32, #tpu.memory_space<vmem>>, vector<8x32xf32>
    %cst_43 = arith.constant 0.000000e+00 : f32
    %40 = vector.broadcast %cst_43 : f32 to vector<8x32xf32>
    %41 = arith.maximumf %39, %40 : vector<8x32xf32>
    %42 = arith.truncf %41 : vector<8x32xf32> to vector<8x32xbf16>
    %c8 = arith.constant 8 : index
    %c0_44 = arith.constant 0 : index
    %43 = vector.load %arg12[%c8, %c0_44] : memref<19x32xbf16, #tpu.memory_space<vmem>>, vector<8x32xbf16>
    tpu.vector_store %arg12[%c8, %c0_44], %42 {strides = array<i32>} : memref<19x32xbf16, #tpu.memory_space<vmem>>, vector<8x32xbf16>,
    %cst_45 = arith.constant 0.000000e+00 : f32
    %44 = vector.broadcast %cst_45 : f32 to vector<8x32xf32>
    %c5 = arith.constant 5 : index
    %c0_46 = arith.constant 0 : index
    %45 = vector.load %arg12[%c5, %c0_46] : memref<19x32xbf16, #tpu.memory_space<vmem>>, vector<8x32xbf16>
    %c0_47 = arith.constant 0 : index
    %c0_48 = arith.constant 0 : index
    %c0_49 = arith.constant 0 : index
    %c0_50 = arith.constant 0 : index
    %46 = vector.load %arg6[%c0_47, %c0_48, %c0_49, %c0_50] : memref<2x3x32x32xbf16, #tpu.memory_space<vmem>>, vector<1x1x32x32xbf16>
    %47 = vector.shape_cast %46 : vector<1x1x32x32xbf16> to vector<32x32xbf16>
    %cst_51 = arith.constant dense<0.000000e+00> : vector<8x32xf32>
    %48 = tpu.matmul %45, %47, %cst_51 {dimension_numbers = #tpu.dot_dimension_numbers<[1], [0], [0], [1], [0, 0, 1, 1], [], []>} : vector<8x32xbf16>, vector<32x32xbf16>, vector<8x32xf32> -> vector<8x32xf32>
    %49 = arith.addf %44, %48 : vector<8x32xf32>
    %c8_52 = arith.constant 8 : index
    %c0_53 = arith.constant 0 : index
    %50 = vector.load %arg12[%c8_52, %c0_53] : memref<19x32xbf16, #tpu.memory_space<vmem>>, vector<8x32xbf16>
    %c0_54 = arith.constant 0 : index
    %c1_55 = arith.constant 1 : index
    %c0_56 = arith.constant 0 : index
    %c0_57 = arith.constant 0 : index
    %51 = vector.load %arg6[%c0_54, %c1_55, %c0_56, %c0_57] : memref<2x3x32x32xbf16, #tpu.memory_space<vmem>>, vector<1x1x32x32xbf16>
    %52 = vector.shape_cast %51 : vector<1x1x32x32xbf16> to vector<32x32xbf16>
    %cst_58 = arith.constant dense<0.000000e+00> : vector<8x32xf32>
    %53 = tpu.matmul %50, %52, %cst_58 {dimension_numbers = #tpu.dot_dimension_numbers<[1], [0], [0], [1], [0, 0, 1, 1], [], []>} : vector<8x32xbf16>, vector<32x32xbf16>, vector<8x32xf32> -> vector<8x32xf32>
    %54 = arith.addf %49, %53 : vector<8x32xf32>
    %c11 = arith.constant 11 : index
    %c0_59 = arith.constant 0 : index
    %55 = vector.load %arg12[%c11, %c0_59] : memref<19x32xbf16, #tpu.memory_space<vmem>>, vector<8x32xbf16>
    %c0_60 = arith.constant 0 : index
    %c2_61 = arith.constant 2 : index
    %c0_62 = arith.constant 0 : index
    %c0_63 = arith.constant 0 : index
    %56 = vector.load %arg6[%c0_60, %c2_61, %c0_62, %c0_63] : memref<2x3x32x32xbf16, #tpu.memory_space<vmem>>, vector<1x1x32x32xbf16>
    %57 = vector.shape_cast %56 : vector<1x1x32x32xbf16> to vector<32x32xbf16>
    %cst_64 = arith.constant dense<0.000000e+00> : vector<8x32xf32>
    %58 = tpu.matmul %55, %57, %cst_64 {dimension_numbers = #tpu.dot_dimension_numbers<[1], [0], [0], [1], [0, 0, 1, 1], [], []>} : vector<8x32xbf16>, vector<32x32xbf16>, vector<8x32xf32> -> vector<8x32xf32>
    %59 = arith.addf %54, %58 : vector<8x32xf32>
    %c0_65 = arith.constant 0 : index
    %c0_66 = arith.constant 0 : index
    %c0_67 = arith.constant 0 : index
    %60 = vector.load %arg7[%c0_65, %c0_66, %c0_67] : memref<2x1x32xf32, #tpu.memory_space<vmem>>, vector<1x1x32xf32>
    %61 = vector.shape_cast %60 : vector<1x1x32xf32> to vector<1x32xf32>
    %62 = vector.broadcast %61 : vector<1x32xf32> to vector<8x32xf32>
    %63 = arith.addf %59, %62 : vector<8x32xf32>
    %cst_68 = arith.constant 0.000000e+00 : f32
    %64 = vector.broadcast %cst_68 : f32 to vector<8x32xf32>
    %65 = arith.maximumf %63, %64 : vector<8x32xf32>
    %66 = arith.truncf %65 : vector<8x32xf32> to vector<8x32xbf16>
    %c0_69 = arith.constant 0 : index
    %c0_70 = arith.constant 0 : index
    %c0_71 = arith.constant 0 : index
    %67 = vector.load %arg8[%c0_69, %c0_70, %c0_71] : memref<2x32x32xbf16, #tpu.memory_space<vmem>>, vector<1x32x32xbf16>
    %68 = vector.shape_cast %67 : vector<1x32x32xbf16> to vector<32x32xbf16>
    %cst_72 = arith.constant dense<0.000000e+00> : vector<8x32xf32>
    %69 = tpu.matmul %66, %68, %cst_72 {dimension_numbers = #tpu.dot_dimension_numbers<[1], [0], [0], [1], [0, 0, 1, 1], [], []>} : vector<8x32xbf16>, vector<32x32xbf16>, vector<8x32xf32> -> vector<8x32xf32>
    %c0_73 = arith.constant 0 : index
    %c0_74 = arith.constant 0 : index
    %c0_75 = arith.constant 0 : index
    %70 = vector.load %arg9[%c0_73, %c0_74, %c0_75] : memref<2x1x32xf32, #tpu.memory_space<vmem>>, vector<1x1x32xf32>
    %71 = vector.shape_cast %70 : vector<1x1x32xf32> to vector<1x32xf32>
    %72 = vector.broadcast %71 : vector<1x32xf32> to vector<8x32xf32>
    %73 = arith.addf %69, %72 : vector<8x32xf32>
    %c0_76 = arith.constant 0 : index
    %c0_77 = arith.constant 0 : index
    %74 = vector.load %arg11[%c0_76, %c0_77] : memref<8x32xf32, #tpu.memory_space<vmem>>, vector<8x32xf32>
    %75 = arith.addf %74, %73 : vector<8x32xf32>
    %c0_78 = arith.constant 0 : index
    %c0_79 = arith.constant 0 : index
    %76 = vector.load %arg11[%c0_78, %c0_79] : memref<8x32xf32, #tpu.memory_space<vmem>>, vector<8x32xf32>
    tpu.vector_store %arg11[%c0_78, %c0_79], %75 {strides = array<i32>} : memref<8x32xf32, #tpu.memory_space<vmem>>, vector<8x32xf32>,
    %cst_80 = arith.constant 0.000000e+00 : bf16
    %77 = vector.broadcast %cst_80 : bf16 to vector<19x32xbf16>
    %c0_81 = arith.constant 0 : index
    %c0_82 = arith.constant 0 : index
    %78 = vector.load %arg12[%c0_81, %c0_82] : memref<19x32xbf16, #tpu.memory_space<vmem>>, vector<19x32xbf16>
    tpu.vector_store %arg12[%c0_81, %c0_82], %77 {strides = array<i32>} : memref<19x32xbf16, #tpu.memory_space<vmem>>, vector<19x32xbf16>,
    %c0_83 = arith.constant 0 : index
    %c0_84 = arith.constant 0 : index
    %79 = vector.load %arg11[%c0_83, %c0_84] : memref<8x32xf32, #tpu.memory_space<vmem>>, vector<8x32xf32>
    %cst_85 = arith.constant 0.000000e+00 : f32
    %80 = vector.broadcast %cst_85 : f32 to vector<8x32xf32>
    %81 = arith.maximumf %79, %80 : vector<8x32xf32>
    %82 = arith.truncf %81 : vector<8x32xf32> to vector<8x32xbf16>
    %c8_86 = arith.constant 8 : index
    %c0_87 = arith.constant 0 : index
    %83 = vector.load %arg12[%c8_86, %c0_87] : memref<19x32xbf16, #tpu.memory_space<vmem>>, vector<8x32xbf16>
    tpu.vector_store %arg12[%c8_86, %c0_87], %82 {strides = array<i32>} : memref<19x32xbf16, #tpu.memory_space<vmem>>, vector<8x32xbf16>,
    %cst_88 = arith.constant 0.000000e+00 : f32
    %84 = vector.broadcast %cst_88 : f32 to vector<8x32xf32>
    %c7 = arith.constant 7 : index
    %c0_89 = arith.constant 0 : index
    %85 = vector.load %arg12[%c7, %c0_89] : memref<19x32xbf16, #tpu.memory_space<vmem>>, vector<8x32xbf16>
    %c1_90 = arith.constant 1 : index
    %c0_91 = arith.constant 0 : index
    %c0_92 = arith.constant 0 : index
    %c0_93 = arith.constant 0 : index
    %86 = vector.load %arg6[%c1_90, %c0_91, %c0_92, %c0_93] : memref<2x3x32x32xbf16, #tpu.memory_space<vmem>>, vector<1x1x32x32xbf16>
    %87 = vector.shape_cast %86 : vector<1x1x32x32xbf16> to vector<32x32xbf16>
    %cst_94 = arith.constant dense<0.000000e+00> : vector<8x32xf32>
    %88 = tpu.matmul %85, %87, %cst_94 {dimension_numbers = #tpu.dot_dimension_numbers<[1], [0], [0], [1], [0, 0, 1, 1], [], []>} : vector<8x32xbf16>, vector<32x32xbf16>, vector<8x32xf32> -> vector<8x32xf32>
    %89 = arith.addf %84, %88 : vector<8x32xf32>
    %c8_95 = arith.constant 8 : index
    %c0_96 = arith.constant 0 : index
    %90 = vector.load %arg12[%c8_95, %c0_96] : memref<19x32xbf16, #tpu.memory_space<vmem>>, vector<8x32xbf16>
    %c1_97 = arith.constant 1 : index
    %c1_98 = arith.constant 1 : index
    %c0_99 = arith.constant 0 : index
    %c0_100 = arith.constant 0 : index
    %91 = vector.load %arg6[%c1_97, %c1_98, %c0_99, %c0_100] : memref<2x3x32x32xbf16, #tpu.memory_space<vmem>>, vector<1x1x32x32xbf16>
    %92 = vector.shape_cast %91 : vector<1x1x32x32xbf16> to vector<32x32xbf16>
    %cst_101 = arith.constant dense<0.000000e+00> : vector<8x32xf32>
    %93 = tpu.matmul %90, %92, %cst_101 {dimension_numbers = #tpu.dot_dimension_numbers<[1], [0], [0], [1], [0, 0, 1, 1], [], []>} : vector<8x32xbf16>, vector<32x32xbf16>, vector<8x32xf32> -> vector<8x32xf32>
    %94 = arith.addf %89, %93 : vector<8x32xf32>
    %c9 = arith.constant 9 : index
    %c0_102 = arith.constant 0 : index
    %95 = vector.load %arg12[%c9, %c0_102] : memref<19x32xbf16, #tpu.memory_space<vmem>>, vector<8x32xbf16>
    %c1_103 = arith.constant 1 : index
    %c2_104 = arith.constant 2 : index
    %c0_105 = arith.constant 0 : index
    %c0_106 = arith.constant 0 : index
    %96 = vector.load %arg6[%c1_103, %c2_104, %c0_105, %c0_106] : memref<2x3x32x32xbf16, #tpu.memory_space<vmem>>, vector<1x1x32x32xbf16>
    %97 = vector.shape_cast %96 : vector<1x1x32x32xbf16> to vector<32x32xbf16>
    %cst_107 = arith.constant dense<0.000000e+00> : vector<8x32xf32>
    %98 = tpu.matmul %95, %97, %cst_107 {dimension_numbers = #tpu.dot_dimension_numbers<[1], [0], [0], [1], [0, 0, 1, 1], [], []>} : vector<8x32xbf16>, vector<32x32xbf16>, vector<8x32xf32> -> vector<8x32xf32>
    %99 = arith.addf %94, %98 : vector<8x32xf32>
    %c1_108 = arith.constant 1 : index
    %c0_109 = arith.constant 0 : index
    %c0_110 = arith.constant 0 : index
    %100 = vector.load %arg7[%c1_108, %c0_109, %c0_110] : memref<2x1x32xf32, #tpu.memory_space<vmem>>, vector<1x1x32xf32>
    %101 = vector.shape_cast %100 : vector<1x1x32xf32> to vector<1x32xf32>
    %102 = vector.broadcast %101 : vector<1x32xf32> to vector<8x32xf32>
    %103 = arith.addf %99, %102 : vector<8x32xf32>
    %cst_111 = arith.constant 0.000000e+00 : f32
    %104 = vector.broadcast %cst_111 : f32 to vector<8x32xf32>
    %105 = arith.maximumf %103, %104 : vector<8x32xf32>
    %106 = arith.truncf %105 : vector<8x32xf32> to vector<8x32xbf16>
    %c1_112 = arith.constant 1 : index
    %c0_113 = arith.constant 0 : index
    %c0_114 = arith.constant 0 : index
    %107 = vector.load %arg8[%c1_112, %c0_113, %c0_114] : memref<2x32x32xbf16, #tpu.memory_space<vmem>>, vector<1x32x32xbf16>
    %108 = vector.shape_cast %107 : vector<1x32x32xbf16> to vector<32x32xbf16>
    %cst_115 = arith.constant dense<0.000000e+00> : vector<8x32xf32>
    %109 = tpu.matmul %106, %108, %cst_115 {dimension_numbers = #tpu.dot_dimension_numbers<[1], [0], [0], [1], [0, 0, 1, 1], [], []>} : vector<8x32xbf16>, vector<32x32xbf16>, vector<8x32xf32> -> vector<8x32xf32>
    %c1_116 = arith.constant 1 : index
    %c0_117 = arith.constant 0 : index
    %c0_118 = arith.constant 0 : index
    %110 = vector.load %arg9[%c1_116, %c0_117, %c0_118] : memref<2x1x32xf32, #tpu.memory_space<vmem>>, vector<1x1x32xf32>
    %111 = vector.shape_cast %110 : vector<1x1x32xf32> to vector<1x32xf32>
    %112 = vector.broadcast %111 : vector<1x32xf32> to vector<8x32xf32>
    %113 = arith.addf %109, %112 : vector<8x32xf32>
    %c0_119 = arith.constant 0 : index
    %c0_120 = arith.constant 0 : index
    %114 = vector.load %arg11[%c0_119, %c0_120] : memref<8x32xf32, #tpu.memory_space<vmem>>, vector<8x32xf32>
    %115 = arith.addf %114, %113 : vector<8x32xf32>
    %c0_121 = arith.constant 0 : index
    %c0_122 = arith.constant 0 : index
    %116 = vector.load %arg11[%c0_121, %c0_122] : memref<8x32xf32, #tpu.memory_space<vmem>>, vector<8x32xf32>
    tpu.vector_store %arg11[%c0_121, %c0_122], %115 {strides = array<i32>} : memref<8x32xf32, #tpu.memory_space<vmem>>, vector<8x32xf32>,
    %c0_123 = arith.constant 0 : index
    %c0_124 = arith.constant 0 : index
    %117 = vector.load %arg11[%c0_123, %c0_124] : memref<8x32xf32, #tpu.memory_space<vmem>>, vector<8x32xf32>
    %118 = arith.truncf %117 : vector<8x32xf32> to vector<8x32xbf16>
    %c0_125 = arith.constant 0 : index
    %c0_126 = arith.constant 0 : index
    %c0_127 = arith.constant 0 : index
    %119 = vector.load %arg10[%c0_125, %c0_126, %c0_127] : memref<1x8x32xbf16, #tpu.memory_space<vmem>>, vector<1x8x32xbf16>
    %120 = vector.shape_cast %119 : vector<1x8x32xbf16> to vector<8x32xbf16>
    %121 = vector.shape_cast %118 : vector<8x32xbf16> to vector<1x8x32xbf16>
    tpu.vector_store %arg10[%c0_125, %c0_126, %c0_127], %121 {strides = array<i32>} : memref<1x8x32xbf16, #tpu.memory_space<vmem>>, vector<1x8x32xbf16>,
    return
  }
  func.func @transform_0(%arg0: i32) -> (i32, i32, i32, i32) {
    %c0_i32 = arith.constant 0 : i32
    %c0_i32_0 = arith.constant 0 : i32
    %c0_i32_1 = arith.constant 0 : i32
    %c0_i32_2 = arith.constant 0 : i32
    return %c0_i32, %arg0, %c0_i32_0, %c0_i32_1 : i32, i32, i32, i32
  }
  func.func @transform_1(%arg0: i32) -> (i32, i32, i32) {
    %c0_i32 = arith.constant 0 : i32
    %c0_i32_0 = arith.constant 0 : i32
    %c0_i32_1 = arith.constant 0 : i32
    %c0_i32_2 = arith.constant 0 : i32
    return %c0_i32, %c0_i32_0, %c0_i32_1 : i32, i32, i32
  }
  func.func @transform_2(%arg0: i32) -> (i32, i32) {
    %c0_i32 = arith.constant 0 : i32
    %c0_i32_0 = arith.constant 0 : i32
    %c0_i32_1 = arith.constant 0 : i32
    return %c0_i32, %c0_i32_0 : i32, i32
  }
  func.func @transform_3(%arg0: i32) -> (i32, i32) {
    %c0_i32 = arith.constant 0 : i32
    %c0_i32_0 = arith.constant 0 : i32
    %c0_i32_1 = arith.constant 0 : i32
    return %c0_i32, %c0_i32_0 : i32, i32
  }
  func.func @transform_4(%arg0: i32) -> (i32, i32) {
    %c0_i32 = arith.constant 0 : i32
    %c0_i32_0 = arith.constant 0 : i32
    %c0_i32_1 = arith.constant 0 : i32
    return %c0_i32, %c0_i32_0 : i32, i32
  }
  func.func @transform_5(%arg0: i32) -> (i32, i32, i32, i32) {
    %c0_i32 = arith.constant 0 : i32
    %c0_i32_0 = arith.constant 0 : i32
    %c0_i32_1 = arith.constant 0 : i32
    %c0_i32_2 = arith.constant 0 : i32
    %c0_i32_3 = arith.constant 0 : i32
    return %c0_i32, %c0_i32_0, %c0_i32_1, %c0_i32_2 : i32, i32, i32, i32
  }
  func.func @transform_6(%arg0: i32) -> (i32, i32, i32) {
    %c0_i32 = arith.constant 0 : i32
    %c0_i32_0 = arith.constant 0 : i32
    %c0_i32_1 = arith.constant 0 : i32
    %c0_i32_2 = arith.constant 0 : i32
    return %c0_i32, %c0_i32_0, %c0_i32_1 : i32, i32, i32
  }
  func.func @transform_7(%arg0: i32) -> (i32, i32, i32) {
    %c0_i32 = arith.constant 0 : i32
    %c0_i32_0 = arith.constant 0 : i32
    %c0_i32_1 = arith.constant 0 : i32
    %c0_i32_2 = arith.constant 0 : i32
    return %c0_i32, %c0_i32_0, %c0_i32_1 : i32, i32, i32
  }
  func.func @transform_8(%arg0: i32) -> (i32, i32, i32) {
    %c0_i32 = arith.constant 0 : i32
    %c0_i32_0 = arith.constant 0 : i32
    %c0_i32_1 = arith.constant 0 : i32
    %c0_i32_2 = arith.constant 0 : i32
    return %c0_i32, %c0_i32_0, %c0_i32_1 : i32, i32, i32
  }
  func.func @transform_9(%arg0: i32) -> (i32, i32, i32) {
    %c0_i32 = arith.constant 0 : i32
    %c0_i32_0 = arith.constant 0 : i32
    %c0_i32_1 = arith.constant 0 : i32
    return %arg0, %c0_i32, %c0_i32_0 : i32, i32, i32
  }
}

module attributes {stable_mosaic.version = 11 : i64} {
  func.func @_level_kernel(%arg0: i32, %arg1: memref<2x1x5x32xbf16, #tpu.memory_space<vmem>>, %arg2: memref<4x32x32xbf16, #tpu.memory_space<vmem>>, %arg3: memref<1x32xf32, #tpu.memory_space<vmem>>, %arg4: memref<32x32xbf16, #tpu.memory_space<vmem>>, %arg5: memref<1x32xf32, #tpu.memory_space<vmem>>, %arg6: memref<2x3x32x32xbf16, #tpu.memory_space<vmem>>, %arg7: memref<2x1x32xf32, #tpu.memory_space<vmem>>, %arg8: memref<2x32x32xbf16, #tpu.memory_space<vmem>>, %arg9: memref<2x1x32xf32, #tpu.memory_space<vmem>>, %arg10: memref<1x4x32xbf16, #tpu.memory_space<vmem>>, %arg11: memref<4x32xf32, #tpu.memory_space<vmem>>, %arg12: memref<15x32xbf16, #tpu.memory_space<vmem>>) attributes {dimension_semantics = [#tpu.dimension_semantics<parallel>], iteration_bounds = array<i64: 2>, scalar_prefetch = 0 : i64, scratch_operands = 2 : i64, tpu.core_type = #tpu.core_type<tc>, window_params = [{transform_indices = @transform_0, window_bounds = array<i64: 2, 1, 5, 32>}, {pipeline_mode = #tpu.pipeline_mode<synchronous>, transform_indices = @transform_1, window_bounds = array<i64: 4, 32, 32>}, {pipeline_mode = #tpu.pipeline_mode<synchronous>, transform_indices = @transform_2, window_bounds = array<i64: 1, 32>}, {pipeline_mode = #tpu.pipeline_mode<synchronous>, transform_indices = @transform_3, window_bounds = array<i64: 32, 32>}, {pipeline_mode = #tpu.pipeline_mode<synchronous>, transform_indices = @transform_4, window_bounds = array<i64: 1, 32>}, {pipeline_mode = #tpu.pipeline_mode<synchronous>, transform_indices = @transform_5, window_bounds = array<i64: 2, 3, 32, 32>}, {pipeline_mode = #tpu.pipeline_mode<synchronous>, transform_indices = @transform_6, window_bounds = array<i64: 2, 1, 32>}, {pipeline_mode = #tpu.pipeline_mode<synchronous>, transform_indices = @transform_7, window_bounds = array<i64: 2, 32, 32>}, {pipeline_mode = #tpu.pipeline_mode<synchronous>, transform_indices = @transform_8, window_bounds = array<i64: 2, 1, 32>}, {transform_indices = @transform_9, window_bounds = array<i64: 1, 4, 32>}]} {
    %cst = arith.constant 0.000000e+00 : f32
    %0 = vector.broadcast %cst : f32 to vector<4x32xf32>
    %c0 = arith.constant 0 : index
    %c0_0 = arith.constant 0 : index
    %c0_1 = arith.constant 0 : index
    %c0_2 = arith.constant 0 : index
    %1 = vector.load %arg1[%c0, %c0_0, %c0_1, %c0_2] : memref<2x1x5x32xbf16, #tpu.memory_space<vmem>>, vector<1x1x4x32xbf16>
    %2 = vector.shape_cast %1 : vector<1x1x4x32xbf16> to vector<4x32xbf16>
    %c0_3 = arith.constant 0 : index
    %c0_4 = arith.constant 0 : index
    %c0_5 = arith.constant 0 : index
    %3 = vector.load %arg2[%c0_3, %c0_4, %c0_5] : memref<4x32x32xbf16, #tpu.memory_space<vmem>>, vector<1x32x32xbf16>
    %4 = vector.shape_cast %3 : vector<1x32x32xbf16> to vector<32x32xbf16>
    %cst_6 = arith.constant dense<0.000000e+00> : vector<4x32xf32>
    %5 = tpu.matmul %2, %4, %cst_6 {dimension_numbers = #tpu.dot_dimension_numbers<[1], [0], [0], [1], [0, 0, 1, 1], [], []>} : vector<4x32xbf16>, vector<32x32xbf16>, vector<4x32xf32> -> vector<4x32xf32>
    %6 = arith.addf %0, %5 : vector<4x32xf32>
    %c1 = arith.constant 1 : index
    %c0_7 = arith.constant 0 : index
    %c0_8 = arith.constant 0 : index
    %c0_9 = arith.constant 0 : index
    %7 = vector.load %arg1[%c1, %c0_7, %c0_8, %c0_9] : memref<2x1x5x32xbf16, #tpu.memory_space<vmem>>, vector<1x1x4x32xbf16>
    %8 = vector.shape_cast %7 : vector<1x1x4x32xbf16> to vector<4x32xbf16>
    %c1_10 = arith.constant 1 : index
    %c0_11 = arith.constant 0 : index
    %c0_12 = arith.constant 0 : index
    %9 = vector.load %arg2[%c1_10, %c0_11, %c0_12] : memref<4x32x32xbf16, #tpu.memory_space<vmem>>, vector<1x32x32xbf16>
    %10 = vector.shape_cast %9 : vector<1x32x32xbf16> to vector<32x32xbf16>
    %cst_13 = arith.constant dense<0.000000e+00> : vector<4x32xf32>
    %11 = tpu.matmul %8, %10, %cst_13 {dimension_numbers = #tpu.dot_dimension_numbers<[1], [0], [0], [1], [0, 0, 1, 1], [], []>} : vector<4x32xbf16>, vector<32x32xbf16>, vector<4x32xf32> -> vector<4x32xf32>
    %12 = arith.addf %6, %11 : vector<4x32xf32>
    %c0_14 = arith.constant 0 : index
    %c0_15 = arith.constant 0 : index
    %c1_16 = arith.constant 1 : index
    %c0_17 = arith.constant 0 : index
    %13 = vector.load %arg1[%c0_14, %c0_15, %c1_16, %c0_17] : memref<2x1x5x32xbf16, #tpu.memory_space<vmem>>, vector<1x1x4x32xbf16>
    %14 = vector.shape_cast %13 : vector<1x1x4x32xbf16> to vector<4x32xbf16>
    %c2 = arith.constant 2 : index
    %c0_18 = arith.constant 0 : index
    %c0_19 = arith.constant 0 : index
    %15 = vector.load %arg2[%c2, %c0_18, %c0_19] : memref<4x32x32xbf16, #tpu.memory_space<vmem>>, vector<1x32x32xbf16>
    %16 = vector.shape_cast %15 : vector<1x32x32xbf16> to vector<32x32xbf16>
    %cst_20 = arith.constant dense<0.000000e+00> : vector<4x32xf32>
    %17 = tpu.matmul %14, %16, %cst_20 {dimension_numbers = #tpu.dot_dimension_numbers<[1], [0], [0], [1], [0, 0, 1, 1], [], []>} : vector<4x32xbf16>, vector<32x32xbf16>, vector<4x32xf32> -> vector<4x32xf32>
    %18 = arith.addf %12, %17 : vector<4x32xf32>
    %c1_21 = arith.constant 1 : index
    %c0_22 = arith.constant 0 : index
    %c1_23 = arith.constant 1 : index
    %c0_24 = arith.constant 0 : index
    %19 = vector.load %arg1[%c1_21, %c0_22, %c1_23, %c0_24] : memref<2x1x5x32xbf16, #tpu.memory_space<vmem>>, vector<1x1x4x32xbf16>
    %20 = vector.shape_cast %19 : vector<1x1x4x32xbf16> to vector<4x32xbf16>
    %c3 = arith.constant 3 : index
    %c0_25 = arith.constant 0 : index
    %c0_26 = arith.constant 0 : index
    %21 = vector.load %arg2[%c3, %c0_25, %c0_26] : memref<4x32x32xbf16, #tpu.memory_space<vmem>>, vector<1x32x32xbf16>
    %22 = vector.shape_cast %21 : vector<1x32x32xbf16> to vector<32x32xbf16>
    %cst_27 = arith.constant dense<0.000000e+00> : vector<4x32xf32>
    %23 = tpu.matmul %20, %22, %cst_27 {dimension_numbers = #tpu.dot_dimension_numbers<[1], [0], [0], [1], [0, 0, 1, 1], [], []>} : vector<4x32xbf16>, vector<32x32xbf16>, vector<4x32xf32> -> vector<4x32xf32>
    %24 = arith.addf %18, %23 : vector<4x32xf32>
    %c0_28 = arith.constant 0 : index
    %c0_29 = arith.constant 0 : index
    %25 = vector.load %arg3[%c0_28, %c0_29] : memref<1x32xf32, #tpu.memory_space<vmem>>, vector<1x32xf32>
    %26 = vector.broadcast %25 : vector<1x32xf32> to vector<4x32xf32>
    %27 = arith.addf %24, %26 : vector<4x32xf32>
    %28 = arith.truncf %27 : vector<4x32xf32> to vector<4x32xbf16>
    %c0_30 = arith.constant 0 : index
    %c0_31 = arith.constant 0 : index
    %29 = vector.load %arg4[%c0_30, %c0_31] : memref<32x32xbf16, #tpu.memory_space<vmem>>, vector<32x32xbf16>
    %cst_32 = arith.constant dense<0.000000e+00> : vector<4x32xf32>
    %30 = tpu.matmul %28, %29, %cst_32 {dimension_numbers = #tpu.dot_dimension_numbers<[1], [0], [0], [1], [0, 0, 1, 1], [], []>} : vector<4x32xbf16>, vector<32x32xbf16>, vector<4x32xf32> -> vector<4x32xf32>
    %c0_33 = arith.constant 0 : index
    %c0_34 = arith.constant 0 : index
    %31 = vector.load %arg5[%c0_33, %c0_34] : memref<1x32xf32, #tpu.memory_space<vmem>>, vector<1x32xf32>
    %32 = vector.broadcast %31 : vector<1x32xf32> to vector<4x32xf32>
    %33 = arith.addf %30, %32 : vector<4x32xf32>
    %cst_35 = arith.constant 0.000000e+00 : f32
    %34 = vector.broadcast %cst_35 : f32 to vector<4x32xf32>
    %35 = arith.maximumf %33, %34 : vector<4x32xf32>
    %c0_36 = arith.constant 0 : index
    %c0_37 = arith.constant 0 : index
    %36 = vector.load %arg11[%c0_36, %c0_37] : memref<4x32xf32, #tpu.memory_space<vmem>>, vector<4x32xf32>
    tpu.vector_store %arg11[%c0_36, %c0_37], %35 {strides = array<i32>} : memref<4x32xf32, #tpu.memory_space<vmem>>, vector<4x32xf32>,
    %cst_38 = arith.constant 0.000000e+00 : bf16
    %37 = vector.broadcast %cst_38 : bf16 to vector<15x32xbf16>
    %c0_39 = arith.constant 0 : index
    %c0_40 = arith.constant 0 : index
    %38 = vector.load %arg12[%c0_39, %c0_40] : memref<15x32xbf16, #tpu.memory_space<vmem>>, vector<15x32xbf16>
    tpu.vector_store %arg12[%c0_39, %c0_40], %37 {strides = array<i32>} : memref<15x32xbf16, #tpu.memory_space<vmem>>, vector<15x32xbf16>,
    %c0_41 = arith.constant 0 : index
    %c0_42 = arith.constant 0 : index
    %39 = vector.load %arg11[%c0_41, %c0_42] : memref<4x32xf32, #tpu.memory_space<vmem>>, vector<4x32xf32>
    %cst_43 = arith.constant 0.000000e+00 : f32
    %40 = vector.broadcast %cst_43 : f32 to vector<4x32xf32>
    %41 = arith.maximumf %39, %40 : vector<4x32xf32>
    %42 = arith.truncf %41 : vector<4x32xf32> to vector<4x32xbf16>
    %c8 = arith.constant 8 : index
    %c0_44 = arith.constant 0 : index
    %43 = vector.load %arg12[%c8, %c0_44] : memref<15x32xbf16, #tpu.memory_space<vmem>>, vector<4x32xbf16>
    tpu.vector_store %arg12[%c8, %c0_44], %42 {strides = array<i32>} : memref<15x32xbf16, #tpu.memory_space<vmem>>, vector<4x32xbf16>,
    %cst_45 = arith.constant 0.000000e+00 : f32
    %44 = vector.broadcast %cst_45 : f32 to vector<4x32xf32>
    %c5 = arith.constant 5 : index
    %c0_46 = arith.constant 0 : index
    %45 = vector.load %arg12[%c5, %c0_46] : memref<15x32xbf16, #tpu.memory_space<vmem>>, vector<4x32xbf16>
    %c0_47 = arith.constant 0 : index
    %c0_48 = arith.constant 0 : index
    %c0_49 = arith.constant 0 : index
    %c0_50 = arith.constant 0 : index
    %46 = vector.load %arg6[%c0_47, %c0_48, %c0_49, %c0_50] : memref<2x3x32x32xbf16, #tpu.memory_space<vmem>>, vector<1x1x32x32xbf16>
    %47 = vector.shape_cast %46 : vector<1x1x32x32xbf16> to vector<32x32xbf16>
    %cst_51 = arith.constant dense<0.000000e+00> : vector<4x32xf32>
    %48 = tpu.matmul %45, %47, %cst_51 {dimension_numbers = #tpu.dot_dimension_numbers<[1], [0], [0], [1], [0, 0, 1, 1], [], []>} : vector<4x32xbf16>, vector<32x32xbf16>, vector<4x32xf32> -> vector<4x32xf32>
    %49 = arith.addf %44, %48 : vector<4x32xf32>
    %c8_52 = arith.constant 8 : index
    %c0_53 = arith.constant 0 : index
    %50 = vector.load %arg12[%c8_52, %c0_53] : memref<15x32xbf16, #tpu.memory_space<vmem>>, vector<4x32xbf16>
    %c0_54 = arith.constant 0 : index
    %c1_55 = arith.constant 1 : index
    %c0_56 = arith.constant 0 : index
    %c0_57 = arith.constant 0 : index
    %51 = vector.load %arg6[%c0_54, %c1_55, %c0_56, %c0_57] : memref<2x3x32x32xbf16, #tpu.memory_space<vmem>>, vector<1x1x32x32xbf16>
    %52 = vector.shape_cast %51 : vector<1x1x32x32xbf16> to vector<32x32xbf16>
    %cst_58 = arith.constant dense<0.000000e+00> : vector<4x32xf32>
    %53 = tpu.matmul %50, %52, %cst_58 {dimension_numbers = #tpu.dot_dimension_numbers<[1], [0], [0], [1], [0, 0, 1, 1], [], []>} : vector<4x32xbf16>, vector<32x32xbf16>, vector<4x32xf32> -> vector<4x32xf32>
    %54 = arith.addf %49, %53 : vector<4x32xf32>
    %c11 = arith.constant 11 : index
    %c0_59 = arith.constant 0 : index
    %55 = vector.load %arg12[%c11, %c0_59] : memref<15x32xbf16, #tpu.memory_space<vmem>>, vector<4x32xbf16>
    %c0_60 = arith.constant 0 : index
    %c2_61 = arith.constant 2 : index
    %c0_62 = arith.constant 0 : index
    %c0_63 = arith.constant 0 : index
    %56 = vector.load %arg6[%c0_60, %c2_61, %c0_62, %c0_63] : memref<2x3x32x32xbf16, #tpu.memory_space<vmem>>, vector<1x1x32x32xbf16>
    %57 = vector.shape_cast %56 : vector<1x1x32x32xbf16> to vector<32x32xbf16>
    %cst_64 = arith.constant dense<0.000000e+00> : vector<4x32xf32>
    %58 = tpu.matmul %55, %57, %cst_64 {dimension_numbers = #tpu.dot_dimension_numbers<[1], [0], [0], [1], [0, 0, 1, 1], [], []>} : vector<4x32xbf16>, vector<32x32xbf16>, vector<4x32xf32> -> vector<4x32xf32>
    %59 = arith.addf %54, %58 : vector<4x32xf32>
    %c0_65 = arith.constant 0 : index
    %c0_66 = arith.constant 0 : index
    %c0_67 = arith.constant 0 : index
    %60 = vector.load %arg7[%c0_65, %c0_66, %c0_67] : memref<2x1x32xf32, #tpu.memory_space<vmem>>, vector<1x1x32xf32>
    %61 = vector.shape_cast %60 : vector<1x1x32xf32> to vector<1x32xf32>
    %62 = vector.broadcast %61 : vector<1x32xf32> to vector<4x32xf32>
    %63 = arith.addf %59, %62 : vector<4x32xf32>
    %cst_68 = arith.constant 0.000000e+00 : f32
    %64 = vector.broadcast %cst_68 : f32 to vector<4x32xf32>
    %65 = arith.maximumf %63, %64 : vector<4x32xf32>
    %66 = arith.truncf %65 : vector<4x32xf32> to vector<4x32xbf16>
    %c0_69 = arith.constant 0 : index
    %c0_70 = arith.constant 0 : index
    %c0_71 = arith.constant 0 : index
    %67 = vector.load %arg8[%c0_69, %c0_70, %c0_71] : memref<2x32x32xbf16, #tpu.memory_space<vmem>>, vector<1x32x32xbf16>
    %68 = vector.shape_cast %67 : vector<1x32x32xbf16> to vector<32x32xbf16>
    %cst_72 = arith.constant dense<0.000000e+00> : vector<4x32xf32>
    %69 = tpu.matmul %66, %68, %cst_72 {dimension_numbers = #tpu.dot_dimension_numbers<[1], [0], [0], [1], [0, 0, 1, 1], [], []>} : vector<4x32xbf16>, vector<32x32xbf16>, vector<4x32xf32> -> vector<4x32xf32>
    %c0_73 = arith.constant 0 : index
    %c0_74 = arith.constant 0 : index
    %c0_75 = arith.constant 0 : index
    %70 = vector.load %arg9[%c0_73, %c0_74, %c0_75] : memref<2x1x32xf32, #tpu.memory_space<vmem>>, vector<1x1x32xf32>
    %71 = vector.shape_cast %70 : vector<1x1x32xf32> to vector<1x32xf32>
    %72 = vector.broadcast %71 : vector<1x32xf32> to vector<4x32xf32>
    %73 = arith.addf %69, %72 : vector<4x32xf32>
    %c0_76 = arith.constant 0 : index
    %c0_77 = arith.constant 0 : index
    %74 = vector.load %arg11[%c0_76, %c0_77] : memref<4x32xf32, #tpu.memory_space<vmem>>, vector<4x32xf32>
    %75 = arith.addf %74, %73 : vector<4x32xf32>
    %c0_78 = arith.constant 0 : index
    %c0_79 = arith.constant 0 : index
    %76 = vector.load %arg11[%c0_78, %c0_79] : memref<4x32xf32, #tpu.memory_space<vmem>>, vector<4x32xf32>
    tpu.vector_store %arg11[%c0_78, %c0_79], %75 {strides = array<i32>} : memref<4x32xf32, #tpu.memory_space<vmem>>, vector<4x32xf32>,
    %cst_80 = arith.constant 0.000000e+00 : bf16
    %77 = vector.broadcast %cst_80 : bf16 to vector<15x32xbf16>
    %c0_81 = arith.constant 0 : index
    %c0_82 = arith.constant 0 : index
    %78 = vector.load %arg12[%c0_81, %c0_82] : memref<15x32xbf16, #tpu.memory_space<vmem>>, vector<15x32xbf16>
    tpu.vector_store %arg12[%c0_81, %c0_82], %77 {strides = array<i32>} : memref<15x32xbf16, #tpu.memory_space<vmem>>, vector<15x32xbf16>,
    %c0_83 = arith.constant 0 : index
    %c0_84 = arith.constant 0 : index
    %79 = vector.load %arg11[%c0_83, %c0_84] : memref<4x32xf32, #tpu.memory_space<vmem>>, vector<4x32xf32>
    %cst_85 = arith.constant 0.000000e+00 : f32
    %80 = vector.broadcast %cst_85 : f32 to vector<4x32xf32>
    %81 = arith.maximumf %79, %80 : vector<4x32xf32>
    %82 = arith.truncf %81 : vector<4x32xf32> to vector<4x32xbf16>
    %c8_86 = arith.constant 8 : index
    %c0_87 = arith.constant 0 : index
    %83 = vector.load %arg12[%c8_86, %c0_87] : memref<15x32xbf16, #tpu.memory_space<vmem>>, vector<4x32xbf16>
    tpu.vector_store %arg12[%c8_86, %c0_87], %82 {strides = array<i32>} : memref<15x32xbf16, #tpu.memory_space<vmem>>, vector<4x32xbf16>,
    %cst_88 = arith.constant 0.000000e+00 : f32
    %84 = vector.broadcast %cst_88 : f32 to vector<4x32xf32>
    %c7 = arith.constant 7 : index
    %c0_89 = arith.constant 0 : index
    %85 = vector.load %arg12[%c7, %c0_89] : memref<15x32xbf16, #tpu.memory_space<vmem>>, vector<4x32xbf16>
    %c1_90 = arith.constant 1 : index
    %c0_91 = arith.constant 0 : index
    %c0_92 = arith.constant 0 : index
    %c0_93 = arith.constant 0 : index
    %86 = vector.load %arg6[%c1_90, %c0_91, %c0_92, %c0_93] : memref<2x3x32x32xbf16, #tpu.memory_space<vmem>>, vector<1x1x32x32xbf16>
    %87 = vector.shape_cast %86 : vector<1x1x32x32xbf16> to vector<32x32xbf16>
    %cst_94 = arith.constant dense<0.000000e+00> : vector<4x32xf32>
    %88 = tpu.matmul %85, %87, %cst_94 {dimension_numbers = #tpu.dot_dimension_numbers<[1], [0], [0], [1], [0, 0, 1, 1], [], []>} : vector<4x32xbf16>, vector<32x32xbf16>, vector<4x32xf32> -> vector<4x32xf32>
    %89 = arith.addf %84, %88 : vector<4x32xf32>
    %c8_95 = arith.constant 8 : index
    %c0_96 = arith.constant 0 : index
    %90 = vector.load %arg12[%c8_95, %c0_96] : memref<15x32xbf16, #tpu.memory_space<vmem>>, vector<4x32xbf16>
    %c1_97 = arith.constant 1 : index
    %c1_98 = arith.constant 1 : index
    %c0_99 = arith.constant 0 : index
    %c0_100 = arith.constant 0 : index
    %91 = vector.load %arg6[%c1_97, %c1_98, %c0_99, %c0_100] : memref<2x3x32x32xbf16, #tpu.memory_space<vmem>>, vector<1x1x32x32xbf16>
    %92 = vector.shape_cast %91 : vector<1x1x32x32xbf16> to vector<32x32xbf16>
    %cst_101 = arith.constant dense<0.000000e+00> : vector<4x32xf32>
    %93 = tpu.matmul %90, %92, %cst_101 {dimension_numbers = #tpu.dot_dimension_numbers<[1], [0], [0], [1], [0, 0, 1, 1], [], []>} : vector<4x32xbf16>, vector<32x32xbf16>, vector<4x32xf32> -> vector<4x32xf32>
    %94 = arith.addf %89, %93 : vector<4x32xf32>
    %c9 = arith.constant 9 : index
    %c0_102 = arith.constant 0 : index
    %95 = vector.load %arg12[%c9, %c0_102] : memref<15x32xbf16, #tpu.memory_space<vmem>>, vector<4x32xbf16>
    %c1_103 = arith.constant 1 : index
    %c2_104 = arith.constant 2 : index
    %c0_105 = arith.constant 0 : index
    %c0_106 = arith.constant 0 : index
    %96 = vector.load %arg6[%c1_103, %c2_104, %c0_105, %c0_106] : memref<2x3x32x32xbf16, #tpu.memory_space<vmem>>, vector<1x1x32x32xbf16>
    %97 = vector.shape_cast %96 : vector<1x1x32x32xbf16> to vector<32x32xbf16>
    %cst_107 = arith.constant dense<0.000000e+00> : vector<4x32xf32>
    %98 = tpu.matmul %95, %97, %cst_107 {dimension_numbers = #tpu.dot_dimension_numbers<[1], [0], [0], [1], [0, 0, 1, 1], [], []>} : vector<4x32xbf16>, vector<32x32xbf16>, vector<4x32xf32> -> vector<4x32xf32>
    %99 = arith.addf %94, %98 : vector<4x32xf32>
    %c1_108 = arith.constant 1 : index
    %c0_109 = arith.constant 0 : index
    %c0_110 = arith.constant 0 : index
    %100 = vector.load %arg7[%c1_108, %c0_109, %c0_110] : memref<2x1x32xf32, #tpu.memory_space<vmem>>, vector<1x1x32xf32>
    %101 = vector.shape_cast %100 : vector<1x1x32xf32> to vector<1x32xf32>
    %102 = vector.broadcast %101 : vector<1x32xf32> to vector<4x32xf32>
    %103 = arith.addf %99, %102 : vector<4x32xf32>
    %cst_111 = arith.constant 0.000000e+00 : f32
    %104 = vector.broadcast %cst_111 : f32 to vector<4x32xf32>
    %105 = arith.maximumf %103, %104 : vector<4x32xf32>
    %106 = arith.truncf %105 : vector<4x32xf32> to vector<4x32xbf16>
    %c1_112 = arith.constant 1 : index
    %c0_113 = arith.constant 0 : index
    %c0_114 = arith.constant 0 : index
    %107 = vector.load %arg8[%c1_112, %c0_113, %c0_114] : memref<2x32x32xbf16, #tpu.memory_space<vmem>>, vector<1x32x32xbf16>
    %108 = vector.shape_cast %107 : vector<1x32x32xbf16> to vector<32x32xbf16>
    %cst_115 = arith.constant dense<0.000000e+00> : vector<4x32xf32>
    %109 = tpu.matmul %106, %108, %cst_115 {dimension_numbers = #tpu.dot_dimension_numbers<[1], [0], [0], [1], [0, 0, 1, 1], [], []>} : vector<4x32xbf16>, vector<32x32xbf16>, vector<4x32xf32> -> vector<4x32xf32>
    %c1_116 = arith.constant 1 : index
    %c0_117 = arith.constant 0 : index
    %c0_118 = arith.constant 0 : index
    %110 = vector.load %arg9[%c1_116, %c0_117, %c0_118] : memref<2x1x32xf32, #tpu.memory_space<vmem>>, vector<1x1x32xf32>
    %111 = vector.shape_cast %110 : vector<1x1x32xf32> to vector<1x32xf32>
    %112 = vector.broadcast %111 : vector<1x32xf32> to vector<4x32xf32>
    %113 = arith.addf %109, %112 : vector<4x32xf32>
    %c0_119 = arith.constant 0 : index
    %c0_120 = arith.constant 0 : index
    %114 = vector.load %arg11[%c0_119, %c0_120] : memref<4x32xf32, #tpu.memory_space<vmem>>, vector<4x32xf32>
    %115 = arith.addf %114, %113 : vector<4x32xf32>
    %c0_121 = arith.constant 0 : index
    %c0_122 = arith.constant 0 : index
    %116 = vector.load %arg11[%c0_121, %c0_122] : memref<4x32xf32, #tpu.memory_space<vmem>>, vector<4x32xf32>
    tpu.vector_store %arg11[%c0_121, %c0_122], %115 {strides = array<i32>} : memref<4x32xf32, #tpu.memory_space<vmem>>, vector<4x32xf32>,
    %c0_123 = arith.constant 0 : index
    %c0_124 = arith.constant 0 : index
    %117 = vector.load %arg11[%c0_123, %c0_124] : memref<4x32xf32, #tpu.memory_space<vmem>>, vector<4x32xf32>
    %118 = arith.truncf %117 : vector<4x32xf32> to vector<4x32xbf16>
    %c0_125 = arith.constant 0 : index
    %c0_126 = arith.constant 0 : index
    %c0_127 = arith.constant 0 : index
    %119 = vector.load %arg10[%c0_125, %c0_126, %c0_127] : memref<1x4x32xbf16, #tpu.memory_space<vmem>>, vector<1x4x32xbf16>
    %120 = vector.shape_cast %119 : vector<1x4x32xbf16> to vector<4x32xbf16>
    %121 = vector.shape_cast %118 : vector<4x32xbf16> to vector<1x4x32xbf16>
    tpu.vector_store %arg10[%c0_125, %c0_126, %c0_127], %121 {strides = array<i32>} : memref<1x4x32xbf16, #tpu.memory_space<vmem>>, vector<1x4x32xbf16>,
    return
  }
  func.func @transform_0(%arg0: i32) -> (i32, i32, i32, i32) {
    %c0_i32 = arith.constant 0 : i32
    %c0_i32_0 = arith.constant 0 : i32
    %c0_i32_1 = arith.constant 0 : i32
    %c0_i32_2 = arith.constant 0 : i32
    return %c0_i32, %arg0, %c0_i32_0, %c0_i32_1 : i32, i32, i32, i32
  }
  func.func @transform_1(%arg0: i32) -> (i32, i32, i32) {
    %c0_i32 = arith.constant 0 : i32
    %c0_i32_0 = arith.constant 0 : i32
    %c0_i32_1 = arith.constant 0 : i32
    %c0_i32_2 = arith.constant 0 : i32
    return %c0_i32, %c0_i32_0, %c0_i32_1 : i32, i32, i32
  }
  func.func @transform_2(%arg0: i32) -> (i32, i32) {
    %c0_i32 = arith.constant 0 : i32
    %c0_i32_0 = arith.constant 0 : i32
    %c0_i32_1 = arith.constant 0 : i32
    return %c0_i32, %c0_i32_0 : i32, i32
  }
  func.func @transform_3(%arg0: i32) -> (i32, i32) {
    %c0_i32 = arith.constant 0 : i32
    %c0_i32_0 = arith.constant 0 : i32
    %c0_i32_1 = arith.constant 0 : i32
    return %c0_i32, %c0_i32_0 : i32, i32
  }
  func.func @transform_4(%arg0: i32) -> (i32, i32) {
    %c0_i32 = arith.constant 0 : i32
    %c0_i32_0 = arith.constant 0 : i32
    %c0_i32_1 = arith.constant 0 : i32
    return %c0_i32, %c0_i32_0 : i32, i32
  }
  func.func @transform_5(%arg0: i32) -> (i32, i32, i32, i32) {
    %c0_i32 = arith.constant 0 : i32
    %c0_i32_0 = arith.constant 0 : i32
    %c0_i32_1 = arith.constant 0 : i32
    %c0_i32_2 = arith.constant 0 : i32
    %c0_i32_3 = arith.constant 0 : i32
    return %c0_i32, %c0_i32_0, %c0_i32_1, %c0_i32_2 : i32, i32, i32, i32
  }
  func.func @transform_6(%arg0: i32) -> (i32, i32, i32) {
    %c0_i32 = arith.constant 0 : i32
    %c0_i32_0 = arith.constant 0 : i32
    %c0_i32_1 = arith.constant 0 : i32
    %c0_i32_2 = arith.constant 0 : i32
    return %c0_i32, %c0_i32_0, %c0_i32_1 : i32, i32, i32
  }
  func.func @transform_7(%arg0: i32) -> (i32, i32, i32) {
    %c0_i32 = arith.constant 0 : i32
    %c0_i32_0 = arith.constant 0 : i32
    %c0_i32_1 = arith.constant 0 : i32
    %c0_i32_2 = arith.constant 0 : i32
    return %c0_i32, %c0_i32_0, %c0_i32_1 : i32, i32, i32
  }
  func.func @transform_8(%arg0: i32) -> (i32, i32, i32) {
    %c0_i32 = arith.constant 0 : i32
    %c0_i32_0 = arith.constant 0 : i32
    %c0_i32_1 = arith.constant 0 : i32
    %c0_i32_2 = arith.constant 0 : i32
    return %c0_i32, %c0_i32_0, %c0_i32_1 : i32, i32, i32
  }
  func.func @transform_9(%arg0: i32) -> (i32, i32, i32) {
    %c0_i32 = arith.constant 0 : i32
    %c0_i32_0 = arith.constant 0 : i32
    %c0_i32_1 = arith.constant 0 : i32
    return %arg0, %c0_i32, %c0_i32_0 : i32, i32, i32
  }
}

module attributes {stable_mosaic.version = 11 : i64} {
  func.func @_conv3_kernel(%arg0: i32, %arg1: i32, %arg2: memref<1x4x32xbf16, #tpu.memory_space<vmem>>, %arg3: memref<3x32x16xbf16, #tpu.memory_space<vmem>>, %arg4: memref<1x16xf32, #tpu.memory_space<vmem>>, %arg5: memref<1x4x16xf32, #tpu.memory_space<vmem>>, %arg6: memref<13x32xbf16, #tpu.memory_space<vmem>>) attributes {dimension_semantics = [#tpu.dimension_semantics<parallel>, #tpu.dimension_semantics<parallel>], iteration_bounds = array<i64: 2, 1>, scalar_prefetch = 0 : i64, scratch_operands = 1 : i64, tpu.core_type = #tpu.core_type<tc>, window_params = [{transform_indices = @transform_0, window_bounds = array<i64: 1, 4, 32>}, {transform_indices = @transform_1, window_bounds = array<i64: 3, 32, 16>}, {transform_indices = @transform_2, window_bounds = array<i64: 1, 16>}, {transform_indices = @transform_3, window_bounds = array<i64: 1, 4, 16>}]} {
    %cst = arith.constant 0.000000e+00 : bf16
    %0 = vector.broadcast %cst : bf16 to vector<13x32xbf16>
    %c0 = arith.constant 0 : index
    %c0_0 = arith.constant 0 : index
    %1 = vector.load %arg6[%c0, %c0_0] : memref<13x32xbf16, #tpu.memory_space<vmem>>, vector<13x32xbf16>
    tpu.vector_store %arg6[%c0, %c0_0], %0 {strides = array<i32>} : memref<13x32xbf16, #tpu.memory_space<vmem>>, vector<13x32xbf16>,
    %c0_1 = arith.constant 0 : index
    %c0_2 = arith.constant 0 : index
    %c0_3 = arith.constant 0 : index
    %2 = vector.load %arg2[%c0_1, %c0_2, %c0_3] : memref<1x4x32xbf16, #tpu.memory_space<vmem>>, vector<1x4x32xbf16>
    %3 = vector.shape_cast %2 : vector<1x4x32xbf16> to vector<4x32xbf16>
    %c8 = arith.constant 8 : index
    %c0_4 = arith.constant 0 : index
    %4 = vector.load %arg6[%c8, %c0_4] : memref<13x32xbf16, #tpu.memory_space<vmem>>, vector<4x32xbf16>
    tpu.vector_store %arg6[%c8, %c0_4], %3 {strides = array<i32>} : memref<13x32xbf16, #tpu.memory_space<vmem>>, vector<4x32xbf16>,
    %cst_5 = arith.constant 0.000000e+00 : f32
    %5 = vector.broadcast %cst_5 : f32 to vector<4x16xf32>
    %c7 = arith.constant 7 : index
    %c0_6 = arith.constant 0 : index
    %6 = vector.load %arg6[%c7, %c0_6] : memref<13x32xbf16, #tpu.memory_space<vmem>>, vector<4x32xbf16>
    %c0_7 = arith.constant 0 : index
    %c0_8 = arith.constant 0 : index
    %c0_9 = arith.constant 0 : index
    %7 = vector.load %arg3[%c0_7, %c0_8, %c0_9] : memref<3x32x16xbf16, #tpu.memory_space<vmem>>, vector<1x32x16xbf16>
    %8 = vector.shape_cast %7 : vector<1x32x16xbf16> to vector<32x16xbf16>
    %cst_10 = arith.constant dense<0.000000e+00> : vector<4x16xf32>
    %9 = tpu.matmul %6, %8, %cst_10 {dimension_numbers = #tpu.dot_dimension_numbers<[1], [0], [0], [1], [0, 0, 1, 1], [], []>} : vector<4x32xbf16>, vector<32x16xbf16>, vector<4x16xf32> -> vector<4x16xf32>
    %10 = arith.addf %5, %9 : vector<4x16xf32>
    %c8_11 = arith.constant 8 : index
    %c0_12 = arith.constant 0 : index
    %11 = vector.load %arg6[%c8_11, %c0_12] : memref<13x32xbf16, #tpu.memory_space<vmem>>, vector<4x32xbf16>
    %c1 = arith.constant 1 : index
    %c0_13 = arith.constant 0 : index
    %c0_14 = arith.constant 0 : index
    %12 = vector.load %arg3[%c1, %c0_13, %c0_14] : memref<3x32x16xbf16, #tpu.memory_space<vmem>>, vector<1x32x16xbf16>
    %13 = vector.shape_cast %12 : vector<1x32x16xbf16> to vector<32x16xbf16>
    %cst_15 = arith.constant dense<0.000000e+00> : vector<4x16xf32>
    %14 = tpu.matmul %11, %13, %cst_15 {dimension_numbers = #tpu.dot_dimension_numbers<[1], [0], [0], [1], [0, 0, 1, 1], [], []>} : vector<4x32xbf16>, vector<32x16xbf16>, vector<4x16xf32> -> vector<4x16xf32>
    %15 = arith.addf %10, %14 : vector<4x16xf32>
    %c9 = arith.constant 9 : index
    %c0_16 = arith.constant 0 : index
    %16 = vector.load %arg6[%c9, %c0_16] : memref<13x32xbf16, #tpu.memory_space<vmem>>, vector<4x32xbf16>
    %c2 = arith.constant 2 : index
    %c0_17 = arith.constant 0 : index
    %c0_18 = arith.constant 0 : index
    %17 = vector.load %arg3[%c2, %c0_17, %c0_18] : memref<3x32x16xbf16, #tpu.memory_space<vmem>>, vector<1x32x16xbf16>
    %18 = vector.shape_cast %17 : vector<1x32x16xbf16> to vector<32x16xbf16>
    %cst_19 = arith.constant dense<0.000000e+00> : vector<4x16xf32>
    %19 = tpu.matmul %16, %18, %cst_19 {dimension_numbers = #tpu.dot_dimension_numbers<[1], [0], [0], [1], [0, 0, 1, 1], [], []>} : vector<4x32xbf16>, vector<32x16xbf16>, vector<4x16xf32> -> vector<4x16xf32>
    %20 = arith.addf %15, %19 : vector<4x16xf32>
    %c0_20 = arith.constant 0 : index
    %c0_21 = arith.constant 0 : index
    %21 = vector.load %arg4[%c0_20, %c0_21] : memref<1x16xf32, #tpu.memory_space<vmem>>, vector<1x16xf32>
    %22 = vector.broadcast %21 : vector<1x16xf32> to vector<4x16xf32>
    %23 = arith.addf %20, %22 : vector<4x16xf32>
    %c0_22 = arith.constant 0 : index
    %c0_23 = arith.constant 0 : index
    %c0_24 = arith.constant 0 : index
    %24 = vector.load %arg5[%c0_22, %c0_23, %c0_24] : memref<1x4x16xf32, #tpu.memory_space<vmem>>, vector<1x4x16xf32>
    %25 = vector.shape_cast %24 : vector<1x4x16xf32> to vector<4x16xf32>
    %26 = vector.shape_cast %23 : vector<4x16xf32> to vector<1x4x16xf32>
    tpu.vector_store %arg5[%c0_22, %c0_23, %c0_24], %26 {strides = array<i32>} : memref<1x4x16xf32, #tpu.memory_space<vmem>>, vector<1x4x16xf32>,
    return
  }
  func.func @transform_0(%arg0: i32, %arg1: i32) -> (i32, i32, i32) {
    %c0_i32 = arith.constant 0 : i32
    %c0_i32_0 = arith.constant 0 : i32
    %c0_i32_1 = arith.constant 0 : i32
    return %arg0, %c0_i32, %c0_i32_0 : i32, i32, i32
  }
  func.func @transform_1(%arg0: i32, %arg1: i32) -> (i32, i32, i32) {
    %c0_i32 = arith.constant 0 : i32
    %c0_i32_0 = arith.constant 0 : i32
    %c0_i32_1 = arith.constant 0 : i32
    return %c0_i32, %c0_i32_0, %arg1 : i32, i32, i32
  }
  func.func @transform_2(%arg0: i32, %arg1: i32) -> (i32, i32) {
    %c0_i32 = arith.constant 0 : i32
    %c0_i32_0 = arith.constant 0 : i32
    return %c0_i32, %arg1 : i32, i32
  }
  func.func @transform_3(%arg0: i32, %arg1: i32) -> (i32, i32, i32) {
    %c0_i32 = arith.constant 0 : i32
    %c0_i32_0 = arith.constant 0 : i32
    return %arg0, %c0_i32, %arg1 : i32, i32, i32
  }
}

</mosaic_0001>

<llo_original>
// kernel: spatial_mlp_encoder.4
$region0: #{spatial_mlp_encoder.4}
  #allocation0 [shape = 'u32[]', space=smem, size = 0x4, offset = 0x4, fixed_abs, tag = 'smem constant byte address 0x4 - core index']
  #allocation1 [shape = 'u32[144,128]{1,0:T(1,128)}', space=vmem, size = 0x12000, scoped, tag = 'internal scratch']
  #allocation2 [shape = 'bf16[25,4]{1,0:T(8,128)(2,1)}', space=vmem, size = 0x2000, scoped, tag = 'scratch operand']
  %s0 = inlined_call_operand.vmem [shape: f32[2,16,4], index: 0, kind: input, shape index: {}]
  %s1 = inlined_call_operand.vmem [shape: bf16[3,4,32], index: 1, kind: input, shape index: {}]
  %s2 = inlined_call_operand.vmem [shape: f32[1,32], index: 2, kind: input, shape index: {}]
  %s3 = inlined_call_operand.vmem [shape: bf16[2,16,32], index: 3, kind: output, shape index: {}]
  %s4 = sld [smem:[#allocation0]]
  $region45: #{spatial_mlp_encoder.4} parent=0
    _
  %s6 = ssub.s32 1, %s4
  %s7 = scalar_select 0, %s6, %s4
  loop: start=0, step=1, limit=4
  $region2: #{spatial_mlp_encoder.4} parent=0 // loop_pre_header
    _
  $region3: #{spatial_mlp_encoder.4} parent=0 // loop_header
    %s9 = sphi 0, %s13
    %p10 = scmp.ge.s32.totalorder %s9, 4
    %s16 = sphi 0, %s28
    %s17 = sphi 0, %s24
    %s18 = sphi 0, %s16
    %s19 = sphi 0, %s17
    %s20 = sphi 0, %s18
    %s21 = sphi 0, %s19
    %s31 = sphi 0, %s33
    %s34 = sphi 0, %s31
    %s35 = sphi 0, %s34
    %s51 = sphi 0, %s35
    %s57 = sphi 0, %s59
    %s60 = sphi 0, %s57
    %s61 = sphi 0, %s60
    %s77 = sphi 0, %s61
    %s83 = sphi 0, %s85
    %s86 = sphi 0, %s83
    %s87 = sphi 0, %s86
    %s103 = sphi 0, %s87
    %s111 = sphi 0, %s113
    %s114 = sphi 0, %s111
    %s115 = sphi 0, %s114
    %s131 = sphi 0, %s115
  $region4: #{spatial_mlp_encoder.4} parent=0 // loop_header_branch
    %12 = sbr.rel (%p10) target = $region8
  $region5: #{spatial_mlp_encoder.4} parent=0 // loop_body
    %s14 = ssub.s32 %s9, 1
    %s15 = ssub.s32 %s9, 2
    %s22 = sadd.s32 1, %s17
    %p23 = scmp.ge.s32.totalorder %s22, 1
    %s24 = scalar_select %p23, 0, %s22
    %s25 = sadd.s32 1, %s16
    %s26 = scalar_select %p23, %s25, %s16
    %p27 = scmp.ge.s32.totalorder %s26, 2
    %s28 = scalar_select %p27, 0, %s26
    %s29 = ssub.s32 %s16, %s28
    %p30 = scmp.eq.s32.totalorder %s29, 0
    %s32 = sadd.s32 %s31, 1
    %s33 = scalar_select %p30, %s31, %s32
    %p36 = pneg %p30
    %p37 = scmp.eq.s32.totalorder %s9, 1
    %p38 = por %p36, %p37
    %p39 = scmp.ne.s32.totalorder %s31, %s34
    %p40 = scmp.eq.s32.totalorder %s9, 0
    %p41 = por %p39, %p40
    %p42 = scmp.ne.s32.totalorder %s31, %s34
    %p43 = scmp.eq.s32.totalorder %s14, 1
    %p44 = por %p42, %p43
    %p45 = scmp.ne.s32.totalorder %s34, %s35
    %p46 = scmp.eq.s32.totalorder %s14, 0
    %p47 = por %p45, %p46
    %p48 = scmp.ne.s32.totalorder %s34, %s35
    %p49 = scmp.eq.s32.totalorder %s15, 1
    %p50 = por %p48, %p49
    %p52 = scmp.ne.s32.totalorder %s35, %s51
    %p53 = scmp.eq.s32.totalorder %s15, 0
    %p54 = por %p52, %p53
    %s55 = ssub.s32 %s17, %s24
    %p56 = scmp.eq.s32.totalorder %s55, 0
    %s58 = sadd.s32 %s57, 1
    %s59 = scalar_select %p56, %s57, %s58
    %p62 = pneg %p56
    %p63 = scmp.eq.s32.totalorder %s9, 1
    %p64 = por %p62, %p63
    %p65 = scmp.ne.s32.totalorder %s57, %s60
    %p66 = scmp.eq.s32.totalorder %s9, 0
    %p67 = por %p65, %p66
    %p68 = scmp.ne.s32.totalorder %s57, %s60
    %p69 = scmp.eq.s32.totalorder %s14, 1
    %p70 = por %p68, %p69
    %p71 = scmp.ne.s32.totalorder %s60, %s61
    %p72 = scmp.eq.s32.totalorder %s14, 0
    %p73 = por %p71, %p72
    %p74 = scmp.ne.s32.totalorder %s60, %s61
    %p75 = scmp.eq.s32.totalorder %s15, 1
    %p76 = por %p74, %p75
    %p78 = scmp.ne.s32.totalorder %s61, %s77
    %p79 = scmp.eq.s32.totalorder %s15, 0
    %p80 = por %p78, %p79
    %s81 = ssub.s32 %s17, %s24
    %p82 = scmp.eq.s32.totalorder %s81, 0
    %s84 = sadd.s32 %s83, 1
    %s85 = scalar_select %p82, %s83, %s84
    %p88 = pneg %p82
    %p89 = scmp.eq.s32.totalorder %s9, 1
    %p90 = por %p88, %p89
    %p91 = scmp.ne.s32.totalorder %s83, %s86
    %p92 = scmp.eq.s32.totalorder %s9, 0
    %p93 = por %p91, %p92
    %p94 = scmp.ne.s32.totalorder %s83, %s86
    %p95 = scmp.eq.s32.totalorder %s14, 1
    %p96 = por %p94, %p95
    %p97 = scmp.ne.s32.totalorder %s86, %s87
    %p98 = scmp.eq.s32.totalorder %s14, 0
    %p99 = por %p97, %p98
    %p100 = scmp.ne.s32.totalorder %s86, %s87
    %p101 = scmp.eq.s32.totalorder %s15, 1
    %p102 = por %p100, %p101
    %p104 = scmp.ne.s32.totalorder %s87, %s103
    %p105 = scmp.eq.s32.totalorder %s15, 0
    %p106 = por %p104, %p105
    %s107 = ssub.s32 %s16, %s28
    %s108 = ssub.s32 %s17, %s24
    %s109 = sor.u32 %s107, %s108
    %p110 = scmp.eq.s32.totalorder %s109, 0
    %s112 = sadd.s32 %s111, 1
    %s113 = scalar_select %p110, %s111, %s112
    %p116 = pneg %p110
    %p117 = scmp.eq.s32.totalorder %s9, 1
    %p118 = por %p116, %p117
    %p119 = scmp.ne.s32.totalorder %s111, %s114
    %p120 = scmp.eq.s32.totalorder %s9, 0
    %p121 = por %p119, %p120
    %p122 = scmp.ne.s32.totalorder %s111, %s114
    %p123 = scmp.eq.s32.totalorder %s14, 1
    %p124 = por %p122, %p123
    %p125 = scmp.ne.s32.totalorder %s114, %s115
    %p126 = scmp.eq.s32.totalorder %s14, 0
    %p127 = por %p125, %p126
    %p128 = scmp.ne.s32.totalorder %s114, %s115
    %p129 = scmp.eq.s32.totalorder %s15, 1
    %p130 = por %p128, %p129
    %p132 = scmp.ne.s32.totalorder %s115, %s131
    %p133 = scmp.eq.s32.totalorder %s15, 0
    %p134 = por %p132, %p133
    %p135 = scmp.le.s32.totalorder 1, %s9
    %p136 = scmp.lt.s32.totalorder %s9, 3
    %p137 = pnand %p135, %p136
    %p138 = pneg %p137
    // Predicated region
    $region9: #{spatial_mlp_encoder.4} parent=5 // pred_check
      _
    $region10: #{spatial_mlp_encoder.4} parent=5 // pred_check_branch
      %140 = sbr.rel (%p137) target = $region12
    $region11: #{spatial_mlp_encoder.4} parent=5 // pred_region
      %s141 = ssub.s32 %s9, 1
      // Predicated region
      $region13: #{spatial_mlp_encoder.4} parent=11 // pred_check
        %p142 = pneg %p73
      $region14: #{spatial_mlp_encoder.4} parent=11 // pred_check_branch
        %144 = sbr.rel (%p142) target = $region16
      $region15: #{spatial_mlp_encoder.4} parent=11 // pred_region
        %p145 = scmp.lt.s32.totalorder %s19, 0
        %s146 = scalar_select %p145, %s19, 0
        %s147 = smul.addr %s146, 2
        %s148 = scalar_lea.vmem %s1, %s147
      $region16: #{spatial_mlp_encoder.4} parent=11 // pred_fallthru
        _
      // Predicated region
      $region17: #{spatial_mlp_encoder.4} parent=11 // pred_check
        %p149 = pneg %p99
      $region18: #{spatial_mlp_encoder.4} parent=11 // pred_check_branch
        %151 = sbr.rel (%p149) target = $region20
      $region19: #{spatial_mlp_encoder.4} parent=11 // pred_region
        %p152 = scmp.lt.s32.totalorder %s19, 0
        %s153 = scalar_select %p152, %s19, 0
        %s154 = scalar_lea.vmem %s2, %s153
      $region20: #{spatial_mlp_encoder.4} parent=11 // pred_fallthru
        _
    $region12: #{spatial_mlp_encoder.4} parent=5 // pred_fallthru
      _
    %p155 = scmp.lt.s32.totalorder %s9, 2
    // Predicated region
    $region21: #{spatial_mlp_encoder.4} parent=5 // pred_check
      %p156 = pneg %p155
    $region22: #{spatial_mlp_encoder.4} parent=5 // pred_check_branch
      %158 = sbr.rel (%p156) target = $region24
    $region23: #{spatial_mlp_encoder.4} parent=5 // pred_region
      // Predicated region
      $region25: #{spatial_mlp_encoder.4} parent=23 // pred_check
        %p159 = pneg %p41
      $region26: #{spatial_mlp_encoder.4} parent=23 // pred_check_branch
        %161 = sbr.rel (%p159) target = $region28
      $region27: #{spatial_mlp_encoder.4} parent=23 // pred_region
        %p162 = scmp.lt.s32.totalorder %s16, 1
        %s163 = scalar_select %p162, %s16, 1
        %s164 = smul.addr %s163, 2
        %s165 = smul.addr %s164, 8
        %s166 = scalar_lea.vmem %s0, %s165
      $region28: #{spatial_mlp_encoder.4} parent=23 // pred_fallthru
        _
    $region24: #{spatial_mlp_encoder.4} parent=5 // pred_fallthru
      _
    %p167 = scmp.le.s32.totalorder 1, %s9
    %p168 = scmp.lt.s32.totalorder %s9, 3
    %p169 = pnand %p167, %p168
    %p170 = pneg %p169
    // Predicated region
    $region29: #{spatial_mlp_encoder.4} parent=5 // pred_check
      _
    $region30: #{spatial_mlp_encoder.4} parent=5 // pred_check_branch
      %172 = sbr.rel (%p169) target = $region32
    $region31: #{spatial_mlp_encoder.4} parent=5 // pred_region
      %s173 = ssub.s32 %s9, 1
      %p174 = scmp.lt.s32.totalorder %s18, 1
      %s175 = scalar_select %p174, %s18, 1
      %s176 = smul.addr %s175, 2
      %s177 = smul.addr %s176, 8
      %s178 = scalar_lea.vmem %s0, %s177
      %p179 = pneg %p47
      %p180 = pneg %p44
      %p181 = scmp.lt.s32.totalorder %s19, 0
      %s182 = scalar_select %p181, %s19, 0
      %s183 = smul.addr %s182, 2
      %s184 = scalar_lea.vmem %s1, %s183
      %p185 = pneg %p73
      %p186 = pneg %p70
      %p187 = scmp.lt.s32.totalorder %s19, 0
      %s188 = scalar_select %p187, %s19, 0
      %s189 = scalar_lea.vmem %s2, %s188
      %p190 = pneg %p99
      %p191 = pneg %p96
      %p192 = pneg %p127
      %p193 = pneg %p124
      %p194 = scmp.lt.s32.totalorder %s18, 1
      %s195 = scalar_select %p194, %s18, 1
      %p196 = scmp.lt.s32.totalorder %s19, 0
      %s197 = scalar_select %p196, %s19, 0
      %s198 = smul.addr %s195, 2
      %s199 = sadd.s32 %s197, %s198
      %s200 = smul.addr %s199, 4
      %s201 = scalar_lea.vmem %s3, %s200
      %p202 = scmp.lt.s32.totalorder %s18, 1
      %s203 = scalar_select %p202, %s18, 1
      %s204 = smul.addr %s203, 2
      %s205 = smul.addr %s204, 8
      %s206 = scalar_lea.vmem %s0, %s205
      %p207 = scmp.lt.s32.totalorder %s19, 0
      %s208 = scalar_select %p207, %s19, 0
      %s209 = smul.addr %s208, 2
      %s210 = scalar_lea.vmem %s1, %s209
      %p211 = scmp.lt.s32.totalorder %s19, 0
      %s212 = scalar_select %p211, %s19, 0
      %s213 = scalar_lea.vmem %s2, %s212
      %p214 = scmp.lt.s32.totalorder %s18, 1
      %s215 = scalar_select %p214, %s18, 1
      %p216 = scmp.lt.s32.totalorder %s19, 0
      %s217 = scalar_select %p216, %s19, 0
      %s218 = smul.addr %s215, 2
      %s219 = sadd.s32 %s217, %s218
      %s220 = smul.addr %s219, 4
      %s221 = scalar_lea.vmem %s3, %s220
      %vm223 = vcmask 27648
      %224 = vst.msk [vmem:[#allocation2] sm:$0xf] %vm223, 0
      %225 = vst.msk [vmem:[#allocation2 + $0x4] sm:$0xf] %vm223, 0
      %226 = vst.msk [vmem:[#allocation2 + $0x8] sm:$0xf] %vm223, 0
      %vm227 = vcmask 24576
      %vm228 = vsmask.f32 256
      %vm229 = vmand %vm227, %vm228
      %v230 = vld [vmem:[#allocation2 + $0xc] sm:$0x1]
      %v231 = vsel %vm229, 0, %v230
      %232 = vst [vmem:[#allocation2 + $0xc] sm:$0x1] %v231
      %v233 = vld [vmem:[%s206] sm:$0xff]
      %v234 = vld [vmem:[%s206 + $0x8] sm:$0xff]
      %v235 = vpack.c.bf16 %v234, %v233
      %v237 = vunpack.c.l.b16 %v235
      %v238 = vunpack.c.h.b16 %v235
      %v239 = vpack.c.b16 %v237, %v237
      %v240 = vpack.c.b16 %v238, %v238
      %243 = vst.msk [vmem:[#allocation2 + $0x4] sm:$0xf] %vm223, %v239
      %244 = vst.msk [vmem:[#allocation2 + $0x8] sm:$0xf] %vm223, %v240
      %v245 = vld [vmem:[#allocation2] sm:$0x8]
      %v246 = vld [vmem:[#allocation2 + $0x4] sm:$0xf]
      %v247 = vld [vmem:[#allocation2 + $0x8] sm:$0xf]
      %v248 = vld [vmem:[%s210] sm:$0x3]
      %s249 = scalar_lea.vmem %s210, 2
      %v250 = vld [vmem:[%s249] sm:$0x3]
      %v253 = vunpack.c.l.b16 %v246
      %v254 = vunpack.c.l.b16 %v247
      %v255 = vpack.c.b16 %v254, %v253
      %vm256 = vcmask 31744
      %v258 = vsel %vm256, %v255, 0
      %vm260 = vcmask 1041408
      %v262 = vsel %vm260, %v250, 0
      %264 = vmatprep.subr.bf16.mxu0 0
      %265 = vmatpush1.bf16.msra.mxu0 %v262
      %266 = vmatprep.subr.bf16.mxu0 0
      %267 = vmatpush1.bf16.msra.mxu0 0
      %268 = vmatprep.subr.bf16.mxu0 0
      %269 = vmatpush1.bf16.msra.mxu0 0
      %270 = vmatprep.subr.bf16.mxu0 0
      %271 = vmatpush1.bf16.msra.mxu0 0
      %272 = vmatprep.subr.bf16.mxu0 0
      %273 = vmatpush1.bf16.msra.mxu0 0
      %274 = vmatprep.subr.bf16.mxu0 0
      %275 = vmatpush1.bf16.msra.mxu0 0
      %276 = vmatprep.subr.bf16.mxu0 0
      %277 = vmatpush1.bf16.msra.mxu0 0
      %278 = vmatprep.subr.bf16.mxu0 0
      %279 = vmatpush1.bf16.msra.mxu0 0
      %280 = vmatprep.subr.bf16.mxu0 0
      %281 = vmatpush1.bf16.msra.mxu0 0
      %282 = vmatprep.subr.bf16.mxu0 0
      %283 = vmatpush1.bf16.msra.mxu0 0
      %284 = vmatprep.subr.bf16.mxu0 0
      %285 = vmatpush1.bf16.msra.mxu0 0
      %286 = vmatprep.subr.bf16.mxu0 0
      %287 = vmatpush1.bf16.msra.mxu0 0
      %288 = vmatprep.subr.bf16.mxu0 0
      %289 = vmatpush1.bf16.msra.mxu0 0
      %290 = vmatprep.subr.bf16.mxu0 0
      %291 = vmatpush1.bf16.msra.mxu0 0
      %292 = vmatprep.subr.bf16.mxu0 0
      %293 = vmatpush1.bf16.msra.mxu0 0
      %294 = vmatprep.subr.bf16.mxu0 0
      %295 = vmatpush1.bf16.msra.mxu0 0
      %296 = vmatprep.mubr.bf16.mxu0 0
      %297 = vmatmul.mubr.bf16.gmra.mrb[0].mxu0 %v258
      %v298 = vpop.f32.mrb[0].mxu0
      %v299 = vadd.f32 0.0, %v298
      %v300 = vpop.f32.mrb[0].mxu0
      %v301 = vpop.f32.mrb[0].mxu0
      %v302 = vadd.f32 0.0, %v301
      %v303 = vpop.f32.mrb[0].mxu0
      %304 = vdwg.mxu0
      %v306 = vunpack.c.l.b16 %v245
      %v307 = vpack.c.b16 %v253, %v306
      %v308 = vpack.c.b16 %v254, %v254
      %vm309 = vsmask.f32 4352
      %v311 = vshrl.u32 %v307, 16
      %v313 = vrot.slane %v311, 3
      %v314 = vshll.u32 %v307, 16
      %v316 = vrot.slane %v314, 4
      %v317 = vor.u32 %v313, %v316
      %v319 = vshrl.u32 %v308, 16
      %v321 = vrot.slane %v319, 3
      %v322 = vshll.u32 %v308, 16
      %v324 = vrot.slane %v322, 4
      %v325 = vor.u32 %v321, %v324
      %v326 = vsel %vm309, %v317, %v325
      %v328 = vsel %vm256, %v326, 0
      %v331 = vsel %vm260, %v248, 0
      %333 = vmatprep.subr.bf16.mxu0 0
      %334 = vmatpush1.bf16.msra.mxu0 %v331
      %335 = vmatprep.subr.bf16.mxu0 0
      %336 = vmatpush1.bf16.msra.mxu0 0
      %337 = vmatprep.subr.bf16.mxu0 0
      %338 = vmatpush1.bf16.msra.mxu0 0
      %339 = vmatprep.subr.bf16.mxu0 0
      %340 = vmatpush1.bf16.msra.mxu0 0
      %341 = vmatprep.subr.bf16.mxu0 0
      %342 = vmatpush1.bf16.msra.mxu0 0
      %343 = vmatprep.subr.bf16.mxu0 0
      %344 = vmatpush1.bf16.msra.mxu0 0
      %345 = vmatprep.subr.bf16.mxu0 0
      %346 = vmatpush1.bf16.msra.mxu0 0
      %347 = vmatprep.subr.bf16.mxu0 0
      %348 = vmatpush1.bf16.msra.mxu0 0
      %349 = vmatprep.subr.bf16.mxu0 0
      %350 = vmatpush1.bf16.msra.mxu0 0
      %351 = vmatprep.subr.bf16.mxu0 0
      %352 = vmatpush1.bf16.msra.mxu0 0
      %353 = vmatprep.subr.bf16.mxu0 0
      %354 = vmatpush1.bf16.msra.mxu0 0
      %355 = vmatprep.subr.bf16.mxu0 0
      %356 = vmatpush1.bf16.msra.mxu0 0
      %357 = vmatprep.subr.bf16.mxu0 0
      %358 = vmatpush1.bf16.msra.mxu0 0
      %359 = vmatprep.subr.bf16.mxu0 0
      %360 = vmatpush1.bf16.msra.mxu0 0
      %361 = vmatprep.subr.bf16.mxu0 0
      %362 = vmatpush1.bf16.msra.mxu0 0
      %363 = vmatprep.subr.bf16.mxu0 0
      %364 = vmatpush1.bf16.msra.mxu0 0
      %365 = vmatprep.mubr.bf16.mxu0 0
      %366 = vmatmul.mubr.bf16.gmra.mrb[0].mxu0 %v328
      %v367 = vpop.f32.mrb[0].mxu0
      %v368 = vadd.f32 %v299, %v367
      %v369 = vpop.f32.mrb[0].mxu0
      %v370 = vpop.f32.mrb[0].mxu0
      %v371 = vadd.f32 %v302, %v370
      %v372 = vpop.f32.mrb[0].mxu0
      %373 = vdwg.mxu0
      %v374 = vld [vmem:[#allocation2 + $0x4] sm:$0xf]
      %v375 = vld [vmem:[#allocation2 + $0x8] sm:$0xf]
      %v376 = vld [vmem:[#allocation2 + $0xc] sm:$0x1]
      %s377 = scalar_lea.vmem %s210, 4
      %v378 = vld [vmem:[%s377] sm:$0x3]
      %v382 = vunpack.c.l.b16 %v374
      %v383 = vunpack.c.l.b16 %v375
      %v384 = vunpack.c.l.b16 %v376
      %v385 = vpack.c.b16 %v383, %v382
      %v386 = vpack.c.b16 %v384, %v384
      %vm387 = vsmask.f32 7424
      %v389 = vshrl.u32 %v385, 16
      %v391 = vshll.u32 %v385, 16
      %v393 = vrot.slane %v391, 1
      %v394 = vor.u32 %v389, %v393
      %v396 = vshll.u32 %v386, 16
      %v398 = vrot.slane %v396, 1
      %v399 = vsel %vm387, %v394, %v398
      %v401 = vsel %vm256, %v399, 0
      %v404 = vsel %vm260, %v378, 0
      %406 = vmatprep.subr.bf16.mxu0 0
      %407 = vmatpush1.bf16.msra.mxu0 %v404
      %408 = vmatprep.subr.bf16.mxu0 0
      %409 = vmatpush1.bf16.msra.mxu0 0
      %410 = vmatprep.subr.bf16.mxu0 0
      %411 = vmatpush1.bf16.msra.mxu0 0
      %412 = vmatprep.subr.bf16.mxu0 0
      %413 = vmatpush1.bf16.msra.mxu0 0
      %414 = vmatprep.subr.bf16.mxu0 0
      %415 = vmatpush1.bf16.msra.mxu0 0
      %416 = vmatprep.subr.bf16.mxu0 0
      %417 = vmatpush1.bf16.msra.mxu0 0
      %418 = vmatprep.subr.bf16.mxu0 0
      %419 = vmatpush1.bf16.msra.mxu0 0
      %420 = vmatprep.subr.bf16.mxu0 0
      %421 = vmatpush1.bf16.msra.mxu0 0
      %422 = vmatprep.subr.bf16.mxu0 0
      %423 = vmatpush1.bf16.msra.mxu0 0
      %424 = vmatprep.subr.bf16.mxu0 0
      %425 = vmatpush1.bf16.msra.mxu0 0
      %426 = vmatprep.subr.bf16.mxu0 0
      %427 = vmatpush1.bf16.msra.mxu0 0
      %428 = vmatprep.subr.bf16.mxu0 0
      %429 = vmatpush1.bf16.msra.mxu0 0
      %430 = vmatprep.subr.bf16.mxu0 0
      %431 = vmatpush1.bf16.msra.mxu0 0
      %432 = vmatprep.subr.bf16.mxu0 0
      %433 = vmatpush1.bf16.msra.mxu0 0
      %434 = vmatprep.subr.bf16.mxu0 0
      %435 = vmatpush1.bf16.msra.mxu0 0
      %436 = vmatprep.subr.bf16.mxu0 0
      %437 = vmatpush1.bf16.msra.mxu0 0
      %438 = vmatprep.mubr.bf16.mxu0 0
      %439 = vmatmul.mubr.bf16.gmra.mrb[0].mxu0 %v401
      %v440 = vpop.f32.mrb[0].mxu0
      %v441 = vadd.f32 0.0, %v440
      %v442 = vpop.f32.mrb[0].mxu0
      %v443 = vpop.f32.mrb[0].mxu0
      %v444 = vadd.f32 0.0, %v443
      %v445 = vpop.f32.mrb[0].mxu0
      %446 = vdwg.mxu0
      %v447 = vadd.f32 %v368, %v441
      %v448 = vadd.f32 %v371, %v444
      %v449 = vld [vmem:[%s213] sm:$0x1]
      %v451 = vlaneseq
      %v452 = vshrl.u32 %v451, 7
      %v453 = vsub.s32 0, %v452
      %v454 = vrot.slane %v449, %v453
      %v456 = vadd.f32 %v447, %v454
      %v457 = vadd.f32 %v448, %v454
      %v458 = vmax.f32 %v456, 0.0
      %v459 = vmax.f32 %v457, 0.0
      %v460 = vpack.c.bf16 %v459, %v458
      %v462 = vunpack.c.l.b16 %v460
      %v463 = vunpack.c.h.b16 %v460
      %v464 = vpack.c.b16 %v462, %v462
      %v465 = vpack.c.b16 %v463, %v463
      %vm468 = vcmask 257024
      %469 = vst.msk [vmem:[%s221] sm:$0xf] %vm468, %v464
      %470 = vst.msk [vmem:[%s221 + $0x4] sm:$0xf] %vm468, %v465
      %p471 = scmp.lt.s32.totalorder %s18, 1
      %s472 = scalar_select %p471, %s18, 1
      %p473 = scmp.lt.s32.totalorder %s19, 0
      %s474 = scalar_select %p473, %s19, 0
      %s475 = smul.addr %s472, 2
      %s476 = sadd.s32 %s474, %s475
      %s477 = smul.addr %s476, 4
      %s478 = scalar_lea.vmem %s3, %s477
      // Predicated region
      $region33: #{spatial_mlp_encoder.4} parent=31 // pred_check
        %p479 = pneg %p124
      $region34: #{spatial_mlp_encoder.4} parent=31 // pred_check_branch
        %481 = sbr.rel (%p479) target = $region36
      $region35: #{spatial_mlp_encoder.4} parent=31 // pred_region
        _
      $region36: #{spatial_mlp_encoder.4} parent=31 // pred_fallthru
        _
    $region32: #{spatial_mlp_encoder.4} parent=5 // pred_fallthru
      _
    %p482 = scmp.le.s32.totalorder 2, %s9
    // Predicated region
    $region37: #{spatial_mlp_encoder.4} parent=5 // pred_check
      %p483 = pneg %p482
    $region38: #{spatial_mlp_encoder.4} parent=5 // pred_check_branch
      %485 = sbr.rel (%p483) target = $region40
    $region39: #{spatial_mlp_encoder.4} parent=5 // pred_region
      %s486 = ssub.s32 %s9, 2
      // Predicated region
      $region41: #{spatial_mlp_encoder.4} parent=39 // pred_check
        %p487 = pneg %p130
      $region42: #{spatial_mlp_encoder.4} parent=39 // pred_check_branch
        %489 = sbr.rel (%p487) target = $region44
      $region43: #{spatial_mlp_encoder.4} parent=39 // pred_region
        %p490 = scmp.lt.s32.totalorder %s20, 1
        %s491 = scalar_select %p490, %s20, 1
        %p492 = scmp.lt.s32.totalorder %s21, 0
        %s493 = scalar_select %p492, %s21, 0
        %s494 = smul.addr %s491, 2
        %s495 = sadd.s32 %s493, %s494
        %s496 = smul.addr %s495, 4
        %s497 = scalar_lea.vmem %s3, %s496
      $region44: #{spatial_mlp_encoder.4} parent=39 // pred_fallthru
        _
    $region40: #{spatial_mlp_encoder.4} parent=5 // pred_fallthru
      _
  $region6: #{spatial_mlp_encoder.4} parent=0 // loop_footer
    %s13 = sadd.s32 1, %s9
  $region7: #{spatial_mlp_encoder.4} parent=0 // loop_footer_branch
    %8 = sbr.rel target = $region3
  $region8: #{spatial_mlp_encoder.4} parent=0 // loop_exit
    _

// kernel: spatial_mlp_encoder.7
$region0: #{spatial_mlp_encoder.7}
  #allocation0 [shape = 'u32[]', space=smem, size = 0x4, offset = 0x4, fixed_abs, tag = 'smem constant byte address 0x4 - core index']
  #allocation1 [shape = 'u32[144,128]{1,0:T(1,128)}', space=vmem, size = 0x12000, scoped, tag = 'internal scratch']
  #allocation2 [shape = 'bf16[13,32]{1,0:T(8,128)(2,1)}', space=vmem, size = 0x1000, scoped, tag = 'scratch operand']
  %s0 = inlined_call_operand.vmem [shape: bf16[2,4,32], index: 0, kind: input, shape index: {}]
  %s1 = inlined_call_operand.vmem [shape: bf16[3,32,16], index: 1, kind: input, shape index: {}]
  %s2 = inlined_call_operand.vmem [shape: f32[1,16], index: 2, kind: input, shape index: {}]
  %s3 = inlined_call_operand.hbm [shape: f32[2,4,16], index: 3, kind: output, shape index: {}]
  %s4 = sld [smem:[#allocation0]]
  $region45: #{spatial_mlp_encoder.7} parent=0
    _
  %s6 = ssub.s32 1, %s4
  %s7 = scalar_select 0, %s6, %s4
  $region1: #{spatial_mlp_encoder.7} parent=0
    #allocation3 [shape = 'u8[4096]{0}', space=vmem, size = 0x1000, scoped, tag = 'output window, operand 0']
    #allocation4 [shape = 's32[2]{0}', space=sflag, size = 0x8, scoped, tag = 'scoped memory for spatial_mlp_encoder.7']
    %8 = vsyncpa [#allocation4], 0
    %s9 = scalar_lea.sflag [#allocation4], 1
    %10 = vsyncpa %s9, 0
    loop: start=0, step=1, limit=4
    $region2: #{spatial_mlp_encoder.7} parent=1 // loop_pre_header
      _
    $region3: #{spatial_mlp_encoder.7} parent=1 // loop_header
      %s12 = sphi 0, %s16
      %p13 = scmp.ge.s32.totalorder %s12, 4
      %s19 = sphi 0, %s31
      %s20 = sphi 0, %s27
      %s21 = sphi 0, %s19
      %s22 = sphi 0, %s20
      %s23 = sphi 0, %s21
      %s24 = sphi 0, %s22
      %s34 = sphi 0, %s36
      %s37 = sphi 0, %s34
      %s38 = sphi 0, %s37
      %s54 = sphi 0, %s38
      %s60 = sphi 0, %s62
      %s63 = sphi 0, %s60
      %s64 = sphi 0, %s63
      %s80 = sphi 0, %s64
      %s86 = sphi 0, %s88
      %s89 = sphi 0, %s86
      %s90 = sphi 0, %s89
      %s106 = sphi 0, %s90
      %s114 = sphi 0, %s116
      %s117 = sphi 0, %s114
      %s118 = sphi 0, %s117
      %s134 = sphi 0, %s118
    $region4: #{spatial_mlp_encoder.7} parent=1 // loop_header_branch
      %15 = sbr.rel (%p13) target = $region8
    $region5: #{spatial_mlp_encoder.7} parent=1 // loop_body
      %s17 = ssub.s32 %s12, 1
      %s18 = ssub.s32 %s12, 2
      %s25 = sadd.s32 1, %s20
      %p26 = scmp.ge.s32.totalorder %s25, 1
      %s27 = scalar_select %p26, 0, %s25
      %s28 = sadd.s32 1, %s19
      %s29 = scalar_select %p26, %s28, %s19
      %p30 = scmp.ge.s32.totalorder %s29, 2
      %s31 = scalar_select %p30, 0, %s29
      %s32 = ssub.s32 %s19, %s31
      %p33 = scmp.eq.s32.totalorder %s32, 0
      %s35 = sadd.s32 %s34, 1
      %s36 = scalar_select %p33, %s34, %s35
      %p39 = pneg %p33
      %p40 = scmp.eq.s32.totalorder %s12, 1
      %p41 = por %p39, %p40
      %p42 = scmp.ne.s32.totalorder %s34, %s37
      %p43 = scmp.eq.s32.totalorder %s12, 0
      %p44 = por %p42, %p43
      %p45 = scmp.ne.s32.totalorder %s34, %s37
      %p46 = scmp.eq.s32.totalorder %s17, 1
      %p47 = por %p45, %p46
      %p48 = scmp.ne.s32.totalorder %s37, %s38
      %p49 = scmp.eq.s32.totalorder %s17, 0
      %p50 = por %p48, %p49
      %p51 = scmp.ne.s32.totalorder %s37, %s38
      %p52 = scmp.eq.s32.totalorder %s18, 1
      %p53 = por %p51, %p52
      %p55 = scmp.ne.s32.totalorder %s38, %s54
      %p56 = scmp.eq.s32.totalorder %s18, 0
      %p57 = por %p55, %p56
      %s58 = ssub.s32 %s20, %s27
      %p59 = scmp.eq.s32.totalorder %s58, 0
      %s61 = sadd.s32 %s60, 1
      %s62 = scalar_select %p59, %s60, %s61
      %p65 = pneg %p59
      %p66 = scmp.eq.s32.totalorder %s12, 1
      %p67 = por %p65, %p66
      %p68 = scmp.ne.s32.totalorder %s60, %s63
      %p69 = scmp.eq.s32.totalorder %s12, 0
      %p70 = por %p68, %p69
      %p71 = scmp.ne.s32.totalorder %s60, %s63
      %p72 = scmp.eq.s32.totalorder %s17, 1
      %p73 = por %p71, %p72
      %p74 = scmp.ne.s32.totalorder %s63, %s64
      %p75 = scmp.eq.s32.totalorder %s17, 0
      %p76 = por %p74, %p75
      %p77 = scmp.ne.s32.totalorder %s63, %s64
      %p78 = scmp.eq.s32.totalorder %s18, 1
      %p79 = por %p77, %p78
      %p81 = scmp.ne.s32.totalorder %s64, %s80
      %p82 = scmp.eq.s32.totalorder %s18, 0
      %p83 = por %p81, %p82
      %s84 = ssub.s32 %s20, %s27
      %p85 = scmp.eq.s32.totalorder %s84, 0
      %s87 = sadd.s32 %s86, 1
      %s88 = scalar_select %p85, %s86, %s87
      %p91 = pneg %p85
      %p92 = scmp.eq.s32.totalorder %s12, 1
      %p93 = por %p91, %p92
      %p94 = scmp.ne.s32.totalorder %s86, %s89
      %p95 = scmp.eq.s32.totalorder %s12, 0
      %p96 = por %p94, %p95
      %p97 = scmp.ne.s32.totalorder %s86, %s89
      %p98 = scmp.eq.s32.totalorder %s17, 1
      %p99 = por %p97, %p98
      %p100 = scmp.ne.s32.totalorder %s89, %s90
      %p101 = scmp.eq.s32.totalorder %s17, 0
      %p102 = por %p100, %p101
      %p103 = scmp.ne.s32.totalorder %s89, %s90
      %p104 = scmp.eq.s32.totalorder %s18, 1
      %p105 = por %p103, %p104
      %p107 = scmp.ne.s32.totalorder %s90, %s106
      %p108 = scmp.eq.s32.totalorder %s18, 0
      %p109 = por %p107, %p108
      %s110 = ssub.s32 %s19, %s31
      %s111 = ssub.s32 %s20, %s27
      %s112 = sor.u32 %s110, %s111
      %p113 = scmp.eq.s32.totalorder %s112, 0
      %s115 = sadd.s32 %s114, 1
      %s116 = scalar_select %p113, %s114, %s115
      %p119 = pneg %p113
      %p120 = scmp.eq.s32.totalorder %s12, 1
      %p121 = por %p119, %p120
      %p122 = scmp.ne.s32.totalorder %s114, %s117
      %p123 = scmp.eq.s32.totalorder %s12, 0
      %p124 = por %p122, %p123
      %p125 = scmp.ne.s32.totalorder %s114, %s117
      %p126 = scmp.eq.s32.totalorder %s17, 1
      %p127 = por %p125, %p126
      %p128 = scmp.ne.s32.totalorder %s117, %s118
      %p129 = scmp.eq.s32.totalorder %s17, 0
      %p130 = por %p128, %p129
      %p131 = scmp.ne.s32.totalorder %s117, %s118
      %p132 = scmp.eq.s32.totalorder %s18, 1
      %p133 = por %p131, %p132
      %p135 = scmp.ne.s32.totalorder %s118, %s134
      %p136 = scmp.eq.s32.totalorder %s18, 0
      %p137 = por %p135, %p136
      %p138 = scmp.le.s32.totalorder 1, %s12
      %p139 = scmp.lt.s32.totalorder %s12, 3
      %p140 = pnand %p138, %p139
      %p141 = pneg %p140
      // Predicated region
      $region9: #{spatial_mlp_encoder.7} parent=5 // pred_check
        _
      $region10: #{spatial_mlp_encoder.7} parent=5 // pred_check_branch
        %143 = sbr.rel (%p140) target = $region12
      $region11: #{spatial_mlp_encoder.7} parent=5 // pred_region
        %s144 = ssub.s32 %s12, 1
        // Predicated region
        $region13: #{spatial_mlp_encoder.7} parent=11 // pred_check
          %p145 = pneg %p76
        $region14: #{spatial_mlp_encoder.7} parent=11 // pred_check_branch
          %147 = sbr.rel (%p145) target = $region16
        $region15: #{spatial_mlp_encoder.7} parent=11 // pred_region
          %p148 = scmp.lt.s32.totalorder %s22, 0
          %s149 = scalar_select %p148, %s22, 0
          %s150 = smul.addr %s149, 4
          %s151 = scalar_lea.vmem %s1, %s150
        $region16: #{spatial_mlp_encoder.7} parent=11 // pred_fallthru
          _
        // Predicated region
        $region17: #{spatial_mlp_encoder.7} parent=11 // pred_check
          %p152 = pneg %p102
        $region18: #{spatial_mlp_encoder.7} parent=11 // pred_check_branch
          %154 = sbr.rel (%p152) target = $region20
        $region19: #{spatial_mlp_encoder.7} parent=11 // pred_region
          %p155 = scmp.lt.s32.totalorder %s22, 0
          %s156 = scalar_select %p155, %s22, 0
          %s157 = scalar_lea.vmem %s2, %s156
        $region20: #{spatial_mlp_encoder.7} parent=11 // pred_fallthru
          _
      $region12: #{spatial_mlp_encoder.7} parent=5 // pred_fallthru
        _
      %p158 = scmp.lt.s32.totalorder %s12, 2
      // Predicated region
      $region21: #{spatial_mlp_encoder.7} parent=5 // pred_check
        %p159 = pneg %p158
      $region22: #{spatial_mlp_encoder.7} parent=5 // pred_check_branch
        %161 = sbr.rel (%p159) target = $region24
      $region23: #{spatial_mlp_encoder.7} parent=5 // pred_region
        // Predicated region
        $region25: #{spatial_mlp_encoder.7} parent=23 // pred_check
          %p162 = pneg %p44
        $region26: #{spatial_mlp_encoder.7} parent=23 // pred_check_branch
          %164 = sbr.rel (%p162) target = $region28
        $region27: #{spatial_mlp_encoder.7} parent=23 // pred_region
          %p165 = scmp.lt.s32.totalorder %s19, 1
          %s166 = scalar_select %p165, %s19, 1
          %s167 = smul.addr %s166, 2
          %s168 = scalar_lea.vmem %s0, %s167
        $region28: #{spatial_mlp_encoder.7} parent=23 // pred_fallthru
          _
      $region24: #{spatial_mlp_encoder.7} parent=5 // pred_fallthru
        _
      %p169 = scmp.le.s32.totalorder 1, %s12
      %p170 = scmp.lt.s32.totalorder %s12, 3
      %p171 = pnand %p169, %p170
      %p172 = pneg %p171
      // Predicated region
      $region29: #{spatial_mlp_encoder.7} parent=5 // pred_check
        _
      $region30: #{spatial_mlp_encoder.7} parent=5 // pred_check_branch
        %174 = sbr.rel (%p171) target = $region32
      $region31: #{spatial_mlp_encoder.7} parent=5 // pred_region
        %s175 = ssub.s32 %s12, 1
        %p176 = scmp.lt.s32.totalorder %s21, 1
        %s177 = scalar_select %p176, %s21, 1
        %s178 = smul.addr %s177, 2
        %s179 = scalar_lea.vmem %s0, %s178
        %p180 = pneg %p50
        %p181 = pneg %p47
        %p182 = scmp.lt.s32.totalorder %s22, 0
        %s183 = scalar_select %p182, %s22, 0
        %s184 = smul.addr %s183, 4
        %s185 = scalar_lea.vmem %s1, %s184
        %p186 = pneg %p76
        %p187 = pneg %p73
        %p188 = scmp.lt.s32.totalorder %s22, 0
        %s189 = scalar_select %p188, %s22, 0
        %s190 = scalar_lea.vmem %s2, %s189
        %p191 = pneg %p102
        %p192 = pneg %p99
        %p193 = pneg %p130
        %p194 = pneg %p127
        %s195 = sand.u32 %s117, 1
        %s196 = scalar_lea.sflag [#allocation4], %s195
        %s197 = sand.u32 %s117, 1
        %s198 = smul.addr %s197, 4
        %s199 = scalar_lea.vmem [#allocation3], %s198
        %p200 = scmp.lt.s32.totalorder %s21, 1
        %s201 = scalar_select %p200, %s21, 1
        %s202 = smul.addr %s201, 2
        %s203 = scalar_lea.vmem %s0, %s202
        %p204 = scmp.lt.s32.totalorder %s22, 0
        %s205 = scalar_select %p204, %s22, 0
        %s206 = smul.addr %s205, 4
        %s207 = scalar_lea.vmem %s1, %s206
        %p208 = scmp.lt.s32.totalorder %s22, 0
        %s209 = scalar_select %p208, %s22, 0
        %s210 = scalar_lea.vmem %s2, %s209
        %vm212 = vcmask 257024
        %213 = vst.msk [vmem:[#allocation2] sm:$0xf] %vm212, 0
        %vm214 = vcmask 256000
        %vm215 = vsmask.f32 2304
        %vm216 = vmand %vm214, %vm215
        %v217 = vld [vmem:[#allocation2 + $0x4] sm:$0x7]
        %v218 = vsel %vm216, 0, %v217
        %219 = vst [vmem:[#allocation2 + $0x4] sm:$0x7] %v218
        %v220 = vld [vmem:[%s203] sm:$0x3]
        %vm221 = vcmask 254976
        %222 = vst.msk [vmem:[#allocation2 + $0x4] sm:$0x3] %vm221, %v220
        %v223 = vld [vmem:[#allocation2] sm:$0x8]
        %v224 = vld [vmem:[#allocation2 + $0x4] sm:$0x3]
        %v225 = vld [vmem:[%s207] sm:$0xf]
        %v226 = vld [vmem:[%s207 + $0x4] sm:$0xf]
        %v227 = vld [vmem:[%s207 + $0x8] sm:$0xf]
        %v228 = vld [vmem:[%s207 + $0xc] sm:$0xf]
        %s229 = scalar_lea.vmem %s207, 16
        %v230 = vld [vmem:[%s229] sm:$0xf]
        %v231 = vld [vmem:[%s229 + $0x4] sm:$0xf]
        %v232 = vld [vmem:[%s229 + $0x8] sm:$0xf]
        %v233 = vld [vmem:[%s229 + $0xc] sm:$0xf]
        %v238 = vunpack.c.l.b16 %v230
        %v239 = vunpack.c.l.b16 %v231
        %v240 = vunpack.c.l.b16 %v232
        %v241 = vunpack.c.l.b16 %v233
        %v242 = vpack.c.b16 %v239, %v238
        %v243 = vpack.c.b16 %v241, %v240
        %vm246 = vcmask 261120
        %v248 = vsel %vm246, %v224, 0
        %250 = vmatprep.subr.bf16.mxu0 0
        %251 = vmatpush1.bf16.msra.mxu0 %v242
        %252 = vmatprep.subr.bf16.mxu0 0
        %253 = vmatpush1.bf16.msra.mxu0 %v243
        %254 = vmatprep.subr.bf16.mxu0 0
        %255 = vmatpush1.bf16.msra.mxu0 0
        %256 = vmatprep.subr.bf16.mxu0 0
        %257 = vmatpush1.bf16.msra.mxu0 0
        %258 = vmatprep.subr.bf16.mxu0 0
        %259 = vmatpush1.bf16.msra.mxu0 0
        %260 = vmatprep.subr.bf16.mxu0 0
        %261 = vmatpush1.bf16.msra.mxu0 0
        %262 = vmatprep.subr.bf16.mxu0 0
        %263 = vmatpush1.bf16.msra.mxu0 0
        %264 = vmatprep.subr.bf16.mxu0 0
        %265 = vmatpush1.bf16.msra.mxu0 0
        %266 = vmatprep.subr.bf16.mxu0 0
        %267 = vmatpush1.bf16.msra.mxu0 0
        %268 = vmatprep.subr.bf16.mxu0 0
        %269 = vmatpush1.bf16.msra.mxu0 0
        %270 = vmatprep.subr.bf16.mxu0 0
        %271 = vmatpush1.bf16.msra.mxu0 0
        %272 = vmatprep.subr.bf16.mxu0 0
        %273 = vmatpush1.bf16.msra.mxu0 0
        %274 = vmatprep.subr.bf16.mxu0 0
        %275 = vmatpush1.bf16.msra.mxu0 0
        %276 = vmatprep.subr.bf16.mxu0 0
        %277 = vmatpush1.bf16.msra.mxu0 0
        %278 = vmatprep.subr.bf16.mxu0 0
        %279 = vmatpush1.bf16.msra.mxu0 0
        %280 = vmatprep.subr.bf16.mxu0 0
        %281 = vmatpush1.bf16.msra.mxu0 0
        %282 = vmatprep.mubr.bf16.mxu0 0
        %283 = vmatmul.mubr.bf16.gmra.mrb[0].mxu0 %v248
        %v284 = vpop.f32.mrb[0].mxu0
        %v285 = vadd.f32 0.0, %v284
        %v286 = vpop.f32.mrb[0].mxu0
        %v287 = vpop.f32.mrb[0].mxu0
        %v288 = vpop.f32.mrb[0].mxu0
        %289 = vdwg.mxu0
        %v292 = vunpack.c.l.b16 %v223
        %v293 = vunpack.c.l.b16 %v224
        %v294 = vpack.c.b16 %v293, %v292
        %v296 = vshrl.u32 %v294, 16
        %v298 = vrot.slane %v296, 3
        %v299 = vshll.u32 %v294, 16
        %v301 = vrot.slane %v299, 4
        %v302 = vor.u32 %v298, %v301
        %v307 = vunpack.c.l.b16 %v225
        %v308 = vunpack.c.l.b16 %v226
        %v309 = vunpack.c.l.b16 %v227
        %v310 = vunpack.c.l.b16 %v228
        %v311 = vpack.c.b16 %v308, %v307
        %v312 = vpack.c.b16 %v310, %v309
        %v316 = vsel %vm246, %v302, 0
        %318 = vmatprep.subr.bf16.mxu0 0
        %319 = vmatpush1.bf16.msra.mxu0 %v311
        %320 = vmatprep.subr.bf16.mxu0 0
        %321 = vmatpush1.bf16.msra.mxu0 %v312
        %322 = vmatprep.subr.bf16.mxu0 0
        %323 = vmatpush1.bf16.msra.mxu0 0
        %324 = vmatprep.subr.bf16.mxu0 0
        %325 = vmatpush1.bf16.msra.mxu0 0
        %326 = vmatprep.subr.bf16.mxu0 0
        %327 = vmatpush1.bf16.msra.mxu0 0
        %328 = vmatprep.subr.bf16.mxu0 0
        %329 = vmatpush1.bf16.msra.mxu0 0
        %330 = vmatprep.subr.bf16.mxu0 0
        %331 = vmatpush1.bf16.msra.mxu0 0
        %332 = vmatprep.subr.bf16.mxu0 0
        %333 = vmatpush1.bf16.msra.mxu0 0
        %334 = vmatprep.subr.bf16.mxu0 0
        %335 = vmatpush1.bf16.msra.mxu0 0
        %336 = vmatprep.subr.bf16.mxu0 0
        %337 = vmatpush1.bf16.msra.mxu0 0
        %338 = vmatprep.subr.bf16.mxu0 0
        %339 = vmatpush1.bf16.msra.mxu0 0
        %340 = vmatprep.subr.bf16.mxu0 0
        %341 = vmatpush1.bf16.msra.mxu0 0
        %342 = vmatprep.subr.bf16.mxu0 0
        %343 = vmatpush1.bf16.msra.mxu0 0
        %344 = vmatprep.subr.bf16.mxu0 0
        %345 = vmatpush1.bf16.msra.mxu0 0
        %346 = vmatprep.subr.bf16.mxu0 0
        %347 = vmatpush1.bf16.msra.mxu0 0
        %348 = vmatprep.subr.bf16.mxu0 0
        %349 = vmatpush1.bf16.msra.mxu0 0
        %350 = vmatprep.mubr.bf16.mxu0 0
        %351 = vmatmul.mubr.bf16.gmra.mrb[0].mxu0 %v316
        %v352 = vpop.f32.mrb[0].mxu0
        %v353 = vadd.f32 %v285, %v352
        %v354 = vpop.f32.mrb[0].mxu0
        %v355 = vpop.f32.mrb[0].mxu0
        %v356 = vpop.f32.mrb[0].mxu0
        %357 = vdwg.mxu0
        %v358 = vld [vmem:[#allocation2 + $0x4] sm:$0x7]
        %s359 = scalar_lea.vmem %s207, 32
        %v360 = vld [vmem:[%s359] sm:$0xf]
        %v361 = vld [vmem:[%s359 + $0x4] sm:$0xf]
        %v362 = vld [vmem:[%s359 + $0x8] sm:$0xf]
        %v363 = vld [vmem:[%s359 + $0xc] sm:$0xf]
        %v365 = vunpack.c.l.b16 %v358
        %v366 = vpack.c.b16 %v365, %v365
        %v368 = vshrl.u32 %v366, 16
        %v370 = vshll.u32 %v366, 16
        %v372 = vrot.slane %v370, 1
        %v373 = vor.u32 %v368, %v372
        %v378 = vunpack.c.l.b16 %v360
        %v379 = vunpack.c.l.b16 %v361
        %v380 = vunpack.c.l.b16 %v362
        %v381 = vunpack.c.l.b16 %v363
        %v382 = vpack.c.b16 %v379, %v378
        %v383 = vpack.c.b16 %v381, %v380
        %v387 = vsel %vm246, %v373, 0
        %389 = vmatprep.subr.bf16.mxu0 0
        %390 = vmatpush1.bf16.msra.mxu0 %v382
        %391 = vmatprep.subr.bf16.mxu0 0
        %392 = vmatpush1.bf16.msra.mxu0 %v383
        %393 = vmatprep.subr.bf16.mxu0 0
        %394 = vmatpush1.bf16.msra.mxu0 0
        %395 = vmatprep.subr.bf16.mxu0 0
        %396 = vmatpush1.bf16.msra.mxu0 0
        %397 = vmatprep.subr.bf16.mxu0 0
        %398 = vmatpush1.bf16.msra.mxu0 0
        %399 = vmatprep.subr.bf16.mxu0 0
        %400 = vmatpush1.bf16.msra.mxu0 0
        %401 = vmatprep.subr.bf16.mxu0 0
        %402 = vmatpush1.bf16.msra.mxu0 0
        %403 = vmatprep.subr.bf16.mxu0 0
        %404 = vmatpush1.bf16.msra.mxu0 0
        %405 = vmatprep.subr.bf16.mxu0 0
        %406 = vmatpush1.bf16.msra.mxu0 0
        %407 = vmatprep.subr.bf16.mxu0 0
        %408 = vmatpush1.bf16.msra.mxu0 0
        %409 = vmatprep.subr.bf16.mxu0 0
        %410 = vmatpush1.bf16.msra.mxu0 0
        %411 = vmatprep.subr.bf16.mxu0 0
        %412 = vmatpush1.bf16.msra.mxu0 0
        %413 = vmatprep.subr.bf16.mxu0 0
        %414 = vmatpush1.bf16.msra.mxu0 0
        %415 = vmatprep.subr.bf16.mxu0 0
        %416 = vmatpush1.bf16.msra.mxu0 0
        %417 = vmatprep.subr.bf16.mxu0 0
        %418 = vmatpush1.bf16.msra.mxu0 0
        %419 = vmatprep.subr.bf16.mxu0 0
        %420 = vmatpush1.bf16.msra.mxu0 0
        %421 = vmatprep.mubr.bf16.mxu0 0
        %422 = vmatmul.mubr.bf16.gmra.mrb[0].mxu0 %v387
        %v423 = vpop.f32.mrb[0].mxu0
        %v424 = vadd.f32 0.0, %v423
        %v425 = vpop.f32.mrb[0].mxu0
        %v426 = vpop.f32.mrb[0].mxu0
        %v427 = vpop.f32.mrb[0].mxu0
        %428 = vdwg.mxu0
        %v429 = vadd.f32 %v353, %v424
        %v430 = vld [vmem:[%s210] sm:$0x1]
        %v432 = vlaneseq
        %v433 = vshrl.u32 %v432, 7
        %v434 = vsub.s32 0, %v433
        %v435 = vrot.slane %v430, %v434
        %v437 = vadd.f32 %v429, %v435
        %vm438 = vcmask 125952
        %439 = vst.msk [vmem:[%s199] sm:$0xf] %vm438, %v437
        %s440 = sand.u32 %s117, 1
        %s441 = scalar_lea.sflag [#allocation4], %s440
        %s442 = sand.u32 %s117, 1
        %s443 = smul.addr %s442, 4
        %s444 = scalar_lea.vmem [#allocation3], %s443
        // Predicated region
        $region33: #{spatial_mlp_encoder.7} parent=31 // pred_check
          %p445 = pneg %p127
        $region34: #{spatial_mlp_encoder.7} parent=31 // pred_check_branch
          %447 = sbr.rel (%p445) target = $region36
        $region35: #{spatial_mlp_encoder.7} parent=31 // pred_region
          %s449 = ssub.s32 64, 64
          %450 = vsyncadd %s441, %s449
          %s451 = sadd.s32 %s22, %s21
          %s452 = smul.addr %s451, 64
          %s453 = scalar_lea.hbm %s3, %s452
          %s455 = sshll.u32 %s444, 4
          %s456 = int_to_ptr.vmem [resolvable:$true] %s455
          %458 = dma.vmem_to_hbm [thread:$0]  %s456, 64, %s453, %s441
        $region36: #{spatial_mlp_encoder.7} parent=31 // pred_fallthru
          _
      $region32: #{spatial_mlp_encoder.7} parent=5 // pred_fallthru
        _
      %p459 = scmp.le.s32.totalorder 2, %s12
      // Predicated region
      $region37: #{spatial_mlp_encoder.7} parent=5 // pred_check
        %p460 = pneg %p459
      $region38: #{spatial_mlp_encoder.7} parent=5 // pred_check_branch
        %462 = sbr.rel (%p460) target = $region40
      $region39: #{spatial_mlp_encoder.7} parent=5 // pred_region
        %s463 = ssub.s32 %s12, 2
        // Predicated region
        $region41: #{spatial_mlp_encoder.7} parent=39 // pred_check
          %p464 = pneg %p133
        $region42: #{spatial_mlp_encoder.7} parent=39 // pred_check_branch
          %466 = sbr.rel (%p464) target = $region44
        $region43: #{spatial_mlp_encoder.7} parent=39 // pred_region
          %s467 = sand.u32 %s118, 1
          %s468 = scalar_lea.sflag [#allocation4], %s467
          %s469 = sand.u32 %s118, 1
          %s470 = smul.addr %s469, 4
          %s471 = scalar_lea.vmem [#allocation3], %s470
          %472 = dma.done %s468, 64
        $region44: #{spatial_mlp_encoder.7} parent=39 // pred_fallthru
          _
      $region40: #{spatial_mlp_encoder.7} parent=5 // pred_fallthru
        _
    $region6: #{spatial_mlp_encoder.7} parent=1 // loop_footer
      %s16 = sadd.s32 1, %s12
    $region7: #{spatial_mlp_encoder.7} parent=1 // loop_footer_branch
      %11 = sbr.rel target = $region3
    $region8: #{spatial_mlp_encoder.7} parent=1 // loop_exit
      _
    %473 = vsyncpa [#allocation4], 1
    %s474 = scalar_lea.sflag [#allocation4], 1
    %475 = vsyncpa %s474, 1

// kernel: spatial_mlp_encoder.5
$region0: #{spatial_mlp_encoder.5}
  #allocation0 [shape = 'u32[]', space=smem, size = 0x4, offset = 0x4, fixed_abs, tag = 'smem constant byte address 0x4 - core index']
  #allocation1 [shape = 'u32[144,128]{1,0:T(1,128)}', space=vmem, size = 0x12000, scoped, tag = 'internal scratch']
  #allocation2 [shape = 'f32[8,32]{1,0:T(8,128)}', space=vmem, size = 0x1000, scoped, tag = 'scratch operand']
  #allocation3 [shape = 'bf16[19,32]{1,0:T(8,128)(2,1)}', space=vmem, size = 0x1800, scoped, tag = 'scratch operand']
  %s0 = inlined_call_operand.vmem [shape: bf16[2,2,9,32], index: 0, kind: input, shape index: {}]
  %s1 = inlined_call_operand.vmem [shape: bf16[4,32,32], index: 1, kind: input, shape index: {}]
  %s2 = inlined_call_operand.vmem [shape: f32[1,32], index: 2, kind: input, shape index: {}]
  %s3 = inlined_call_operand.vmem [shape: bf16[32,32], index: 3, kind: input, shape index: {}]
  %s4 = inlined_call_operand.vmem [shape: f32[1,32], index: 4, kind: input, shape index: {}]
  %s5 = inlined_call_operand.vmem [shape: bf16[2,3,32,32], index: 5, kind: input, shape index: {}]
  %s6 = inlined_call_operand.vmem [shape: f32[2,1,32], index: 6, kind: input, shape index: {}]
  %s7 = inlined_call_operand.vmem [shape: bf16[2,32,32], index: 7, kind: input, shape index: {}]
  %s8 = inlined_call_operand.vmem [shape: f32[2,1,32], index: 8, kind: input, shape index: {}]
  %s9 = inlined_call_operand.vmem [shape: bf16[2,8,32], index: 9, kind: output, shape index: {}]
  %s10 = sld [smem:[#allocation0]]
  $region110: #{spatial_mlp_encoder.5} parent=0
    _
  %s12 = ssub.s32 1, %s10
  %s13 = scalar_select 0, %s12, %s10
  $region1: #{spatial_mlp_encoder.5} parent=0
    #allocation4 [shape = 'u8[16384]{0}', space=vmem, size = 0x4000, scoped, tag = 'input window, operand 0']
    loop: start=0, step=1, limit=4
    $region2: #{spatial_mlp_encoder.5} parent=1 // loop_pre_header
      _
    $region3: #{spatial_mlp_encoder.5} parent=1 // loop_header
      %s15 = sphi 0, %s19
      %p16 = scmp.ge.s32.totalorder %s15, 4
      %s25 = sphi 0, %s27
      %s28 = sphi 0, %s25
      %s29 = sphi 0, %s28
      %s45 = sphi 0, %s29
      %s49 = sphi 0, %s49
      %s51 = sphi 0, %s49
      %s52 = sphi 0, %s51
      %s66 = sphi 0, %s52
      %s70 = sphi 0, %s70
      %s72 = sphi 0, %s70
      %s73 = sphi 0, %s72
      %s87 = sphi 0, %s73
      %s91 = sphi 0, %s91
      %s93 = sphi 0, %s91
      %s94 = sphi 0, %s93
      %s108 = sphi 0, %s94
      %s112 = sphi 0, %s112
      %s114 = sphi 0, %s112
      %s115 = sphi 0, %s114
      %s129 = sphi 0, %s115
      %s133 = sphi 0, %s133
      %s135 = sphi 0, %s133
      %s136 = sphi 0, %s135
      %s150 = sphi 0, %s136
      %s154 = sphi 0, %s154
      %s156 = sphi 0, %s154
      %s157 = sphi 0, %s156
      %s171 = sphi 0, %s157
      %s175 = sphi 0, %s175
      %s177 = sphi 0, %s175
      %s178 = sphi 0, %s177
      %s192 = sphi 0, %s178
      %s196 = sphi 0, %s196
      %s198 = sphi 0, %s196
      %s199 = sphi 0, %s198
      %s213 = sphi 0, %s199
      %s219 = sphi 0, %s221
      %s222 = sphi 0, %s219
      %s223 = sphi 0, %s222
      %s239 = sphi 0, %s223
    $region4: #{spatial_mlp_encoder.5} parent=1 // loop_header_branch
      %18 = sbr.rel (%p16) target = $region8
    $region5: #{spatial_mlp_encoder.5} parent=1 // loop_body
      %s20 = ssub.s32 %s15, 1
      %s21 = ssub.s32 %s15, 2
      %s22 = sadd.s32 %s15, 1
      %s23 = ssub.s32 %s15, %s22
      %p24 = scmp.eq.s32.totalorder %s23, 0
      %s26 = sadd.s32 %s25, 1
      %s27 = scalar_select %p24, %s25, %s26
      %p30 = pneg %p24
      %p31 = scmp.eq.s32.totalorder %s15, 1
      %p32 = por %p30, %p31
      %p33 = scmp.ne.s32.totalorder %s25, %s28
      %p34 = scmp.eq.s32.totalorder %s15, 0
      %p35 = por %p33, %p34
      %p36 = scmp.ne.s32.totalorder %s25, %s28
      %p37 = scmp.eq.s32.totalorder %s20, 1
      %p38 = por %p36, %p37
      %p39 = scmp.ne.s32.totalorder %s28, %s29
      %p40 = scmp.eq.s32.totalorder %s20, 0
      %p41 = por %p39, %p40
      %p42 = scmp.ne.s32.totalorder %s28, %s29
      %p43 = scmp.eq.s32.totalorder %s21, 1
      %p44 = por %p42, %p43
      %p46 = scmp.ne.s32.totalorder %s29, %s45
      %p47 = scmp.eq.s32.totalorder %s21, 0
      %p48 = por %p46, %p47
      %s50 = sadd.s32 %s49, 1
      %p53 = scmp.eq.s32.totalorder %s15, 1
      %p54 = scmp.ne.s32.totalorder %s49, %s51
      %p55 = scmp.eq.s32.totalorder %s15, 0
      %p56 = por %p54, %p55
      %p57 = scmp.ne.s32.totalorder %s49, %s51
      %p58 = scmp.eq.s32.totalorder %s20, 1
      %p59 = por %p57, %p58
      %p60 = scmp.ne.s32.totalorder %s51, %s52
      %p61 = scmp.eq.s32.totalorder %s20, 0
      %p62 = por %p60, %p61
      %p63 = scmp.ne.s32.totalorder %s51, %s52
      %p64 = scmp.eq.s32.totalorder %s21, 1
      %p65 = por %p63, %p64
      %p67 = scmp.ne.s32.totalorder %s52, %s66
      %p68 = scmp.eq.s32.totalorder %s21, 0
      %p69 = por %p67, %p68
      %s71 = sadd.s32 %s70, 1
      %p74 = scmp.eq.s32.totalorder %s15, 1
      %p75 = scmp.ne.s32.totalorder %s70, %s72
      %p76 = scmp.eq.s32.totalorder %s15, 0
      %p77 = por %p75, %p76
      %p78 = scmp.ne.s32.totalorder %s70, %s72
      %p79 = scmp.eq.s32.totalorder %s20, 1
      %p80 = por %p78, %p79
      %p81 = scmp.ne.s32.totalorder %s72, %s73
      %p82 = scmp.eq.s32.totalorder %s20, 0
      %p83 = por %p81, %p82
      %p84 = scmp.ne.s32.totalorder %s72, %s73
      %p85 = scmp.eq.s32.totalorder %s21, 1
      %p86 = por %p84, %p85
      %p88 = scmp.ne.s32.totalorder %s73, %s87
      %p89 = scmp.eq.s32.totalorder %s21, 0
      %p90 = por %p88, %p89
      %s92 = sadd.s32 %s91, 1
      %p95 = scmp.eq.s32.totalorder %s15, 1
      %p96 = scmp.ne.s32.totalorder %s91, %s93
      %p97 = scmp.eq.s32.totalorder %s15, 0
      %p98 = por %p96, %p97
      %p99 = scmp.ne.s32.totalorder %s91, %s93
      %p100 = scmp.eq.s32.totalorder %s20, 1
      %p101 = por %p99, %p100
      %p102 = scmp.ne.s32.totalorder %s93, %s94
      %p103 = scmp.eq.s32.totalorder %s20, 0
      %p104 = por %p102, %p103
      %p105 = scmp.ne.s32.totalorder %s93, %s94
      %p106 = scmp.eq.s32.totalorder %s21, 1
      %p107 = por %p105, %p106
      %p109 = scmp.ne.s32.totalorder %s94, %s108
      %p110 = scmp.eq.s32.totalorder %s21, 0
      %p111 = por %p109, %p110
      %s113 = sadd.s32 %s112, 1
      %p116 = scmp.eq.s32.totalorder %s15, 1
      %p117 = scmp.ne.s32.totalorder %s112, %s114
      %p118 = scmp.eq.s32.totalorder %s15, 0
      %p119 = por %p117, %p118
      %p120 = scmp.ne.s32.totalorder %s112, %s114
      %p121 = scmp.eq.s32.totalorder %s20, 1
      %p122 = por %p120, %p121
      %p123 = scmp.ne.s32.totalorder %s114, %s115
      %p124 = scmp.eq.s32.totalorder %s20, 0
      %p125 = por %p123, %p124
      %p126 = scmp.ne.s32.totalorder %s114, %s115
      %p127 = scmp.eq.s32.totalorder %s21, 1
      %p128 = por %p126, %p127
      %p130 = scmp.ne.s32.totalorder %s115, %s129
      %p131 = scmp.eq.s32.totalorder %s21, 0
      %p132 = por %p130, %p131
      %s134 = sadd.s32 %s133, 1
      %p137 = scmp.eq.s32.totalorder %s15, 1
      %p138 = scmp.ne.s32.totalorder %s133, %s135
      %p139 = scmp.eq.s32.totalorder %s15, 0
      %p140 = por %p138, %p139
      %p141 = scmp.ne.s32.totalorder %s133, %s135
      %p142 = scmp.eq.s32.totalorder %s20, 1
      %p143 = por %p141, %p142
      %p144 = scmp.ne.s32.totalorder %s135, %s136
      %p145 = scmp.eq.s32.totalorder %s20, 0
      %p146 = por %p144, %p145
      %p147 = scmp.ne.s32.totalorder %s135, %s136
      %p148 = scmp.eq.s32.totalorder %s21, 1
      %p149 = por %p147, %p148
      %p151 = scmp.ne.s32.totalorder %s136, %s150
      %p152 = scmp.eq.s32.totalorder %s21, 0
      %p153 = por %p151, %p152
      %s155 = sadd.s32 %s154, 1
      %p158 = scmp.eq.s32.totalorder %s15, 1
      %p159 = scmp.ne.s32.totalorder %s154, %s156
      %p160 = scmp.eq.s32.totalorder %s15, 0
      %p161 = por %p159, %p160
      %p162 = scmp.ne.s32.totalorder %s154, %s156
      %p163 = scmp.eq.s32.totalorder %s20, 1
      %p164 = por %p162, %p163
      %p165 = scmp.ne.s32.totalorder %s156, %s157
      %p166 = scmp.eq.s32.totalorder %s20, 0
      %p167 = por %p165, %p166
      %p168 = scmp.ne.s32.totalorder %s156, %s157
      %p169 = scmp.eq.s32.totalorder %s21, 1
      %p170 = por %p168, %p169
      %p172 = scmp.ne.s32.totalorder %s157, %s171
      %p173 = scmp.eq.s32.totalorder %s21, 0
      %p174 = por %p172, %p173
      %s176 = sadd.s32 %s175, 1
      %p179 = scmp.eq.s32.totalorder %s15, 1
      %p180 = scmp.ne.s32.totalorder %s175, %s177
      %p181 = scmp.eq.s32.totalorder %s15, 0
      %p182 = por %p180, %p181
      %p183 = scmp.ne.s32.totalorder %s175, %s177
      %p184 = scmp.eq.s32.totalorder %s20, 1
      %p185 = por %p183, %p184
      %p186 = scmp.ne.s32.totalorder %s177, %s178
      %p187 = scmp.eq.s32.totalorder %s20, 0
      %p188 = por %p186, %p187
      %p189 = scmp.ne.s32.totalorder %s177, %s178
      %p190 = scmp.eq.s32.totalorder %s21, 1
      %p191 = por %p189, %p190
      %p193 = scmp.ne.s32.totalorder %s178, %s192
      %p194 = scmp.eq.s32.totalorder %s21, 0
      %p195 = por %p193, %p194
      %s197 = sadd.s32 %s196, 1
      %p200 = scmp.eq.s32.totalorder %s15, 1
      %p201 = scmp.ne.s32.totalorder %s196, %s198
      %p202 = scmp.eq.s32.totalorder %s15, 0
      %p203 = por %p201, %p202
      %p204 = scmp.ne.s32.totalorder %s196, %s198
      %p205 = scmp.eq.s32.totalorder %s20, 1
      %p206 = por %p204, %p205
      %p207 = scmp.ne.s32.totalorder %s198, %s199
      %p208 = scmp.eq.s32.totalorder %s20, 0
      %p209 = por %p207, %p208
      %p210 = scmp.ne.s32.totalorder %s198, %s199
      %p211 = scmp.eq.s32.totalorder %s21, 1
      %p212 = por %p210, %p211
      %p214 = scmp.ne.s32.totalorder %s199, %s213
      %p215 = scmp.eq.s32.totalorder %s21, 0
      %p216 = por %p214, %p215
      %s217 = ssub.s32 %s15, %s22
      %p218 = scmp.eq.s32.totalorder %s217, 0
      %s220 = sadd.s32 %s219, 1
      %s221 = scalar_select %p218, %s219, %s220
      %p224 = pneg %p218
      %p225 = scmp.eq.s32.totalorder %s15, 1
      %p226 = por %p224, %p225
      %p227 = scmp.ne.s32.totalorder %s219, %s222
      %p228 = scmp.eq.s32.totalorder %s15, 0
      %p229 = por %p227, %p228
      %p230 = scmp.ne.s32.totalorder %s219, %s222
      %p231 = scmp.eq.s32.totalorder %s20, 1
      %p232 = por %p230, %p231
      %p233 = scmp.ne.s32.totalorder %s222, %s223
      %p234 = scmp.eq.s32.totalorder %s20, 0
      %p235 = por %p233, %p234
      %p236 = scmp.ne.s32.totalorder %s222, %s223
      %p237 = scmp.eq.s32.totalorder %s21, 1
      %p238 = por %p236, %p237
      %p240 = scmp.ne.s32.totalorder %s223, %s239
      %p241 = scmp.eq.s32.totalorder %s21, 0
      %p242 = por %p240, %p241
      %p243 = scmp.le.s32.totalorder 1, %s15
      %p244 = scmp.lt.s32.totalorder %s15, 3
      %p245 = pnand %p243, %p244
      %p246 = pneg %p245
      // Predicated region
      $region9: #{spatial_mlp_encoder.5} parent=5 // pred_check
        _
      $region10: #{spatial_mlp_encoder.5} parent=5 // pred_check_branch
        %248 = sbr.rel (%p245) target = $region12
      $region11: #{spatial_mlp_encoder.5} parent=5 // pred_region
        %s249 = ssub.s32 %s15, 1
        // Predicated region
        $region13: #{spatial_mlp_encoder.5} parent=11 // pred_check
          %p250 = pneg %p62
        $region14: #{spatial_mlp_encoder.5} parent=11 // pred_check_branch
          %252 = sbr.rel (%p250) target = $region16
        $region15: #{spatial_mlp_encoder.5} parent=11 // pred_region
          _
        $region16: #{spatial_mlp_encoder.5} parent=11 // pred_fallthru
          _
        // Predicated region
        $region17: #{spatial_mlp_encoder.5} parent=11 // pred_check
          %p253 = pneg %p83
        $region18: #{spatial_mlp_encoder.5} parent=11 // pred_check_branch
          %255 = sbr.rel (%p253) target = $region20
        $region19: #{spatial_mlp_encoder.5} parent=11 // pred_region
          _
        $region20: #{spatial_mlp_encoder.5} parent=11 // pred_fallthru
          _
        // Predicated region
        $region21: #{spatial_mlp_encoder.5} parent=11 // pred_check
          %p256 = pneg %p104
        $region22: #{spatial_mlp_encoder.5} parent=11 // pred_check_branch
          %258 = sbr.rel (%p256) target = $region24
        $region23: #{spatial_mlp_encoder.5} parent=11 // pred_region
          _
        $region24: #{spatial_mlp_encoder.5} parent=11 // pred_fallthru
          _
        // Predicated region
        $region25: #{spatial_mlp_encoder.5} parent=11 // pred_check
          %p259 = pneg %p125
        $region26: #{spatial_mlp_encoder.5} parent=11 // pred_check_branch
          %261 = sbr.rel (%p259) target = $region28
        $region27: #{spatial_mlp_encoder.5} parent=11 // pred_region
          _
        $region28: #{spatial_mlp_encoder.5} parent=11 // pred_fallthru
          _
        // Predicated region
        $region29: #{spatial_mlp_encoder.5} parent=11 // pred_check
          %p262 = pneg %p146
        $region30: #{spatial_mlp_encoder.5} parent=11 // pred_check_branch
          %264 = sbr.rel (%p262) target = $region32
        $region31: #{spatial_mlp_encoder.5} parent=11 // pred_region
          _
        $region32: #{spatial_mlp_encoder.5} parent=11 // pred_fallthru
          _
        // Predicated region
        $region33: #{spatial_mlp_encoder.5} parent=11 // pred_check
          %p265 = pneg %p167
        $region34: #{spatial_mlp_encoder.5} parent=11 // pred_check_branch
          %267 = sbr.rel (%p265) target = $region36
        $region35: #{spatial_mlp_encoder.5} parent=11 // pred_region
          _
        $region36: #{spatial_mlp_encoder.5} parent=11 // pred_fallthru
          _
        // Predicated region
        $region37: #{spatial_mlp_encoder.5} parent=11 // pred_check
          %p268 = pneg %p188
        $region38: #{spatial_mlp_encoder.5} parent=11 // pred_check_branch
          %270 = sbr.rel (%p268) target = $region40
        $region39: #{spatial_mlp_encoder.5} parent=11 // pred_region
          _
        $region40: #{spatial_mlp_encoder.5} parent=11 // pred_fallthru
          _
        // Predicated region
        $region41: #{spatial_mlp_encoder.5} parent=11 // pred_check
          %p271 = pneg %p209
        $region42: #{spatial_mlp_encoder.5} parent=11 // pred_check_branch
          %273 = sbr.rel (%p271) target = $region44
        $region43: #{spatial_mlp_encoder.5} parent=11 // pred_region
          _
        $region44: #{spatial_mlp_encoder.5} parent=11 // pred_fallthru
          _
      $region12: #{spatial_mlp_encoder.5} parent=5 // pred_fallthru
        _
      %p274 = scmp.lt.s32.totalorder %s15, 2
      // Predicated region
      $region45: #{spatial_mlp_encoder.5} parent=5 // pred_check
        %p275 = pneg %p274
      $region46: #{spatial_mlp_encoder.5} parent=5 // pred_check_branch
        %277 = sbr.rel (%p275) target = $region48
      $region47: #{spatial_mlp_encoder.5} parent=5 // pred_region
        // Predicated region
        $region49: #{spatial_mlp_encoder.5} parent=47 // pred_check
          %p278 = pneg %p35
        $region50: #{spatial_mlp_encoder.5} parent=47 // pred_check_branch
          %280 = sbr.rel (%p278) target = $region52
        $region51: #{spatial_mlp_encoder.5} parent=47 // pred_region
          %s281 = sand.u32 %s25, 1
          %s282 = sand.u32 %s25, 1
          %s283 = smul.addr %s282, 16
          %s284 = scalar_lea.vmem [#allocation4], %s283
          %s285 = smul.addr %s15, 2
          %s286 = smul.addr %s285, 4
          %s287 = scalar_lea.vmem %s0, %s286
          // Predicated region
          $region53: #{spatial_mlp_encoder.5} parent=51 // pred_check
            _
          $region54: #{spatial_mlp_encoder.5} parent=51 // pred_check_branch
            %289 = sbr.rel (0) target = $region56
          $region55: #{spatial_mlp_encoder.5} parent=51 // pred_region
            // Predicated region
            $region57: #{spatial_mlp_encoder.5} parent=55 // pred_check
              _
            $region58: #{spatial_mlp_encoder.5} parent=55 // pred_check_branch
              %291 = sbr.rel target = $region60
            $region59: #{spatial_mlp_encoder.5} parent=55 // pred_region
              // Predicated region
              $region72: #{spatial_mlp_encoder.5} parent=59 // pred_check
                _
              $region73: #{spatial_mlp_encoder.5} parent=59 // pred_check_branch
                %312 = sbr.rel (0) target = $region75
              $region74: #{spatial_mlp_encoder.5} parent=59 // pred_region
                loop: start=0, step=1, limit=1
                $region76: #{spatial_mlp_encoder.5} parent=74 // loop_pre_header
                  _
                $region77: #{spatial_mlp_encoder.5} parent=74 // loop_header
                  %s314 = sphi 0, %s318
                  %p315 = scmp.ge.s32.totalorder %s314, 1
                  %s319 = sphi %s287, %s287
                  %s320 = sphi %s284, %s284
                $region78: #{spatial_mlp_encoder.5} parent=74 // loop_header_branch
                  %317 = sbr.rel (%p315) target = $region82
                $region79: #{spatial_mlp_encoder.5} parent=74 // loop_body
                  _
                $region80: #{spatial_mlp_encoder.5} parent=74 // loop_footer
                  %s318 = sadd.s32 1, %s314
                $region81: #{spatial_mlp_encoder.5} parent=74 // loop_footer_branch
                  %313 = sbr.rel target = $region77
                $region82: #{spatial_mlp_encoder.5} parent=74 // loop_exit
                  _
                loop: start=0, step=1, limit=1
                $region83: #{spatial_mlp_encoder.5} parent=74 // loop_pre_header
                  _
                $region84: #{spatial_mlp_encoder.5} parent=74 // loop_header
                  %s323 = sphi 0, %s327
                  %p324 = scmp.ge.s32.totalorder %s323, 1
                  %s328 = sphi %s287, %s287
                  %s329 = sphi %s284, %s284
                $region85: #{spatial_mlp_encoder.5} parent=74 // loop_header_branch
                  %326 = sbr.rel (%p324) target = $region89
                $region86: #{spatial_mlp_encoder.5} parent=74 // loop_body
                  %v330 = vld [vmem:[%s328] sm:$0xf]
                  %331 = vst [vmem:[%s329] sm:$0xf] %v330
                  %v332 = vld [vmem:[%s328 + $0x4] sm:$0xf]
                  %333 = vst [vmem:[%s329 + $0x4] sm:$0xf] %v332
                  %v334 = vld [vmem:[%s328 + $0x10] sm:$0xf]
                  %335 = vst [vmem:[%s329 + $0x8] sm:$0xf] %v334
                  %v336 = vld [vmem:[%s328 + $0x14] sm:$0xf]
                  %337 = vst [vmem:[%s329 + $0xc] sm:$0xf] %v336
                $region87: #{spatial_mlp_encoder.5} parent=74 // loop_footer
                  %s327 = sadd.s32 1, %s323
                $region88: #{spatial_mlp_encoder.5} parent=74 // loop_footer_branch
                  %322 = sbr.rel target = $region84
                $region89: #{spatial_mlp_encoder.5} parent=74 // loop_exit
                  _
              $region75: #{spatial_mlp_encoder.5} parent=59 // pred_fallthru
                _
            $region60: #{spatial_mlp_encoder.5} parent=55 // pred_fallthru
              _
            // Predicated region
            $region61: #{spatial_mlp_encoder.5} parent=55 // pred_check
              _
            $region62: #{spatial_mlp_encoder.5} parent=55 // pred_check_branch
              %293 = sbr.rel (0) target = $region64
            $region63: #{spatial_mlp_encoder.5} parent=55 // pred_region
              loop: start=0, step=1, limit=1
              $region65: #{spatial_mlp_encoder.5} parent=63 // loop_pre_header
                _
              $region66: #{spatial_mlp_encoder.5} parent=63 // loop_header
                %s296 = sphi 0, %s300
                %p297 = scmp.ge.s32.totalorder %s296, 1
                %s301 = sphi %s287, %s287
                %s302 = sphi %s284, %s284
              $region67: #{spatial_mlp_encoder.5} parent=63 // loop_header_branch
                %299 = sbr.rel (%p297) target = $region71
              $region68: #{spatial_mlp_encoder.5} parent=63 // loop_body
                %v303 = vld [vmem:[%s301] sm:$0xf]
                %304 = vst [vmem:[%s302] sm:$0xf] %v303
                %v305 = vld [vmem:[%s301 + $0x4] sm:$0xf]
                %306 = vst [vmem:[%s302 + $0x4] sm:$0xf] %v305
                %v307 = vld [vmem:[%s301 + $0x10] sm:$0xf]
                %308 = vst [vmem:[%s302 + $0x8] sm:$0xf] %v307
                %v309 = vld [vmem:[%s301 + $0x14] sm:$0xf]
                %310 = vst [vmem:[%s302 + $0xc] sm:$0xf] %v309
              $region69: #{spatial_mlp_encoder.5} parent=63 // loop_footer
                %s300 = sadd.s32 1, %s296
              $region70: #{spatial_mlp_encoder.5} parent=63 // loop_footer_branch
                %295 = sbr.rel target = $region66
              $region71: #{spatial_mlp_encoder.5} parent=63 // loop_exit
                _
            $region64: #{spatial_mlp_encoder.5} parent=55 // pred_fallthru
              _
          $region56: #{spatial_mlp_encoder.5} parent=51 // pred_fallthru
            _
          %338 = vnop
        $region52: #{spatial_mlp_encoder.5} parent=47 // pred_fallthru
          _
      $region48: #{spatial_mlp_encoder.5} parent=5 // pred_fallthru
        _
      %p339 = scmp.le.s32.totalorder 1, %s15
      %p340 = scmp.lt.s32.totalorder %s15, 3
      %p341 = pnand %p339, %p340
      %p342 = pneg %p341
      // Predicated region
      $region90: #{spatial_mlp_encoder.5} parent=5 // pred_check
        _
      $region91: #{spatial_mlp_encoder.5} parent=5 // pred_check_branch
        %344 = sbr.rel (%p341) target = $region93
      $region92: #{spatial_mlp_encoder.5} parent=5 // pred_region
        %s345 = ssub.s32 %s15, 1
        %s346 = sand.u32 %s28, 1
        %s347 = sand.u32 %s28, 1
        %s348 = smul.addr %s347, 16
        %s349 = scalar_lea.vmem [#allocation4], %s348
        // Predicated region
        $region94: #{spatial_mlp_encoder.5} parent=92 // pred_check
          %p350 = pneg %p41
        $region95: #{spatial_mlp_encoder.5} parent=92 // pred_check_branch
          %352 = sbr.rel (%p350) target = $region97
        $region96: #{spatial_mlp_encoder.5} parent=92 // pred_region
          _
        $region97: #{spatial_mlp_encoder.5} parent=92 // pred_fallthru
          _
        %s353 = sand.u32 %s28, 1
        %s354 = sand.u32 %s28, 1
        %s355 = smul.addr %s354, 16
        %s356 = scalar_lea.vmem [#allocation4], %s355
        %p357 = pneg %p41
        %p358 = pneg %p38
        %p359 = pneg %p62
        %p360 = pneg %p59
        %p361 = pneg %p83
        %p362 = pneg %p80
        %p363 = pneg %p104
        %p364 = pneg %p101
        %p365 = pneg %p125
        %p366 = pneg %p122
        %p367 = pneg %p146
        %p368 = pneg %p143
        %p369 = pneg %p167
        %p370 = pneg %p164
        %p371 = pneg %p188
        %p372 = pneg %p185
        %p373 = pneg %p209
        %p374 = pneg %p206
        %p375 = pneg %p235
        %p376 = pneg %p232
        %p377 = scmp.lt.s32.totalorder %s20, 1
        %s378 = scalar_select %p377, %s20, 1
        %s379 = smul.addr %s378, 4
        %s380 = scalar_lea.vmem %s9, %s379
        %p381 = scmp.lt.s32.totalorder %s20, 1
        %s382 = scalar_select %p381, %s20, 1
        %s383 = smul.addr %s382, 4
        %s384 = scalar_lea.vmem %s9, %s383
        %v386 = vld [vmem:[%s349] sm:$0xf]
        %v387 = vld [vmem:[%s1] sm:$0xf]
        %v388 = vld [vmem:[%s1 + $0x4] sm:$0xf]
        %v389 = vld [vmem:[%s1 + $0x8] sm:$0xf]
        %v390 = vld [vmem:[%s1 + $0xc] sm:$0xf]
        %s391 = scalar_lea.vmem %s349, 8 [#allocation4]
        %v392 = vld [vmem:[%s391] sm:$0xf]
        %s393 = scalar_lea.vmem %s1, 16
        %v394 = vld [vmem:[%s393] sm:$0xf]
        %v395 = vld [vmem:[%s393 + $0x4] sm:$0xf]
        %v396 = vld [vmem:[%s393 + $0x8] sm:$0xf]
        %v397 = vld [vmem:[%s393 + $0xc] sm:$0xf]
        %v402 = vunpack.c.l.b16 %v394
        %v403 = vunpack.c.l.b16 %v395
        %v404 = vunpack.c.l.b16 %v396
        %v405 = vunpack.c.l.b16 %v397
        %v406 = vpack.c.b16 %v403, %v402
        %v407 = vpack.c.b16 %v405, %v404
        %vm410 = vcmask 261120
        %v412 = vsel %vm410, %v392, 0
        %414 = vmatprep.subr.bf16.mxu0 0
        %415 = vmatpush1.bf16.msra.mxu0 %v406
        %416 = vmatprep.subr.bf16.mxu0 0
        %417 = vmatpush1.bf16.msra.mxu0 %v407
        %418 = vmatprep.subr.bf16.mxu0 0
        %419 = vmatpush1.bf16.msra.mxu0 0
        %420 = vmatprep.subr.bf16.mxu0 0
        %421 = vmatpush1.bf16.msra.mxu0 0
        %422 = vmatprep.subr.bf16.mxu0 0
        %423 = vmatpush1.bf16.msra.mxu0 0
        %424 = vmatprep.subr.bf16.mxu0 0
        %425 = vmatpush1.bf16.msra.mxu0 0
        %426 = vmatprep.subr.bf16.mxu0 0
        %427 = vmatpush1.bf16.msra.mxu0 0
        %428 = vmatprep.subr.bf16.mxu0 0
        %429 = vmatpush1.bf16.msra.mxu0 0
        %430 = vmatprep.subr.bf16.mxu0 0
        %431 = vmatpush1.bf16.msra.mxu0 0
        %432 = vmatprep.subr.bf16.mxu0 0
        %433 = vmatpush1.bf16.msra.mxu0 0
        %434 = vmatprep.subr.bf16.mxu0 0
        %435 = vmatpush1.bf16.msra.mxu0 0
        %436 = vmatprep.subr.bf16.mxu0 0
        %437 = vmatpush1.bf16.msra.mxu0 0
        %438 = vmatprep.subr.bf16.mxu0 0
        %439 = vmatpush1.bf16.msra.mxu0 0
        %440 = vmatprep.subr.bf16.mxu0 0
        %441 = vmatpush1.bf16.msra.mxu0 0
        %442 = vmatprep.subr.bf16.mxu0 0
        %443 = vmatpush1.bf16.msra.mxu0 0
        %444 = vmatprep.subr.bf16.mxu0 0
        %445 = vmatpush1.bf16.msra.mxu0 0
        %446 = vmatprep.mubr.bf16.mxu0 0
        %447 = vmatmul.mubr.bf16.gmra.mrb[0].mxu0 %v412
        %v448 = vpop.f32.mrb[0].mxu0
        %v449 = vadd.f32 0.0, %v448
        %v450 = vpop.f32.mrb[0].mxu0
        %v451 = vpop.f32.mrb[0].mxu0
        %v452 = vpop.f32.mrb[0].mxu0
        %453 = vdwg.mxu0
        %v458 = vunpack.c.l.b16 %v387
        %v459 = vunpack.c.l.b16 %v388
        %v460 = vunpack.c.l.b16 %v389
        %v461 = vunpack.c.l.b16 %v390
        %v462 = vpack.c.b16 %v459, %v458
        %v463 = vpack.c.b16 %v461, %v460
        %v467 = vsel %vm410, %v386, 0
        %469 = vmatprep.subr.bf16.mxu0 0
        %470 = vmatpush1.bf16.msra.mxu0 %v462
        %471 = vmatprep.subr.bf16.mxu0 0
        %472 = vmatpush1.bf16.msra.mxu0 %v463
        %473 = vmatprep.subr.bf16.mxu0 0
        %474 = vmatpush1.bf16.msra.mxu0 0
        %475 = vmatprep.subr.bf16.mxu0 0
        %476 = vmatpush1.bf16.msra.mxu0 0
        %477 = vmatprep.subr.bf16.mxu0 0
        %478 = vmatpush1.bf16.msra.mxu0 0
        %479 = vmatprep.subr.bf16.mxu0 0
        %480 = vmatpush1.bf16.msra.mxu0 0
        %481 = vmatprep.subr.bf16.mxu0 0
        %482 = vmatpush1.bf16.msra.mxu0 0
        %483 = vmatprep.subr.bf16.mxu0 0
        %484 = vmatpush1.bf16.msra.mxu0 0
        %485 = vmatprep.subr.bf16.mxu0 0
        %486 = vmatpush1.bf16.msra.mxu0 0
        %487 = vmatprep.subr.bf16.mxu0 0
        %488 = vmatpush1.bf16.msra.mxu0 0
        %489 = vmatprep.subr.bf16.mxu0 0
        %490 = vmatpush1.bf16.msra.mxu0 0
        %491 = vmatprep.subr.bf16.mxu0 0
        %492 = vmatpush1.bf16.msra.mxu0 0
        %493 = vmatprep.subr.bf16.mxu0 0
        %494 = vmatpush1.bf16.msra.mxu0 0
        %495 = vmatprep.subr.bf16.mxu0 0
        %496 = vmatpush1.bf16.msra.mxu0 0
        %497 = vmatprep.subr.bf16.mxu0 0
        %498 = vmatpush1.bf16.msra.mxu0 0
        %499 = vmatprep.subr.bf16.mxu0 0
        %500 = vmatpush1.bf16.msra.mxu0 0
        %501 = vmatprep.mubr.bf16.mxu0 0
        %502 = vmatmul.mubr.bf16.gmra.mrb[0].mxu0 %v467
        %v503 = vpop.f32.mrb[0].mxu0
        %v504 = vadd.f32 %v449, %v503
        %v505 = vpop.f32.mrb[0].mxu0
        %v506 = vpop.f32.mrb[0].mxu0
        %v507 = vpop.f32.mrb[0].mxu0
        %508 = vdwg.mxu0
        %v509 = vld [vmem:[%s349] sm:$0xf]
        %v510 = vld [vmem:[%s349 + $0x4] sm:$0x1]
        %s511 = scalar_lea.vmem %s1, 32
        %v512 = vld [vmem:[%s511] sm:$0xf]
        %v513 = vld [vmem:[%s511 + $0x4] sm:$0xf]
        %v514 = vld [vmem:[%s511 + $0x8] sm:$0xf]
        %v515 = vld [vmem:[%s511 + $0xc] sm:$0xf]
        %v518 = vunpack.c.l.b16 %v509
        %v519 = vunpack.c.l.b16 %v510
        %v520 = vpack.c.b16 %v519, %v518
        %v522 = vshrl.u32 %v520, 16
        %v524 = vshll.u32 %v520, 16
        %v526 = vrot.slane %v524, 1
        %v527 = vor.u32 %v522, %v526
        %v532 = vunpack.c.l.b16 %v512
        %v533 = vunpack.c.l.b16 %v513
        %v534 = vunpack.c.l.b16 %v514
        %v535 = vunpack.c.l.b16 %v515
        %v536 = vpack.c.b16 %v533, %v532
        %v537 = vpack.c.b16 %v535, %v534
        %v541 = vsel %vm410, %v527, 0
        %543 = vmatprep.subr.bf16.mxu0 0
        %544 = vmatpush1.bf16.msra.mxu0 %v536
        %545 = vmatprep.subr.bf16.mxu0 0
        %546 = vmatpush1.bf16.msra.mxu0 %v537
        %547 = vmatprep.subr.bf16.mxu0 0
        %548 = vmatpush1.bf16.msra.mxu0 0
        %549 = vmatprep.subr.bf16.mxu0 0
        %550 = vmatpush1.bf16.msra.mxu0 0
        %551 = vmatprep.subr.bf16.mxu0 0
        %552 = vmatpush1.bf16.msra.mxu0 0
        %553 = vmatprep.subr.bf16.mxu0 0
        %554 = vmatpush1.bf16.msra.mxu0 0
        %555 = vmatprep.subr.bf16.mxu0 0
        %556 = vmatpush1.bf16.msra.mxu0 0
        %557 = vmatprep.subr.bf16.mxu0 0
        %558 = vmatpush1.bf16.msra.mxu0 0
        %559 = vmatprep.subr.bf16.mxu0 0
        %560 = vmatpush1.bf16.msra.mxu0 0
        %561 = vmatprep.subr.bf16.mxu0 0
        %562 = vmatpush1.bf16.msra.mxu0 0
        %563 = vmatprep.subr.bf16.mxu0 0
        %564 = vmatpush1.bf16.msra.mxu0 0
        %565 = vmatprep.subr.bf16.mxu0 0
        %566 = vmatpush1.bf16.msra.mxu0 0
        %567 = vmatprep.subr.bf16.mxu0 0
        %568 = vmatpush1.bf16.msra.mxu0 0
        %569 = vmatprep.subr.bf16.mxu0 0
        %570 = vmatpush1.bf16.msra.mxu0 0
        %571 = vmatprep.subr.bf16.mxu0 0
        %572 = vmatpush1.bf16.msra.mxu0 0
        %573 = vmatprep.subr.bf16.mxu0 0
        %574 = vmatpush1.bf16.msra.mxu0 0
        %575 = vmatprep.mubr.bf16.mxu0 0
        %576 = vmatmul.mubr.bf16.gmra.mrb[0].mxu0 %v541
        %v577 = vpop.f32.mrb[0].mxu0
        %v578 = vadd.f32 0.0, %v577
        %v579 = vpop.f32.mrb[0].mxu0
        %v580 = vpop.f32.mrb[0].mxu0
        %v581 = vpop.f32.mrb[0].mxu0
        %582 = vdwg.mxu0
        %v583 = vadd.f32 %v504, %v578
        %v584 = vld [vmem:[%s391] sm:$0xf]
        %v585 = vld [vmem:[%s391 + $0x4] sm:$0x1]
        %s586 = scalar_lea.vmem %s1, 48
        %v587 = vld [vmem:[%s586] sm:$0xf]
        %v588 = vld [vmem:[%s586 + $0x4] sm:$0xf]
        %v589 = vld [vmem:[%s586 + $0x8] sm:$0xf]
        %v590 = vld [vmem:[%s586 + $0xc] sm:$0xf]
        %v593 = vunpack.c.l.b16 %v584
        %v594 = vunpack.c.l.b16 %v585
        %v595 = vpack.c.b16 %v594, %v593
        %v597 = vshrl.u32 %v595, 16
        %v599 = vshll.u32 %v595, 16
        %v601 = vrot.slane %v599, 1
        %v602 = vor.u32 %v597, %v601
        %v607 = vunpack.c.l.b16 %v587
        %v608 = vunpack.c.l.b16 %v588
        %v609 = vunpack.c.l.b16 %v589
        %v610 = vunpack.c.l.b16 %v590
        %v611 = vpack.c.b16 %v608, %v607
        %v612 = vpack.c.b16 %v610, %v609
        %v616 = vsel %vm410, %v602, 0
        %618 = vmatprep.subr.bf16.mxu0 0
        %619 = vmatpush1.bf16.msra.mxu0 %v611
        %620 = vmatprep.subr.bf16.mxu0 0
        %621 = vmatpush1.bf16.msra.mxu0 %v612
        %622 = vmatprep.subr.bf16.mxu0 0
        %623 = vmatpush1.bf16.msra.mxu0 0
        %624 = vmatprep.subr.bf16.mxu0 0
        %625 = vmatpush1.bf16.msra.mxu0 0
        %626 = vmatprep.subr.bf16.mxu0 0
        %627 = vmatpush1.bf16.msra.mxu0 0
        %628 = vmatprep.subr.bf16.mxu0 0
        %629 = vmatpush1.bf16.msra.mxu0 0
        %630 = vmatprep.subr.bf16.mxu0 0
        %631 = vmatpush1.bf16.msra.mxu0 0
        %632 = vmatprep.subr.bf16.mxu0 0
        %633 = vmatpush1.bf16.msra.mxu0 0
        %634 = vmatprep.subr.bf16.mxu0 0
        %635 = vmatpush1.bf16.msra.mxu0 0
        %636 = vmatprep.subr.bf16.mxu0 0
        %637 = vmatpush1.bf16.msra.mxu0 0
        %638 = vmatprep.subr.bf16.mxu0 0
        %639 = vmatpush1.bf16.msra.mxu0 0
        %640 = vmatprep.subr.bf16.mxu0 0
        %641 = vmatpush1.bf16.msra.mxu0 0
        %642 = vmatprep.subr.bf16.mxu0 0
        %643 = vmatpush1.bf16.msra.mxu0 0
        %644 = vmatprep.subr.bf16.mxu0 0
        %645 = vmatpush1.bf16.msra.mxu0 0
        %646 = vmatprep.subr.bf16.mxu0 0
        %647 = vmatpush1.bf16.msra.mxu0 0
        %648 = vmatprep.subr.bf16.mxu0 0
        %649 = vmatpush1.bf16.msra.mxu0 0
        %650 = vmatprep.mubr.bf16.mxu0 0
        %651 = vmatmul.mubr.bf16.gmra.mrb[0].mxu0 %v616
        %v652 = vpop.f32.mrb[0].mxu0
        %v653 = vadd.f32 0.0, %v652
        %v654 = vpop.f32.mrb[0].mxu0
        %v655 = vpop.f32.mrb[0].mxu0
        %v656 = vpop.f32.mrb[0].mxu0
        %657 = vdwg.mxu0
        %v658 = vadd.f32 %v583, %v653
        %v659 = vld [vmem:[%s2] sm:$0x1]
        %v661 = vlaneseq
        %v662 = vshrl.u32 %v661, 7
        %v663 = vsub.s32 0, %v662
        %v664 = vrot.slane %v659, %v663
        %v666 = vadd.f32 %v658, %v664
        %v667 = vpack.c.bf16 %v666, %v666
        %v668 = vld [vmem:[%s3] sm:$0xf]
        %v669 = vld [vmem:[%s3 + $0x4] sm:$0xf]
        %v670 = vld [vmem:[%s3 + $0x8] sm:$0xf]
        %v671 = vld [vmem:[%s3 + $0xc] sm:$0xf]
        %v672 = vld [vmem:[%s4] sm:$0x1]
        %v674 = vlaneseq
        %v675 = vshrl.u32 %v674, 7
        %v676 = vsub.s32 0, %v675
        %v677 = vrot.slane %v672, %v676
        %v683 = vunpack.c.l.b16 %v668
        %v684 = vunpack.c.l.b16 %v669
        %v685 = vunpack.c.l.b16 %v670
        %v686 = vunpack.c.l.b16 %v671
        %v687 = vpack.c.b16 %v684, %v683
        %v688 = vpack.c.b16 %v686, %v685
        %v692 = vsel %vm410, %v667, 0
        %694 = vmatprep.subr.bf16.mxu0 0
        %695 = vmatpush1.bf16.msra.mxu0 %v687
        %696 = vmatprep.subr.bf16.mxu0 0
        %697 = vmatpush1.bf16.msra.mxu0 %v688
        %698 = vmatprep.subr.bf16.mxu0 0
        %699 = vmatpush1.bf16.msra.mxu0 0
        %700 = vmatprep.subr.bf16.mxu0 0
        %701 = vmatpush1.bf16.msra.mxu0 0
        %702 = vmatprep.subr.bf16.mxu0 0
        %703 = vmatpush1.bf16.msra.mxu0 0
        %704 = vmatprep.subr.bf16.mxu0 0
        %705 = vmatpush1.bf16.msra.mxu0 0
        %706 = vmatprep.subr.bf16.mxu0 0
        %707 = vmatpush1.bf16.msra.mxu0 0
        %708 = vmatprep.subr.bf16.mxu0 0
        %709 = vmatpush1.bf16.msra.mxu0 0
        %710 = vmatprep.subr.bf16.mxu0 0
        %711 = vmatpush1.bf16.msra.mxu0 0
        %712 = vmatprep.subr.bf16.mxu0 0
        %713 = vmatpush1.bf16.msra.mxu0 0
        %714 = vmatprep.subr.bf16.mxu0 0
        %715 = vmatpush1.bf16.msra.mxu0 0
        %716 = vmatprep.subr.bf16.mxu0 0
        %717 = vmatpush1.bf16.msra.mxu0 0
        %718 = vmatprep.subr.bf16.mxu0 0
        %719 = vmatpush1.bf16.msra.mxu0 0
        %720 = vmatprep.subr.bf16.mxu0 0
        %721 = vmatpush1.bf16.msra.mxu0 0
        %722 = vmatprep.subr.bf16.mxu0 0
        %723 = vmatpush1.bf16.msra.mxu0 0
        %724 = vmatprep.subr.bf16.mxu0 0
        %725 = vmatpush1.bf16.msra.mxu0 0
        %726 = vmatprep.mubr.bf16.mxu0 0
        %727 = vmatmul.mubr.bf16.gmra.mrb[0].mxu0 %v692
        %v728 = vpop.f32.mrb[0].mxu0
        %v729 = vadd.f32 %v677, %v728
        %v730 = vpop.f32.mrb[0].mxu0
        %v731 = vpop.f32.mrb[0].mxu0
        %v732 = vpop.f32.mrb[0].mxu0
        %733 = vdwg.mxu0
        %v734 = vmax.f32 %v729, 0.0
        %735 = vst.msk [vmem:[#allocation2] sm:$0xff] %vm410, %v734
        %vm736 = vcmask 257024
        %737 = vst.msk [vmem:[#allocation3] sm:$0xf] %vm736, 0
        %738 = vst.msk [vmem:[#allocation3 + $0x4] sm:$0xf] %vm736, 0
        %vm739 = vcmask 254976
        %vm740 = vsmask.f32 1280
        %vm741 = vmand %vm739, %vm740
        %v742 = vld [vmem:[#allocation3 + $0x8] sm:$0x3]
        %v743 = vsel %vm741, 0, %v742
        %744 = vst [vmem:[#allocation3 + $0x8] sm:$0x3] %v743
        %v745 = vld [vmem:[#allocation2] sm:$0xff]
        %v746 = vmax.f32 %v745, 0.0
        %v747 = vpack.c.bf16 %v746, %v746
        %748 = vst.msk [vmem:[#allocation3 + $0x4] sm:$0xf] %vm736, %v747
        %v749 = vld [vmem:[#allocation3] sm:$0xc]
        %v750 = vld [vmem:[#allocation3 + $0x4] sm:$0x7]
        %v751 = vld [vmem:[%s5] sm:$0xf]
        %v752 = vld [vmem:[%s5 + $0x4] sm:$0xf]
        %v753 = vld [vmem:[%s5 + $0x8] sm:$0xf]
        %v754 = vld [vmem:[%s5 + $0xc] sm:$0xf]
        %v755 = vld [vmem:[#allocation3 + $0x4] sm:$0xf]
        %s756 = scalar_lea.vmem %s5, 16
        %v757 = vld [vmem:[%s756] sm:$0xf]
        %v758 = vld [vmem:[%s756 + $0x4] sm:$0xf]
        %v759 = vld [vmem:[%s756 + $0x8] sm:$0xf]
        %v760 = vld [vmem:[%s756 + $0xc] sm:$0xf]
        %v765 = vunpack.c.l.b16 %v757
        %v766 = vunpack.c.l.b16 %v758
        %v767 = vunpack.c.l.b16 %v759
        %v768 = vunpack.c.l.b16 %v760
        %v769 = vpack.c.b16 %v766, %v765
        %v770 = vpack.c.b16 %v768, %v767
        %v774 = vsel %vm410, %v755, 0
        %776 = vmatprep.subr.bf16.mxu0 0
        %777 = vmatpush1.bf16.msra.mxu0 %v769
        %778 = vmatprep.subr.bf16.mxu0 0
        %779 = vmatpush1.bf16.msra.mxu0 %v770
        %780 = vmatprep.subr.bf16.mxu0 0
        %781 = vmatpush1.bf16.msra.mxu0 0
        %782 = vmatprep.subr.bf16.mxu0 0
        %783 = vmatpush1.bf16.msra.mxu0 0
        %784 = vmatprep.subr.bf16.mxu0 0
        %785 = vmatpush1.bf16.msra.mxu0 0
        %786 = vmatprep.subr.bf16.mxu0 0
        %787 = vmatpush1.bf16.msra.mxu0 0
        %788 = vmatprep.subr.bf16.mxu0 0
        %789 = vmatpush1.bf16.msra.mxu0 0
        %790 = vmatprep.subr.bf16.mxu0 0
        %791 = vmatpush1.bf16.msra.mxu0 0
        %792 = vmatprep.subr.bf16.mxu0 0
        %793 = vmatpush1.bf16.msra.mxu0 0
        %794 = vmatprep.subr.bf16.mxu0 0
        %795 = vmatpush1.bf16.msra.mxu0 0
        %796 = vmatprep.subr.bf16.mxu0 0
        %797 = vmatpush1.bf16.msra.mxu0 0
        %798 = vmatprep.subr.bf16.mxu0 0
        %799 = vmatpush1.bf16.msra.mxu0 0
        %800 = vmatprep.subr.bf16.mxu0 0
        %801 = vmatpush1.bf16.msra.mxu0 0
        %802 = vmatprep.subr.bf16.mxu0 0
        %803 = vmatpush1.bf16.msra.mxu0 0
        %804 = vmatprep.subr.bf16.mxu0 0
        %805 = vmatpush1.bf16.msra.mxu0 0
        %806 = vmatprep.subr.bf16.mxu0 0
        %807 = vmatpush1.bf16.msra.mxu0 0
        %808 = vmatprep.mubr.bf16.mxu0 0
        %809 = vmatmul.mubr.bf16.gmra.mrb[0].mxu0 %v774
        %v810 = vpop.f32.mrb[0].mxu0
        %v811 = vadd.f32 0.0, %v810
        %v812 = vpop.f32.mrb[0].mxu0
        %v813 = vpop.f32.mrb[0].mxu0
        %v814 = vpop.f32.mrb[0].mxu0
        %815 = vdwg.mxu0
        %v818 = vunpack.c.l.b16 %v749
        %v819 = vunpack.c.l.b16 %v750
        %v820 = vpack.c.b16 %v819, %v818
        %v822 = vshrl.u32 %v820, 16
        %v824 = vrot.slane %v822, 2
        %v825 = vshll.u32 %v820, 16
        %v827 = vrot.slane %v825, 3
        %v828 = vor.u32 %v824, %v827
        %v833 = vunpack.c.l.b16 %v751
        %v834 = vunpack.c.l.b16 %v752
        %v835 = vunpack.c.l.b16 %v753
        %v836 = vunpack.c.l.b16 %v754
        %v837 = vpack.c.b16 %v834, %v833
        %v838 = vpack.c.b16 %v836, %v835
        %v842 = vsel %vm410, %v828, 0
        %844 = vmatprep.subr.bf16.mxu0 0
        %845 = vmatpush1.bf16.msra.mxu0 %v837
        %846 = vmatprep.subr.bf16.mxu0 0
        %847 = vmatpush1.bf16.msra.mxu0 %v838
        %848 = vmatprep.subr.bf16.mxu0 0
        %849 = vmatpush1.bf16.msra.mxu0 0
        %850 = vmatprep.subr.bf16.mxu0 0
        %851 = vmatpush1.bf16.msra.mxu0 0
        %852 = vmatprep.subr.bf16.mxu0 0
        %853 = vmatpush1.bf16.msra.mxu0 0
        %854 = vmatprep.subr.bf16.mxu0 0
        %855 = vmatpush1.bf16.msra.mxu0 0
        %856 = vmatprep.subr.bf16.mxu0 0
        %857 = vmatpush1.bf16.msra.mxu0 0
        %858 = vmatprep.subr.bf16.mxu0 0
        %859 = vmatpush1.bf16.msra.mxu0 0
        %860 = vmatprep.subr.bf16.mxu0 0
        %861 = vmatpush1.bf16.msra.mxu0 0
        %862 = vmatprep.subr.bf16.mxu0 0
        %863 = vmatpush1.bf16.msra.mxu0 0
        %864 = vmatprep.subr.bf16.mxu0 0
        %865 = vmatpush1.bf16.msra.mxu0 0
        %866 = vmatprep.subr.bf16.mxu0 0
        %867 = vmatpush1.bf16.msra.mxu0 0
        %868 = vmatprep.subr.bf16.mxu0 0
        %869 = vmatpush1.bf16.msra.mxu0 0
        %870 = vmatprep.subr.bf16.mxu0 0
        %871 = vmatpush1.bf16.msra.mxu0 0
        %872 = vmatprep.subr.bf16.mxu0 0
        %873 = vmatpush1.bf16.msra.mxu0 0
        %874 = vmatprep.subr.bf16.mxu0 0
        %875 = vmatpush1.bf16.msra.mxu0 0
        %876 = vmatprep.mubr.bf16.mxu0 0
        %877 = vmatmul.mubr.bf16.gmra.mrb[0].mxu0 %v842
        %v878 = vpop.f32.mrb[0].mxu0
        %v879 = vadd.f32 %v811, %v878
        %v880 = vpop.f32.mrb[0].mxu0
        %v881 = vpop.f32.mrb[0].mxu0
        %v882 = vpop.f32.mrb[0].mxu0
        %883 = vdwg.mxu0
        %v884 = vld [vmem:[#allocation3 + $0x4] sm:$0xe]
        %v885 = vld [vmem:[#allocation3 + $0x8] sm:$0x3]
        %s886 = scalar_lea.vmem %s5, 32
        %v887 = vld [vmem:[%s886] sm:$0xf]
        %v888 = vld [vmem:[%s886 + $0x4] sm:$0xf]
        %v889 = vld [vmem:[%s886 + $0x8] sm:$0xf]
        %v890 = vld [vmem:[%s886 + $0xc] sm:$0xf]
        %v893 = vunpack.c.l.b16 %v884
        %v894 = vunpack.c.l.b16 %v885
        %v895 = vpack.c.b16 %v894, %v893
        %v897 = vshrl.u32 %v895, 16
        %v899 = vrot.slane %v897, 1
        %v900 = vshll.u32 %v895, 16
        %v902 = vrot.slane %v900, 2
        %v903 = vor.u32 %v899, %v902
        %v908 = vunpack.c.l.b16 %v887
        %v909 = vunpack.c.l.b16 %v888
        %v910 = vunpack.c.l.b16 %v889
        %v911 = vunpack.c.l.b16 %v890
        %v912 = vpack.c.b16 %v909, %v908
        %v913 = vpack.c.b16 %v911, %v910
        %v917 = vsel %vm410, %v903, 0
        %919 = vmatprep.subr.bf16.mxu0 0
        %920 = vmatpush1.bf16.msra.mxu0 %v912
        %921 = vmatprep.subr.bf16.mxu0 0
        %922 = vmatpush1.bf16.msra.mxu0 %v913
        %923 = vmatprep.subr.bf16.mxu0 0
        %924 = vmatpush1.bf16.msra.mxu0 0
        %925 = vmatprep.subr.bf16.mxu0 0
        %926 = vmatpush1.bf16.msra.mxu0 0
        %927 = vmatprep.subr.bf16.mxu0 0
        %928 = vmatpush1.bf16.msra.mxu0 0
        %929 = vmatprep.subr.bf16.mxu0 0
        %930 = vmatpush1.bf16.msra.mxu0 0
        %931 = vmatprep.subr.bf16.mxu0 0
        %932 = vmatpush1.bf16.msra.mxu0 0
        %933 = vmatprep.subr.bf16.mxu0 0
        %934 = vmatpush1.bf16.msra.mxu0 0
        %935 = vmatprep.subr.bf16.mxu0 0
        %936 = vmatpush1.bf16.msra.mxu0 0
        %937 = vmatprep.subr.bf16.mxu0 0
        %938 = vmatpush1.bf16.msra.mxu0 0
        %939 = vmatprep.subr.bf16.mxu0 0
        %940 = vmatpush1.bf16.msra.mxu0 0
        %941 = vmatprep.subr.bf16.mxu0 0
        %942 = vmatpush1.bf16.msra.mxu0 0
        %943 = vmatprep.subr.bf16.mxu0 0
        %944 = vmatpush1.bf16.msra.mxu0 0
        %945 = vmatprep.subr.bf16.mxu0 0
        %946 = vmatpush1.bf16.msra.mxu0 0
        %947 = vmatprep.subr.bf16.mxu0 0
        %948 = vmatpush1.bf16.msra.mxu0 0
        %949 = vmatprep.subr.bf16.mxu0 0
        %950 = vmatpush1.bf16.msra.mxu0 0
        %951 = vmatprep.mubr.bf16.mxu0 0
        %952 = vmatmul.mubr.bf16.gmra.mrb[0].mxu0 %v917
        %v953 = vpop.f32.mrb[0].mxu0
        %v954 = vadd.f32 0.0, %v953
        %v955 = vpop.f32.mrb[0].mxu0
        %v956 = vpop.f32.mrb[0].mxu0
        %v957 = vpop.f32.mrb[0].mxu0
        %958 = vdwg.mxu0
        %v959 = vadd.f32 %v879, %v954
        %v960 = vld [vmem:[%s6] sm:$0x1]
        %v962 = vlaneseq
        %v963 = vshrl.u32 %v962, 7
        %v964 = vsub.s32 0, %v963
        %v965 = vrot.slane %v960, %v964
        %v967 = vadd.f32 %v959, %v965
        %v968 = vmax.f32 %v967, 0.0
        %v969 = vpack.c.bf16 %v968, %v968
        %v970 = vld [vmem:[%s7] sm:$0xf]
        %v971 = vld [vmem:[%s7 + $0x4] sm:$0xf]
        %v972 = vld [vmem:[%s7 + $0x8] sm:$0xf]
        %v973 = vld [vmem:[%s7 + $0xc] sm:$0xf]
        %v974 = vld [vmem:[%s8] sm:$0x1]
        %v976 = vlaneseq
        %v977 = vshrl.u32 %v976, 7
        %v978 = vsub.s32 0, %v977
        %v979 = vrot.slane %v974, %v978
        %v985 = vunpack.c.l.b16 %v970
        %v986 = vunpack.c.l.b16 %v971
        %v987 = vunpack.c.l.b16 %v972
        %v988 = vunpack.c.l.b16 %v973
        %v989 = vpack.c.b16 %v986, %v985
        %v990 = vpack.c.b16 %v988, %v987
        %v994 = vsel %vm410, %v969, 0
        %996 = vmatprep.subr.bf16.mxu0 0
        %997 = vmatpush1.bf16.msra.mxu0 %v989
        %998 = vmatprep.subr.bf16.mxu0 0
        %999 = vmatpush1.bf16.msra.mxu0 %v990
        %1000 = vmatprep.subr.bf16.mxu0 0
        %1001 = vmatpush1.bf16.msra.mxu0 0
        %1002 = vmatprep.subr.bf16.mxu0 0
        %1003 = vmatpush1.bf16.msra.mxu0 0
        %1004 = vmatprep.subr.bf16.mxu0 0
        %1005 = vmatpush1.bf16.msra.mxu0 0
        %1006 = vmatprep.subr.bf16.mxu0 0
        %1007 = vmatpush1.bf16.msra.mxu0 0
        %1008 = vmatprep.subr.bf16.mxu0 0
        %1009 = vmatpush1.bf16.msra.mxu0 0
        %1010 = vmatprep.subr.bf16.mxu0 0
        %1011 = vmatpush1.bf16.msra.mxu0 0
        %1012 = vmatprep.subr.bf16.mxu0 0
        %1013 = vmatpush1.bf16.msra.mxu0 0
        %1014 = vmatprep.subr.bf16.mxu0 0
        %1015 = vmatpush1.bf16.msra.mxu0 0
        %1016 = vmatprep.subr.bf16.mxu0 0
        %1017 = vmatpush1.bf16.msra.mxu0 0
        %1018 = vmatprep.subr.bf16.mxu0 0
        %1019 = vmatpush1.bf16.msra.mxu0 0
        %1020 = vmatprep.subr.bf16.mxu0 0
        %1021 = vmatpush1.bf16.msra.mxu0 0
        %1022 = vmatprep.subr.bf16.mxu0 0
        %1023 = vmatpush1.bf16.msra.mxu0 0
        %1024 = vmatprep.subr.bf16.mxu0 0
        %1025 = vmatpush1.bf16.msra.mxu0 0
        %1026 = vmatprep.subr.bf16.mxu0 0
        %1027 = vmatpush1.bf16.msra.mxu0 0
        %1028 = vmatprep.mubr.bf16.mxu0 0
        %1029 = vmatmul.mubr.bf16.gmra.mrb[0].mxu0 %v994
        %v1030 = vpop.f32.mrb[0].mxu0
        %v1031 = vadd.f32 %v979, %v1030
        %v1032 = vpop.f32.mrb[0].mxu0
        %v1033 = vpop.f32.mrb[0].mxu0
        %v1034 = vpop.f32.mrb[0].mxu0
        %1035 = vdwg.mxu0
        %v1036 = vld [vmem:[#allocation2] sm:$0xff]
        %v1037 = vadd.f32 %v1036, %v1031
        %1038 = vst.msk [vmem:[#allocation2] sm:$0xff] %vm410, %v1037
        %1039 = vst.msk [vmem:[#allocation3] sm:$0xf] %vm736, 0
        %1040 = vst.msk [vmem:[#allocation3 + $0x4] sm:$0xf] %vm736, 0
        %v1041 = vld [vmem:[#allocation3 + $0x8] sm:$0x3]
        %v1042 = vsel %vm741, 0, %v1041
        %1043 = vst [vmem:[#allocation3 + $0x8] sm:$0x3] %v1042
        %v1044 = vld [vmem:[#allocation2] sm:$0xff]
        %v1045 = vmax.f32 %v1044, 0.0
        %v1046 = vpack.c.bf16 %v1045, %v1045
        %1047 = vst.msk [vmem:[#allocation3 + $0x4] sm:$0xf] %vm736, %v1046
        %v1048 = vld [vmem:[#allocation3] sm:$0x8]
        %v1049 = vld [vmem:[#allocation3 + $0x4] sm:$0xf]
        %s1050 = scalar_lea.vmem %s5, 48
        %v1051 = vld [vmem:[%s1050] sm:$0xf]
        %v1052 = vld [vmem:[%s1050 + $0x4] sm:$0xf]
        %v1053 = vld [vmem:[%s1050 + $0x8] sm:$0xf]
        %v1054 = vld [vmem:[%s1050 + $0xc] sm:$0xf]
        %s1055 = scalar_lea.vmem %s5, 64
        %v1056 = vld [vmem:[%s1055] sm:$0xf]
        %v1057 = vld [vmem:[%s1055 + $0x4] sm:$0xf]
        %v1058 = vld [vmem:[%s1055 + $0x8] sm:$0xf]
        %v1059 = vld [vmem:[%s1055 + $0xc] sm:$0xf]
        %v1064 = vunpack.c.l.b16 %v1056
        %v1065 = vunpack.c.l.b16 %v1057
        %v1066 = vunpack.c.l.b16 %v1058
        %v1067 = vunpack.c.l.b16 %v1059
        %v1068 = vpack.c.b16 %v1065, %v1064
        %v1069 = vpack.c.b16 %v1067, %v1066
        %v1073 = vsel %vm410, %v1049, 0
        %1075 = vmatprep.subr.bf16.mxu0 0
        %1076 = vmatpush1.bf16.msra.mxu0 %v1068
        %1077 = vmatprep.subr.bf16.mxu0 0
        %1078 = vmatpush1.bf16.msra.mxu0 %v1069
        %1079 = vmatprep.subr.bf16.mxu0 0
        %1080 = vmatpush1.bf16.msra.mxu0 0
        %1081 = vmatprep.subr.bf16.mxu0 0
        %1082 = vmatpush1.bf16.msra.mxu0 0
        %1083 = vmatprep.subr.bf16.mxu0 0
        %1084 = vmatpush1.bf16.msra.mxu0 0
        %1085 = vmatprep.subr.bf16.mxu0 0
        %1086 = vmatpush1.bf16.msra.mxu0 0
        %1087 = vmatprep.subr.bf16.mxu0 0
        %1088 = vmatpush1.bf16.msra.mxu0 0
        %1089 = vmatprep.subr.bf16.mxu0 0
        %1090 = vmatpush1.bf16.msra.mxu0 0
        %1091 = vmatprep.subr.bf16.mxu0 0
        %1092 = vmatpush1.bf16.msra.mxu0 0
        %1093 = vmatprep.subr.bf16.mxu0 0
        %1094 = vmatpush1.bf16.msra.mxu0 0
        %1095 = vmatprep.subr.bf16.mxu0 0
        %1096 = vmatpush1.bf16.msra.mxu0 0
        %1097 = vmatprep.subr.bf16.mxu0 0
        %1098 = vmatpush1.bf16.msra.mxu0 0
        %1099 = vmatprep.subr.bf16.mxu0 0
        %1100 = vmatpush1.bf16.msra.mxu0 0
        %1101 = vmatprep.subr.bf16.mxu0 0
        %1102 = vmatpush1.bf16.msra.mxu0 0
        %1103 = vmatprep.subr.bf16.mxu0 0
        %1104 = vmatpush1.bf16.msra.mxu0 0
        %1105 = vmatprep.subr.bf16.mxu0 0
        %1106 = vmatpush1.bf16.msra.mxu0 0
        %1107 = vmatprep.mubr.bf16.mxu0 0
        %1108 = vmatmul.mubr.bf16.gmra.mrb[0].mxu0 %v1073
        %v1109 = vpop.f32.mrb[0].mxu0
        %v1110 = vadd.f32 0.0, %v1109
        %v1111 = vpop.f32.mrb[0].mxu0
        %v1112 = vpop.f32.mrb[0].mxu0
        %v1113 = vpop.f32.mrb[0].mxu0
        %1114 = vdwg.mxu0
        %v1117 = vunpack.c.l.b16 %v1048
        %v1118 = vunpack.c.l.b16 %v1049
        %v1119 = vpack.c.b16 %v1118, %v1117
        %v1121 = vshrl.u32 %v1119, 16
        %v1123 = vrot.slane %v1121, 3
        %v1124 = vshll.u32 %v1119, 16
        %v1126 = vrot.slane %v1124, 4
        %v1127 = vor.u32 %v1123, %v1126
        %v1132 = vunpack.c.l.b16 %v1051
        %v1133 = vunpack.c.l.b16 %v1052
        %v1134 = vunpack.c.l.b16 %v1053
        %v1135 = vunpack.c.l.b16 %v1054
        %v1136 = vpack.c.b16 %v1133, %v1132
        %v1137 = vpack.c.b16 %v1135, %v1134
        %v1141 = vsel %vm410, %v1127, 0
        %1143 = vmatprep.subr.bf16.mxu0 0
        %1144 = vmatpush1.bf16.msra.mxu0 %v1136
        %1145 = vmatprep.subr.bf16.mxu0 0
        %1146 = vmatpush1.bf16.msra.mxu0 %v1137
        %1147 = vmatprep.subr.bf16.mxu0 0
        %1148 = vmatpush1.bf16.msra.mxu0 0
        %1149 = vmatprep.subr.bf16.mxu0 0
        %1150 = vmatpush1.bf16.msra.mxu0 0
        %1151 = vmatprep.subr.bf16.mxu0 0
        %1152 = vmatpush1.bf16.msra.mxu0 0
        %1153 = vmatprep.subr.bf16.mxu0 0
        %1154 = vmatpush1.bf16.msra.mxu0 0
        %1155 = vmatprep.subr.bf16.mxu0 0
        %1156 = vmatpush1.bf16.msra.mxu0 0
        %1157 = vmatprep.subr.bf16.mxu0 0
        %1158 = vmatpush1.bf16.msra.mxu0 0
        %1159 = vmatprep.subr.bf16.mxu0 0
        %1160 = vmatpush1.bf16.msra.mxu0 0
        %1161 = vmatprep.subr.bf16.mxu0 0
        %1162 = vmatpush1.bf16.msra.mxu0 0
        %1163 = vmatprep.subr.bf16.mxu0 0
        %1164 = vmatpush1.bf16.msra.mxu0 0
        %1165 = vmatprep.subr.bf16.mxu0 0
        %1166 = vmatpush1.bf16.msra.mxu0 0
        %1167 = vmatprep.subr.bf16.mxu0 0
        %1168 = vmatpush1.bf16.msra.mxu0 0
        %1169 = vmatprep.subr.bf16.mxu0 0
        %1170 = vmatpush1.bf16.msra.mxu0 0
        %1171 = vmatprep.subr.bf16.mxu0 0
        %1172 = vmatpush1.bf16.msra.mxu0 0
        %1173 = vmatprep.subr.bf16.mxu0 0
        %1174 = vmatpush1.bf16.msra.mxu0 0
        %1175 = vmatprep.mubr.bf16.mxu0 0
        %1176 = vmatmul.mubr.bf16.gmra.mrb[0].mxu0 %v1141
        %v1177 = vpop.f32.mrb[0].mxu0
        %v1178 = vadd.f32 %v1110, %v1177
        %v1179 = vpop.f32.mrb[0].mxu0
        %v1180 = vpop.f32.mrb[0].mxu0
        %v1181 = vpop.f32.mrb[0].mxu0
        %1182 = vdwg.mxu0
        %v1183 = vld [vmem:[#allocation3 + $0x4] sm:$0xf]
        %v1184 = vld [vmem:[#allocation3 + $0x8] sm:$0x1]
        %s1185 = scalar_lea.vmem %s5, 80
        %v1186 = vld [vmem:[%s1185] sm:$0xf]
        %v1187 = vld [vmem:[%s1185 + $0x4] sm:$0xf]
        %v1188 = vld [vmem:[%s1185 + $0x8] sm:$0xf]
        %v1189 = vld [vmem:[%s1185 + $0xc] sm:$0xf]
        %v1192 = vunpack.c.l.b16 %v1183
        %v1193 = vunpack.c.l.b16 %v1184
        %v1194 = vpack.c.b16 %v1193, %v1192
        %v1196 = vshrl.u32 %v1194, 16
        %v1198 = vshll.u32 %v1194, 16
        %v1200 = vrot.slane %v1198, 1
        %v1201 = vor.u32 %v1196, %v1200
        %v1206 = vunpack.c.l.b16 %v1186
        %v1207 = vunpack.c.l.b16 %v1187
        %v1208 = vunpack.c.l.b16 %v1188
        %v1209 = vunpack.c.l.b16 %v1189
        %v1210 = vpack.c.b16 %v1207, %v1206
        %v1211 = vpack.c.b16 %v1209, %v1208
        %v1215 = vsel %vm410, %v1201, 0
        %1217 = vmatprep.subr.bf16.mxu0 0
        %1218 = vmatpush1.bf16.msra.mxu0 %v1210
        %1219 = vmatprep.subr.bf16.mxu0 0
        %1220 = vmatpush1.bf16.msra.mxu0 %v1211
        %1221 = vmatprep.subr.bf16.mxu0 0
        %1222 = vmatpush1.bf16.msra.mxu0 0
        %1223 = vmatprep.subr.bf16.mxu0 0
        %1224 = vmatpush1.bf16.msra.mxu0 0
        %1225 = vmatprep.subr.bf16.mxu0 0
        %1226 = vmatpush1.bf16.msra.mxu0 0
        %1227 = vmatprep.subr.bf16.mxu0 0
        %1228 = vmatpush1.bf16.msra.mxu0 0
        %1229 = vmatprep.subr.bf16.mxu0 0
        %1230 = vmatpush1.bf16.msra.mxu0 0
        %1231 = vmatprep.subr.bf16.mxu0 0
        %1232 = vmatpush1.bf16.msra.mxu0 0
        %1233 = vmatprep.subr.bf16.mxu0 0
        %1234 = vmatpush1.bf16.msra.mxu0 0
        %1235 = vmatprep.subr.bf16.mxu0 0
        %1236 = vmatpush1.bf16.msra.mxu0 0
        %1237 = vmatprep.subr.bf16.mxu0 0
        %1238 = vmatpush1.bf16.msra.mxu0 0
        %1239 = vmatprep.subr.bf16.mxu0 0
        %1240 = vmatpush1.bf16.msra.mxu0 0
        %1241 = vmatprep.subr.bf16.mxu0 0
        %1242 = vmatpush1.bf16.msra.mxu0 0
        %1243 = vmatprep.subr.bf16.mxu0 0
        %1244 = vmatpush1.bf16.msra.mxu0 0
        %1245 = vmatprep.subr.bf16.mxu0 0
        %1246 = vmatpush1.bf16.msra.mxu0 0
        %1247 = vmatprep.subr.bf16.mxu0 0
        %1248 = vmatpush1.bf16.msra.mxu0 0
        %1249 = vmatprep.mubr.bf16.mxu0 0
        %1250 = vmatmul.mubr.bf16.gmra.mrb[0].mxu0 %v1215
        %v1251 = vpop.f32.mrb[0].mxu0
        %v1252 = vadd.f32 0.0, %v1251
        %v1253 = vpop.f32.mrb[0].mxu0
        %v1254 = vpop.f32.mrb[0].mxu0
        %v1255 = vpop.f32.mrb[0].mxu0
        %1256 = vdwg.mxu0
        %v1257 = vadd.f32 %v1178, %v1252
        %s1258 = scalar_lea.vmem %s6, 1
        %v1259 = vld [vmem:[%s1258] sm:$0x1]
        %v1261 = vlaneseq
        %v1262 = vshrl.u32 %v1261, 7
        %v1263 = vsub.s32 0, %v1262
        %v1264 = vrot.slane %v1259, %v1263
        %v1266 = vadd.f32 %v1257, %v1264
        %v1267 = vmax.f32 %v1266, 0.0
        %v1268 = vpack.c.bf16 %v1267, %v1267
        %s1269 = scalar_lea.vmem %s7, 16
        %v1270 = vld [vmem:[%s1269] sm:$0xf]
        %v1271 = vld [vmem:[%s1269 + $0x4] sm:$0xf]
        %v1272 = vld [vmem:[%s1269 + $0x8] sm:$0xf]
        %v1273 = vld [vmem:[%s1269 + $0xc] sm:$0xf]
        %s1274 = scalar_lea.vmem %s8, 1
        %v1275 = vld [vmem:[%s1274] sm:$0x1]
        %v1277 = vlaneseq
        %v1278 = vshrl.u32 %v1277, 7
        %v1279 = vsub.s32 0, %v1278
        %v1280 = vrot.slane %v1275, %v1279
        %v1286 = vunpack.c.l.b16 %v1270
        %v1287 = vunpack.c.l.b16 %v1271
        %v1288 = vunpack.c.l.b16 %v1272
        %v1289 = vunpack.c.l.b16 %v1273
        %v1290 = vpack.c.b16 %v1287, %v1286
        %v1291 = vpack.c.b16 %v1289, %v1288
        %v1295 = vsel %vm410, %v1268, 0
        %1297 = vmatprep.subr.bf16.mxu0 0
        %1298 = vmatpush1.bf16.msra.mxu0 %v1290
        %1299 = vmatprep.subr.bf16.mxu0 0
        %1300 = vmatpush1.bf16.msra.mxu0 %v1291
        %1301 = vmatprep.subr.bf16.mxu0 0
        %1302 = vmatpush1.bf16.msra.mxu0 0
        %1303 = vmatprep.subr.bf16.mxu0 0
        %1304 = vmatpush1.bf16.msra.mxu0 0
        %1305 = vmatprep.subr.bf16.mxu0 0
        %1306 = vmatpush1.bf16.msra.mxu0 0
        %1307 = vmatprep.subr.bf16.mxu0 0
        %1308 = vmatpush1.bf16.msra.mxu0 0
        %1309 = vmatprep.subr.bf16.mxu0 0
        %1310 = vmatpush1.bf16.msra.mxu0 0
        %1311 = vmatprep.subr.bf16.mxu0 0
        %1312 = vmatpush1.bf16.msra.mxu0 0
        %1313 = vmatprep.subr.bf16.mxu0 0
        %1314 = vmatpush1.bf16.msra.mxu0 0
        %1315 = vmatprep.subr.bf16.mxu0 0
        %1316 = vmatpush1.bf16.msra.mxu0 0
        %1317 = vmatprep.subr.bf16.mxu0 0
        %1318 = vmatpush1.bf16.msra.mxu0 0
        %1319 = vmatprep.subr.bf16.mxu0 0
        %1320 = vmatpush1.bf16.msra.mxu0 0
        %1321 = vmatprep.subr.bf16.mxu0 0
        %1322 = vmatpush1.bf16.msra.mxu0 0
        %1323 = vmatprep.subr.bf16.mxu0 0
        %1324 = vmatpush1.bf16.msra.mxu0 0
        %1325 = vmatprep.subr.bf16.mxu0 0
        %1326 = vmatpush1.bf16.msra.mxu0 0
        %1327 = vmatprep.subr.bf16.mxu0 0
        %1328 = vmatpush1.bf16.msra.mxu0 0
        %1329 = vmatprep.mubr.bf16.mxu0 0
        %1330 = vmatmul.mubr.bf16.gmra.mrb[0].mxu0 %v1295
        %v1331 = vpop.f32.mrb[0].mxu0
        %v1332 = vadd.f32 %v1280, %v1331
        %v1333 = vpop.f32.mrb[0].mxu0
        %v1334 = vpop.f32.mrb[0].mxu0
        %v1335 = vpop.f32.mrb[0].mxu0
        %1336 = vdwg.mxu0
        %v1337 = vld [vmem:[#allocation2] sm:$0xff]
        %v1338 = vadd.f32 %v1337, %v1332
        %1339 = vst.msk [vmem:[#allocation2] sm:$0xff] %vm410, %v1338
        %v1340 = vld [vmem:[#allocation2] sm:$0xff]
        %v1341 = vpack.c.bf16 %v1340, %v1340
        %1342 = vst.msk [vmem:[%s384] sm:$0xf] %vm736, %v1341
        %p1343 = scmp.lt.s32.totalorder %s20, 1
        %s1344 = scalar_select %p1343, %s20, 1
        %s1345 = smul.addr %s1344, 4
        %s1346 = scalar_lea.vmem %s9, %s1345
        // Predicated region
        $region98: #{spatial_mlp_encoder.5} parent=92 // pred_check
          %p1347 = pneg %p232
        $region99: #{spatial_mlp_encoder.5} parent=92 // pred_check_branch
          %1349 = sbr.rel (%p1347) target = $region101
        $region100: #{spatial_mlp_encoder.5} parent=92 // pred_region
          _
        $region101: #{spatial_mlp_encoder.5} parent=92 // pred_fallthru
          _
      $region93: #{spatial_mlp_encoder.5} parent=5 // pred_fallthru
        _
      %p1350 = scmp.le.s32.totalorder 2, %s15
      // Predicated region
      $region102: #{spatial_mlp_encoder.5} parent=5 // pred_check
        %p1351 = pneg %p1350
      $region103: #{spatial_mlp_encoder.5} parent=5 // pred_check_branch
        %1353 = sbr.rel (%p1351) target = $region105
      $region104: #{spatial_mlp_encoder.5} parent=5 // pred_region
        %s1354 = ssub.s32 %s15, 2
        // Predicated region
        $region106: #{spatial_mlp_encoder.5} parent=104 // pred_check
          %p1355 = pneg %p238
        $region107: #{spatial_mlp_encoder.5} parent=104 // pred_check_branch
          %1357 = sbr.rel (%p1355) target = $region109
        $region108: #{spatial_mlp_encoder.5} parent=104 // pred_region
          %p1358 = scmp.lt.s32.totalorder %s21, 1
          %s1359 = scalar_select %p1358, %s21, 1
          %s1360 = smul.addr %s1359, 4
          %s1361 = scalar_lea.vmem %s9, %s1360
        $region109: #{spatial_mlp_encoder.5} parent=104 // pred_fallthru
          _
      $region105: #{spatial_mlp_encoder.5} parent=5 // pred_fallthru
        _
    $region6: #{spatial_mlp_encoder.5} parent=1 // loop_footer
      %s19 = sadd.s32 1, %s15
    $region7: #{spatial_mlp_encoder.5} parent=1 // loop_footer_branch
      %14 = sbr.rel target = $region3
    $region8: #{spatial_mlp_encoder.5} parent=1 // loop_exit
      _

// kernel: spatial_mlp_encoder.6
$region0: #{spatial_mlp_encoder.6}
  #allocation0 [shape = 'u32[]', space=smem, size = 0x4, offset = 0x4, fixed_abs, tag = 'smem constant byte address 0x4 - core index']
  #allocation1 [shape = 'u32[144,128]{1,0:T(1,128)}', space=vmem, size = 0x12000, scoped, tag = 'internal scratch']
  #allocation2 [shape = 'f32[4,32]{1,0:T(4,128)}', space=vmem, size = 0x800, scoped, tag = 'scratch operand']
  #allocation3 [shape = 'bf16[15,32]{1,0:T(8,128)(2,1)}', space=vmem, size = 0x1000, scoped, tag = 'scratch operand']
  %s0 = inlined_call_operand.vmem [shape: bf16[2,2,5,32], index: 0, kind: input, shape index: {}]
  %s1 = inlined_call_operand.vmem [shape: bf16[4,32,32], index: 1, kind: input, shape index: {}]
  %s2 = inlined_call_operand.vmem [shape: f32[1,32], index: 2, kind: input, shape index: {}]
  %s3 = inlined_call_operand.vmem [shape: bf16[32,32], index: 3, kind: input, shape index: {}]
  %s4 = inlined_call_operand.vmem [shape: f32[1,32], index: 4, kind: input, shape index: {}]
  %s5 = inlined_call_operand.vmem [shape: bf16[2,3,32,32], index: 5, kind: input, shape index: {}]
  %s6 = inlined_call_operand.vmem [shape: f32[2,1,32], index: 6, kind: input, shape index: {}]
  %s7 = inlined_call_operand.vmem [shape: bf16[2,32,32], index: 7, kind: input, shape index: {}]
  %s8 = inlined_call_operand.vmem [shape: f32[2,1,32], index: 8, kind: input, shape index: {}]
  %s9 = inlined_call_operand.vmem [shape: bf16[2,4,32], index: 9, kind: output, shape index: {}]
  %s10 = sld [smem:[#allocation0]]
  $region110: #{spatial_mlp_encoder.6} parent=0
    _
  %s12 = ssub.s32 1, %s10
  %s13 = scalar_select 0, %s12, %s10
  $region1: #{spatial_mlp_encoder.6} parent=0
    #allocation4 [shape = 'u8[8192]{0}', space=vmem, size = 0x2000, scoped, tag = 'input window, operand 0']
    loop: start=0, step=1, limit=4
    $region2: #{spatial_mlp_encoder.6} parent=1 // loop_pre_header
      _
    $region3: #{spatial_mlp_encoder.6} parent=1 // loop_header
      %s15 = sphi 0, %s19
      %p16 = scmp.ge.s32.totalorder %s15, 4
      %s25 = sphi 0, %s27
      %s28 = sphi 0, %s25
      %s29 = sphi 0, %s28
      %s45 = sphi 0, %s29
      %s49 = sphi 0, %s49
      %s51 = sphi 0, %s49
      %s52 = sphi 0, %s51
      %s66 = sphi 0, %s52
      %s70 = sphi 0, %s70
      %s72 = sphi 0, %s70
      %s73 = sphi 0, %s72
      %s87 = sphi 0, %s73
      %s91 = sphi 0, %s91
      %s93 = sphi 0, %s91
      %s94 = sphi 0, %s93
      %s108 = sphi 0, %s94
      %s112 = sphi 0, %s112
      %s114 = sphi 0, %s112
      %s115 = sphi 0, %s114
      %s129 = sphi 0, %s115
      %s133 = sphi 0, %s133
      %s135 = sphi 0, %s133
      %s136 = sphi 0, %s135
      %s150 = sphi 0, %s136
      %s154 = sphi 0, %s154
      %s156 = sphi 0, %s154
      %s157 = sphi 0, %s156
      %s171 = sphi 0, %s157
      %s175 = sphi 0, %s175
      %s177 = sphi 0, %s175
      %s178 = sphi 0, %s177
      %s192 = sphi 0, %s178
      %s196 = sphi 0, %s196
      %s198 = sphi 0, %s196
      %s199 = sphi 0, %s198
      %s213 = sphi 0, %s199
      %s219 = sphi 0, %s221
      %s222 = sphi 0, %s219
      %s223 = sphi 0, %s222
      %s239 = sphi 0, %s223
    $region4: #{spatial_mlp_encoder.6} parent=1 // loop_header_branch
      %18 = sbr.rel (%p16) target = $region8
    $region5: #{spatial_mlp_encoder.6} parent=1 // loop_body
      %s20 = ssub.s32 %s15, 1
      %s21 = ssub.s32 %s15, 2
      %s22 = sadd.s32 %s15, 1
      %s23 = ssub.s32 %s15, %s22
      %p24 = scmp.eq.s32.totalorder %s23, 0
      %s26 = sadd.s32 %s25, 1
      %s27 = scalar_select %p24, %s25, %s26
      %p30 = pneg %p24
      %p31 = scmp.eq.s32.totalorder %s15, 1
      %p32 = por %p30, %p31
      %p33 = scmp.ne.s32.totalorder %s25, %s28
      %p34 = scmp.eq.s32.totalorder %s15, 0
      %p35 = por %p33, %p34
      %p36 = scmp.ne.s32.totalorder %s25, %s28
      %p37 = scmp.eq.s32.totalorder %s20, 1
      %p38 = por %p36, %p37
      %p39 = scmp.ne.s32.totalorder %s28, %s29
      %p40 = scmp.eq.s32.totalorder %s20, 0
      %p41 = por %p39, %p40
      %p42 = scmp.ne.s32.totalorder %s28, %s29
      %p43 = scmp.eq.s32.totalorder %s21, 1
      %p44 = por %p42, %p43
      %p46 = scmp.ne.s32.totalorder %s29, %s45
      %p47 = scmp.eq.s32.totalorder %s21, 0
      %p48 = por %p46, %p47
      %s50 = sadd.s32 %s49, 1
      %p53 = scmp.eq.s32.totalorder %s15, 1
      %p54 = scmp.ne.s32.totalorder %s49, %s51
      %p55 = scmp.eq.s32.totalorder %s15, 0
      %p56 = por %p54, %p55
      %p57 = scmp.ne.s32.totalorder %s49, %s51
      %p58 = scmp.eq.s32.totalorder %s20, 1
      %p59 = por %p57, %p58
      %p60 = scmp.ne.s32.totalorder %s51, %s52
      %p61 = scmp.eq.s32.totalorder %s20, 0
      %p62 = por %p60, %p61
      %p63 = scmp.ne.s32.totalorder %s51, %s52
      %p64 = scmp.eq.s32.totalorder %s21, 1
      %p65 = por %p63, %p64
      %p67 = scmp.ne.s32.totalorder %s52, %s66
      %p68 = scmp.eq.s32.totalorder %s21, 0
      %p69 = por %p67, %p68
      %s71 = sadd.s32 %s70, 1
      %p74 = scmp.eq.s32.totalorder %s15, 1
      %p75 = scmp.ne.s32.totalorder %s70, %s72
      %p76 = scmp.eq.s32.totalorder %s15, 0
      %p77 = por %p75, %p76
      %p78 = scmp.ne.s32.totalorder %s70, %s72
      %p79 = scmp.eq.s32.totalorder %s20, 1
      %p80 = por %p78, %p79
      %p81 = scmp.ne.s32.totalorder %s72, %s73
      %p82 = scmp.eq.s32.totalorder %s20, 0
      %p83 = por %p81, %p82
      %p84 = scmp.ne.s32.totalorder %s72, %s73
      %p85 = scmp.eq.s32.totalorder %s21, 1
      %p86 = por %p84, %p85
      %p88 = scmp.ne.s32.totalorder %s73, %s87
      %p89 = scmp.eq.s32.totalorder %s21, 0
      %p90 = por %p88, %p89
      %s92 = sadd.s32 %s91, 1
      %p95 = scmp.eq.s32.totalorder %s15, 1
      %p96 = scmp.ne.s32.totalorder %s91, %s93
      %p97 = scmp.eq.s32.totalorder %s15, 0
      %p98 = por %p96, %p97
      %p99 = scmp.ne.s32.totalorder %s91, %s93
      %p100 = scmp.eq.s32.totalorder %s20, 1
      %p101 = por %p99, %p100
      %p102 = scmp.ne.s32.totalorder %s93, %s94
      %p103 = scmp.eq.s32.totalorder %s20, 0
      %p104 = por %p102, %p103
      %p105 = scmp.ne.s32.totalorder %s93, %s94
      %p106 = scmp.eq.s32.totalorder %s21, 1
      %p107 = por %p105, %p106
      %p109 = scmp.ne.s32.totalorder %s94, %s108
      %p110 = scmp.eq.s32.totalorder %s21, 0
      %p111 = por %p109, %p110
      %s113 = sadd.s32 %s112, 1
      %p116 = scmp.eq.s32.totalorder %s15, 1
      %p117 = scmp.ne.s32.totalorder %s112, %s114
      %p118 = scmp.eq.s32.totalorder %s15, 0
      %p119 = por %p117, %p118
      %p120 = scmp.ne.s32.totalorder %s112, %s114
      %p121 = scmp.eq.s32.totalorder %s20, 1
      %p122 = por %p120, %p121
      %p123 = scmp.ne.s32.totalorder %s114, %s115
      %p124 = scmp.eq.s32.totalorder %s20, 0
      %p125 = por %p123, %p124
      %p126 = scmp.ne.s32.totalorder %s114, %s115
      %p127 = scmp.eq.s32.totalorder %s21, 1
      %p128 = por %p126, %p127
      %p130 = scmp.ne.s32.totalorder %s115, %s129
      %p131 = scmp.eq.s32.totalorder %s21, 0
      %p132 = por %p130, %p131
      %s134 = sadd.s32 %s133, 1
      %p137 = scmp.eq.s32.totalorder %s15, 1
      %p138 = scmp.ne.s32.totalorder %s133, %s135
      %p139 = scmp.eq.s32.totalorder %s15, 0
      %p140 = por %p138, %p139
      %p141 = scmp.ne.s32.totalorder %s133, %s135
      %p142 = scmp.eq.s32.totalorder %s20, 1
      %p143 = por %p141, %p142
      %p144 = scmp.ne.s32.totalorder %s135, %s136
      %p145 = scmp.eq.s32.totalorder %s20, 0
      %p146 = por %p144, %p145
      %p147 = scmp.ne.s32.totalorder %s135, %s136
      %p148 = scmp.eq.s32.totalorder %s21, 1
      %p149 = por %p147, %p148
      %p151 = scmp.ne.s32.totalorder %s136, %s150
      %p152 = scmp.eq.s32.totalorder %s21, 0
      %p153 = por %p151, %p152
      %s155 = sadd.s32 %s154, 1
      %p158 = scmp.eq.s32.totalorder %s15, 1
      %p159 = scmp.ne.s32.totalorder %s154, %s156
      %p160 = scmp.eq.s32.totalorder %s15, 0
      %p161 = por %p159, %p160
      %p162 = scmp.ne.s32.totalorder %s154, %s156
      %p163 = scmp.eq.s32.totalorder %s20, 1
      %p164 = por %p162, %p163
      %p165 = scmp.ne.s32.totalorder %s156, %s157
      %p166 = scmp.eq.s32.totalorder %s20, 0
      %p167 = por %p165, %p166
      %p168 = scmp.ne.s32.totalorder %s156, %s157
      %p169 = scmp.eq.s32.totalorder %s21, 1
      %p170 = por %p168, %p169
      %p172 = scmp.ne.s32.totalorder %s157, %s171
      %p173 = scmp.eq.s32.totalorder %s21, 0
      %p174 = por %p172, %p173
      %s176 = sadd.s32 %s175, 1
      %p179 = scmp.eq.s32.totalorder %s15, 1
      %p180 = scmp.ne.s32.totalorder %s175, %s177
      %p181 = scmp.eq.s32.totalorder %s15, 0
      %p182 = por %p180, %p181
      %p183 = scmp.ne.s32.totalorder %s175, %s177
      %p184 = scmp.eq.s32.totalorder %s20, 1
      %p185 = por %p183, %p184
      %p186 = scmp.ne.s32.totalorder %s177, %s178
      %p187 = scmp.eq.s32.totalorder %s20, 0
      %p188 = por %p186, %p187
      %p189 = scmp.ne.s32.totalorder %s177, %s178
      %p190 = scmp.eq.s32.totalorder %s21, 1
      %p191 = por %p189, %p190
      %p193 = scmp.ne.s32.totalorder %s178, %s192
      %p194 = scmp.eq.s32.totalorder %s21, 0
      %p195 = por %p193, %p194
      %s197 = sadd.s32 %s196, 1
      %p200 = scmp.eq.s32.totalorder %s15, 1
      %p201 = scmp.ne.s32.totalorder %s196, %s198
      %p202 = scmp.eq.s32.totalorder %s15, 0
      %p203 = por %p201, %p202
      %p204 = scmp.ne.s32.totalorder %s196, %s198
      %p205 = scmp.eq.s32.totalorder %s20, 1
      %p206 = por %p204, %p205
      %p207 = scmp.ne.s32.totalorder %s198, %s199
      %p208 = scmp.eq.s32.totalorder %s20, 0
      %p209 = por %p207, %p208
      %p210 = scmp.ne.s32.totalorder %s198, %s199
      %p211 = scmp.eq.s32.totalorder %s21, 1
      %p212 = por %p210, %p211
      %p214 = scmp.ne.s32.totalorder %s199, %s213
      %p215 = scmp.eq.s32.totalorder %s21, 0
      %p216 = por %p214, %p215
      %s217 = ssub.s32 %s15, %s22
      %p218 = scmp.eq.s32.totalorder %s217, 0
      %s220 = sadd.s32 %s219, 1
      %s221 = scalar_select %p218, %s219, %s220
      %p224 = pneg %p218
      %p225 = scmp.eq.s32.totalorder %s15, 1
      %p226 = por %p224, %p225
      %p227 = scmp.ne.s32.totalorder %s219, %s222
      %p228 = scmp.eq.s32.totalorder %s15, 0
      %p229 = por %p227, %p228
      %p230 = scmp.ne.s32.totalorder %s219, %s222
      %p231 = scmp.eq.s32.totalorder %s20, 1
      %p232 = por %p230, %p231
      %p233 = scmp.ne.s32.totalorder %s222, %s223
      %p234 = scmp.eq.s32.totalorder %s20, 0
      %p235 = por %p233, %p234
      %p236 = scmp.ne.s32.totalorder %s222, %s223
      %p237 = scmp.eq.s32.totalorder %s21, 1
      %p238 = por %p236, %p237
      %p240 = scmp.ne.s32.totalorder %s223, %s239
      %p241 = scmp.eq.s32.totalorder %s21, 0
      %p242 = por %p240, %p241
      %p243 = scmp.le.s32.totalorder 1, %s15
      %p244 = scmp.lt.s32.totalorder %s15, 3
      %p245 = pnand %p243, %p244
      %p246 = pneg %p245
      // Predicated region
      $region9: #{spatial_mlp_encoder.6} parent=5 // pred_check
        _
      $region10: #{spatial_mlp_encoder.6} parent=5 // pred_check_branch
        %248 = sbr.rel (%p245) target = $region12
      $region11: #{spatial_mlp_encoder.6} parent=5 // pred_region
        %s249 = ssub.s32 %s15, 1
        // Predicated region
        $region13: #{spatial_mlp_encoder.6} parent=11 // pred_check
          %p250 = pneg %p62
        $region14: #{spatial_mlp_encoder.6} parent=11 // pred_check_branch
          %252 = sbr.rel (%p250) target = $region16
        $region15: #{spatial_mlp_encoder.6} parent=11 // pred_region
          _
        $region16: #{spatial_mlp_encoder.6} parent=11 // pred_fallthru
          _
        // Predicated region
        $region17: #{spatial_mlp_encoder.6} parent=11 // pred_check
          %p253 = pneg %p83
        $region18: #{spatial_mlp_encoder.6} parent=11 // pred_check_branch
          %255 = sbr.rel (%p253) target = $region20
        $region19: #{spatial_mlp_encoder.6} parent=11 // pred_region
          _
        $region20: #{spatial_mlp_encoder.6} parent=11 // pred_fallthru
          _
        // Predicated region
        $region21: #{spatial_mlp_encoder.6} parent=11 // pred_check
          %p256 = pneg %p104
        $region22: #{spatial_mlp_encoder.6} parent=11 // pred_check_branch
          %258 = sbr.rel (%p256) target = $region24
        $region23: #{spatial_mlp_encoder.6} parent=11 // pred_region
          _
        $region24: #{spatial_mlp_encoder.6} parent=11 // pred_fallthru
          _
        // Predicated region
        $region25: #{spatial_mlp_encoder.6} parent=11 // pred_check
          %p259 = pneg %p125
        $region26: #{spatial_mlp_encoder.6} parent=11 // pred_check_branch
          %261 = sbr.rel (%p259) target = $region28
        $region27: #{spatial_mlp_encoder.6} parent=11 // pred_region
          _
        $region28: #{spatial_mlp_encoder.6} parent=11 // pred_fallthru
          _
        // Predicated region
        $region29: #{spatial_mlp_encoder.6} parent=11 // pred_check
          %p262 = pneg %p146
        $region30: #{spatial_mlp_encoder.6} parent=11 // pred_check_branch
          %264 = sbr.rel (%p262) target = $region32
        $region31: #{spatial_mlp_encoder.6} parent=11 // pred_region
          _
        $region32: #{spatial_mlp_encoder.6} parent=11 // pred_fallthru
          _
        // Predicated region
        $region33: #{spatial_mlp_encoder.6} parent=11 // pred_check
          %p265 = pneg %p167
        $region34: #{spatial_mlp_encoder.6} parent=11 // pred_check_branch
          %267 = sbr.rel (%p265) target = $region36
        $region35: #{spatial_mlp_encoder.6} parent=11 // pred_region
          _
        $region36: #{spatial_mlp_encoder.6} parent=11 // pred_fallthru
          _
        // Predicated region
        $region37: #{spatial_mlp_encoder.6} parent=11 // pred_check
          %p268 = pneg %p188
        $region38: #{spatial_mlp_encoder.6} parent=11 // pred_check_branch
          %270 = sbr.rel (%p268) target = $region40
        $region39: #{spatial_mlp_encoder.6} parent=11 // pred_region
          _
        $region40: #{spatial_mlp_encoder.6} parent=11 // pred_fallthru
          _
        // Predicated region
        $region41: #{spatial_mlp_encoder.6} parent=11 // pred_check
          %p271 = pneg %p209
        $region42: #{spatial_mlp_encoder.6} parent=11 // pred_check_branch
          %273 = sbr.rel (%p271) target = $region44
        $region43: #{spatial_mlp_encoder.6} parent=11 // pred_region
          _
        $region44: #{spatial_mlp_encoder.6} parent=11 // pred_fallthru
          _
      $region12: #{spatial_mlp_encoder.6} parent=5 // pred_fallthru
        _
      %p274 = scmp.lt.s32.totalorder %s15, 2
      // Predicated region
      $region45: #{spatial_mlp_encoder.6} parent=5 // pred_check
        %p275 = pneg %p274
      $region46: #{spatial_mlp_encoder.6} parent=5 // pred_check_branch
        %277 = sbr.rel (%p275) target = $region48
      $region47: #{spatial_mlp_encoder.6} parent=5 // pred_region
        // Predicated region
        $region49: #{spatial_mlp_encoder.6} parent=47 // pred_check
          %p278 = pneg %p35
        $region50: #{spatial_mlp_encoder.6} parent=47 // pred_check_branch
          %280 = sbr.rel (%p278) target = $region52
        $region51: #{spatial_mlp_encoder.6} parent=47 // pred_region
          %s281 = sand.u32 %s25, 1
          %s282 = sand.u32 %s25, 1
          %s283 = smul.addr %s282, 8
          %s284 = scalar_lea.vmem [#allocation4], %s283
          %s285 = smul.addr %s15, 4
          %s286 = scalar_lea.vmem %s0, %s285
          // Predicated region
          $region53: #{spatial_mlp_encoder.6} parent=51 // pred_check
            _
          $region54: #{spatial_mlp_encoder.6} parent=51 // pred_check_branch
            %288 = sbr.rel (0) target = $region56
          $region55: #{spatial_mlp_encoder.6} parent=51 // pred_region
            // Predicated region
            $region57: #{spatial_mlp_encoder.6} parent=55 // pred_check
              _
            $region58: #{spatial_mlp_encoder.6} parent=55 // pred_check_branch
              %290 = sbr.rel target = $region60
            $region59: #{spatial_mlp_encoder.6} parent=55 // pred_region
              // Predicated region
              $region72: #{spatial_mlp_encoder.6} parent=59 // pred_check
                _
              $region73: #{spatial_mlp_encoder.6} parent=59 // pred_check_branch
                %307 = sbr.rel (0) target = $region75
              $region74: #{spatial_mlp_encoder.6} parent=59 // pred_region
                loop: start=0, step=1, limit=1
                $region76: #{spatial_mlp_encoder.6} parent=74 // loop_pre_header
                  _
                $region77: #{spatial_mlp_encoder.6} parent=74 // loop_header
                  %s309 = sphi 0, %s313
                  %p310 = scmp.ge.s32.totalorder %s309, 1
                  %s314 = sphi %s286, %s286
                  %s315 = sphi %s284, %s284
                $region78: #{spatial_mlp_encoder.6} parent=74 // loop_header_branch
                  %312 = sbr.rel (%p310) target = $region82
                $region79: #{spatial_mlp_encoder.6} parent=74 // loop_body
                  _
                $region80: #{spatial_mlp_encoder.6} parent=74 // loop_footer
                  %s313 = sadd.s32 1, %s309
                $region81: #{spatial_mlp_encoder.6} parent=74 // loop_footer_branch
                  %308 = sbr.rel target = $region77
                $region82: #{spatial_mlp_encoder.6} parent=74 // loop_exit
                  _
                loop: start=0, step=1, limit=1
                $region83: #{spatial_mlp_encoder.6} parent=74 // loop_pre_header
                  _
                $region84: #{spatial_mlp_encoder.6} parent=74 // loop_header
                  %s318 = sphi 0, %s322
                  %p319 = scmp.ge.s32.totalorder %s318, 1
                  %s323 = sphi %s286, %s286
                  %s324 = sphi %s284, %s284
                $region85: #{spatial_mlp_encoder.6} parent=74 // loop_header_branch
                  %321 = sbr.rel (%p319) target = $region89
                $region86: #{spatial_mlp_encoder.6} parent=74 // loop_body
                  %v325 = vld [vmem:[%s323] sm:$0xf]
                  %326 = vst [vmem:[%s324] sm:$0xf] %v325
                  %v327 = vld [vmem:[%s323 + $0x8] sm:$0xf]
                  %328 = vst [vmem:[%s324 + $0x4] sm:$0xf] %v327
                $region87: #{spatial_mlp_encoder.6} parent=74 // loop_footer
                  %s322 = sadd.s32 1, %s318
                $region88: #{spatial_mlp_encoder.6} parent=74 // loop_footer_branch
                  %317 = sbr.rel target = $region84
                $region89: #{spatial_mlp_encoder.6} parent=74 // loop_exit
                  _
              $region75: #{spatial_mlp_encoder.6} parent=59 // pred_fallthru
                _
            $region60: #{spatial_mlp_encoder.6} parent=55 // pred_fallthru
              _
            // Predicated region
            $region61: #{spatial_mlp_encoder.6} parent=55 // pred_check
              _
            $region62: #{spatial_mlp_encoder.6} parent=55 // pred_check_branch
              %292 = sbr.rel (0) target = $region64
            $region63: #{spatial_mlp_encoder.6} parent=55 // pred_region
              loop: start=0, step=1, limit=1
              $region65: #{spatial_mlp_encoder.6} parent=63 // loop_pre_header
                _
              $region66: #{spatial_mlp_encoder.6} parent=63 // loop_header
                %s295 = sphi 0, %s299
                %p296 = scmp.ge.s32.totalorder %s295, 1
                %s300 = sphi %s286, %s286
                %s301 = sphi %s284, %s284
              $region67: #{spatial_mlp_encoder.6} parent=63 // loop_header_branch
                %298 = sbr.rel (%p296) target = $region71
              $region68: #{spatial_mlp_encoder.6} parent=63 // loop_body
                %v302 = vld [vmem:[%s300] sm:$0xf]
                %303 = vst [vmem:[%s301] sm:$0xf] %v302
                %v304 = vld [vmem:[%s300 + $0x8] sm:$0xf]
                %305 = vst [vmem:[%s301 + $0x4] sm:$0xf] %v304
              $region69: #{spatial_mlp_encoder.6} parent=63 // loop_footer
                %s299 = sadd.s32 1, %s295
              $region70: #{spatial_mlp_encoder.6} parent=63 // loop_footer_branch
                %294 = sbr.rel target = $region66
              $region71: #{spatial_mlp_encoder.6} parent=63 // loop_exit
                _
            $region64: #{spatial_mlp_encoder.6} parent=55 // pred_fallthru
              _
          $region56: #{spatial_mlp_encoder.6} parent=51 // pred_fallthru
            _
          %329 = vnop
        $region52: #{spatial_mlp_encoder.6} parent=47 // pred_fallthru
          _
      $region48: #{spatial_mlp_encoder.6} parent=5 // pred_fallthru
        _
      %p330 = scmp.le.s32.totalorder 1, %s15
      %p331 = scmp.lt.s32.totalorder %s15, 3
      %p332 = pnand %p330, %p331
      %p333 = pneg %p332
      // Predicated region
      $region90: #{spatial_mlp_encoder.6} parent=5 // pred_check
        _
      $region91: #{spatial_mlp_encoder.6} parent=5 // pred_check_branch
        %335 = sbr.rel (%p332) target = $region93
      $region92: #{spatial_mlp_encoder.6} parent=5 // pred_region
        %s336 = ssub.s32 %s15, 1
        %s337 = sand.u32 %s28, 1
        %s338 = sand.u32 %s28, 1
        %s339 = smul.addr %s338, 8
        %s340 = scalar_lea.vmem [#allocation4], %s339
        // Predicated region
        $region94: #{spatial_mlp_encoder.6} parent=92 // pred_check
          %p341 = pneg %p41
        $region95: #{spatial_mlp_encoder.6} parent=92 // pred_check_branch
          %343 = sbr.rel (%p341) target = $region97
        $region96: #{spatial_mlp_encoder.6} parent=92 // pred_region
          _
        $region97: #{spatial_mlp_encoder.6} parent=92 // pred_fallthru
          _
        %s344 = sand.u32 %s28, 1
        %s345 = sand.u32 %s28, 1
        %s346 = smul.addr %s345, 8
        %s347 = scalar_lea.vmem [#allocation4], %s346
        %p348 = pneg %p41
        %p349 = pneg %p38
        %p350 = pneg %p62
        %p351 = pneg %p59
        %p352 = pneg %p83
        %p353 = pneg %p80
        %p354 = pneg %p104
        %p355 = pneg %p101
        %p356 = pneg %p125
        %p357 = pneg %p122
        %p358 = pneg %p146
        %p359 = pneg %p143
        %p360 = pneg %p167
        %p361 = pneg %p164
        %p362 = pneg %p188
        %p363 = pneg %p185
        %p364 = pneg %p209
        %p365 = pneg %p206
        %p366 = pneg %p235
        %p367 = pneg %p232
        %p368 = scmp.lt.s32.totalorder %s20, 1
        %s369 = scalar_select %p368, %s20, 1
        %s370 = smul.addr %s369, 2
        %s371 = scalar_lea.vmem %s9, %s370
        %p372 = scmp.lt.s32.totalorder %s20, 1
        %s373 = scalar_select %p372, %s20, 1
        %s374 = smul.addr %s373, 2
        %s375 = scalar_lea.vmem %s9, %s374
        %v377 = vld [vmem:[%s340] sm:$0x3]
        %v378 = vld [vmem:[%s1] sm:$0xf]
        %v379 = vld [vmem:[%s1 + $0x4] sm:$0xf]
        %v380 = vld [vmem:[%s1 + $0x8] sm:$0xf]
        %v381 = vld [vmem:[%s1 + $0xc] sm:$0xf]
        %s382 = scalar_lea.vmem %s340, 4 [#allocation4]
        %v383 = vld [vmem:[%s382] sm:$0x3]
        %s384 = scalar_lea.vmem %s1, 16
        %v385 = vld [vmem:[%s384] sm:$0xf]
        %v386 = vld [vmem:[%s384 + $0x4] sm:$0xf]
        %v387 = vld [vmem:[%s384 + $0x8] sm:$0xf]
        %v388 = vld [vmem:[%s384 + $0xc] sm:$0xf]
        %v393 = vunpack.c.l.b16 %v385
        %v394 = vunpack.c.l.b16 %v386
        %v395 = vunpack.c.l.b16 %v387
        %v396 = vunpack.c.l.b16 %v388
        %v397 = vpack.c.b16 %v394, %v393
        %v398 = vpack.c.b16 %v396, %v395
        %vm401 = vcmask 261120
        %v403 = vsel %vm401, %v383, 0
        %405 = vmatprep.subr.bf16.mxu0 0
        %406 = vmatpush1.bf16.msra.mxu0 %v397
        %407 = vmatprep.subr.bf16.mxu0 0
        %408 = vmatpush1.bf16.msra.mxu0 %v398
        %409 = vmatprep.subr.bf16.mxu0 0
        %410 = vmatpush1.bf16.msra.mxu0 0
        %411 = vmatprep.subr.bf16.mxu0 0
        %412 = vmatpush1.bf16.msra.mxu0 0
        %413 = vmatprep.subr.bf16.mxu0 0
        %414 = vmatpush1.bf16.msra.mxu0 0
        %415 = vmatprep.subr.bf16.mxu0 0
        %416 = vmatpush1.bf16.msra.mxu0 0
        %417 = vmatprep.subr.bf16.mxu0 0
        %418 = vmatpush1.bf16.msra.mxu0 0
        %419 = vmatprep.subr.bf16.mxu0 0
        %420 = vmatpush1.bf16.msra.mxu0 0
        %421 = vmatprep.subr.bf16.mxu0 0
        %422 = vmatpush1.bf16.msra.mxu0 0
        %423 = vmatprep.subr.bf16.mxu0 0
        %424 = vmatpush1.bf16.msra.mxu0 0
        %425 = vmatprep.subr.bf16.mxu0 0
        %426 = vmatpush1.bf16.msra.mxu0 0
        %427 = vmatprep.subr.bf16.mxu0 0
        %428 = vmatpush1.bf16.msra.mxu0 0
        %429 = vmatprep.subr.bf16.mxu0 0
        %430 = vmatpush1.bf16.msra.mxu0 0
        %431 = vmatprep.subr.bf16.mxu0 0
        %432 = vmatpush1.bf16.msra.mxu0 0
        %433 = vmatprep.subr.bf16.mxu0 0
        %434 = vmatpush1.bf16.msra.mxu0 0
        %435 = vmatprep.subr.bf16.mxu0 0
        %436 = vmatpush1.bf16.msra.mxu0 0
        %437 = vmatprep.mubr.bf16.mxu0 0
        %438 = vmatmul.mubr.bf16.gmra.mrb[0].mxu0 %v403
        %v439 = vpop.f32.mrb[0].mxu0
        %v440 = vadd.f32 0.0, %v439
        %v441 = vpop.f32.mrb[0].mxu0
        %v442 = vpop.f32.mrb[0].mxu0
        %v443 = vpop.f32.mrb[0].mxu0
        %444 = vdwg.mxu0
        %v449 = vunpack.c.l.b16 %v378
        %v450 = vunpack.c.l.b16 %v379
        %v451 = vunpack.c.l.b16 %v380
        %v452 = vunpack.c.l.b16 %v381
        %v453 = vpack.c.b16 %v450, %v449
        %v454 = vpack.c.b16 %v452, %v451
        %v458 = vsel %vm401, %v377, 0
        %460 = vmatprep.subr.bf16.mxu0 0
        %461 = vmatpush1.bf16.msra.mxu0 %v453
        %462 = vmatprep.subr.bf16.mxu0 0
        %463 = vmatpush1.bf16.msra.mxu0 %v454
        %464 = vmatprep.subr.bf16.mxu0 0
        %465 = vmatpush1.bf16.msra.mxu0 0
        %466 = vmatprep.subr.bf16.mxu0 0
        %467 = vmatpush1.bf16.msra.mxu0 0
        %468 = vmatprep.subr.bf16.mxu0 0
        %469 = vmatpush1.bf16.msra.mxu0 0
        %470 = vmatprep.subr.bf16.mxu0 0
        %471 = vmatpush1.bf16.msra.mxu0 0
        %472 = vmatprep.subr.bf16.mxu0 0
        %473 = vmatpush1.bf16.msra.mxu0 0
        %474 = vmatprep.subr.bf16.mxu0 0
        %475 = vmatpush1.bf16.msra.mxu0 0
        %476 = vmatprep.subr.bf16.mxu0 0
        %477 = vmatpush1.bf16.msra.mxu0 0
        %478 = vmatprep.subr.bf16.mxu0 0
        %479 = vmatpush1.bf16.msra.mxu0 0
        %480 = vmatprep.subr.bf16.mxu0 0
        %481 = vmatpush1.bf16.msra.mxu0 0
        %482 = vmatprep.subr.bf16.mxu0 0
        %483 = vmatpush1.bf16.msra.mxu0 0
        %484 = vmatprep.subr.bf16.mxu0 0
        %485 = vmatpush1.bf16.msra.mxu0 0
        %486 = vmatprep.subr.bf16.mxu0 0
        %487 = vmatpush1.bf16.msra.mxu0 0
        %488 = vmatprep.subr.bf16.mxu0 0
        %489 = vmatpush1.bf16.msra.mxu0 0
        %490 = vmatprep.subr.bf16.mxu0 0
        %491 = vmatpush1.bf16.msra.mxu0 0
        %492 = vmatprep.mubr.bf16.mxu0 0
        %493 = vmatmul.mubr.bf16.gmra.mrb[0].mxu0 %v458
        %v494 = vpop.f32.mrb[0].mxu0
        %v495 = vadd.f32 %v440, %v494
        %v496 = vpop.f32.mrb[0].mxu0
        %v497 = vpop.f32.mrb[0].mxu0
        %v498 = vpop.f32.mrb[0].mxu0
        %499 = vdwg.mxu0
        %v500 = vld [vmem:[%s340] sm:$0x7]
        %s501 = scalar_lea.vmem %s1, 32
        %v502 = vld [vmem:[%s501] sm:$0xf]
        %v503 = vld [vmem:[%s501 + $0x4] sm:$0xf]
        %v504 = vld [vmem:[%s501 + $0x8] sm:$0xf]
        %v505 = vld [vmem:[%s501 + $0xc] sm:$0xf]
        %v507 = vunpack.c.l.b16 %v500
        %v508 = vpack.c.b16 %v507, %v507
        %v510 = vshrl.u32 %v508, 16
        %v512 = vshll.u32 %v508, 16
        %v514 = vrot.slane %v512, 1
        %v515 = vor.u32 %v510, %v514
        %v520 = vunpack.c.l.b16 %v502
        %v521 = vunpack.c.l.b16 %v503
        %v522 = vunpack.c.l.b16 %v504
        %v523 = vunpack.c.l.b16 %v505
        %v524 = vpack.c.b16 %v521, %v520
        %v525 = vpack.c.b16 %v523, %v522
        %v529 = vsel %vm401, %v515, 0
        %531 = vmatprep.subr.bf16.mxu0 0
        %532 = vmatpush1.bf16.msra.mxu0 %v524
        %533 = vmatprep.subr.bf16.mxu0 0
        %534 = vmatpush1.bf16.msra.mxu0 %v525
        %535 = vmatprep.subr.bf16.mxu0 0
        %536 = vmatpush1.bf16.msra.mxu0 0
        %537 = vmatprep.subr.bf16.mxu0 0
        %538 = vmatpush1.bf16.msra.mxu0 0
        %539 = vmatprep.subr.bf16.mxu0 0
        %540 = vmatpush1.bf16.msra.mxu0 0
        %541 = vmatprep.subr.bf16.mxu0 0
        %542 = vmatpush1.bf16.msra.mxu0 0
        %543 = vmatprep.subr.bf16.mxu0 0
        %544 = vmatpush1.bf16.msra.mxu0 0
        %545 = vmatprep.subr.bf16.mxu0 0
        %546 = vmatpush1.bf16.msra.mxu0 0
        %547 = vmatprep.subr.bf16.mxu0 0
        %548 = vmatpush1.bf16.msra.mxu0 0
        %549 = vmatprep.subr.bf16.mxu0 0
        %550 = vmatpush1.bf16.msra.mxu0 0
        %551 = vmatprep.subr.bf16.mxu0 0
        %552 = vmatpush1.bf16.msra.mxu0 0
        %553 = vmatprep.subr.bf16.mxu0 0
        %554 = vmatpush1.bf16.msra.mxu0 0
        %555 = vmatprep.subr.bf16.mxu0 0
        %556 = vmatpush1.bf16.msra.mxu0 0
        %557 = vmatprep.subr.bf16.mxu0 0
        %558 = vmatpush1.bf16.msra.mxu0 0
        %559 = vmatprep.subr.bf16.mxu0 0
        %560 = vmatpush1.bf16.msra.mxu0 0
        %561 = vmatprep.subr.bf16.mxu0 0
        %562 = vmatpush1.bf16.msra.mxu0 0
        %563 = vmatprep.mubr.bf16.mxu0 0
        %564 = vmatmul.mubr.bf16.gmra.mrb[0].mxu0 %v529
        %v565 = vpop.f32.mrb[0].mxu0
        %v566 = vadd.f32 0.0, %v565
        %v567 = vpop.f32.mrb[0].mxu0
        %v568 = vpop.f32.mrb[0].mxu0
        %v569 = vpop.f32.mrb[0].mxu0
        %570 = vdwg.mxu0
        %v571 = vadd.f32 %v495, %v566
        %v572 = vld [vmem:[%s382] sm:$0x7]
        %s573 = scalar_lea.vmem %s1, 48
        %v574 = vld [vmem:[%s573] sm:$0xf]
        %v575 = vld [vmem:[%s573 + $0x4] sm:$0xf]
        %v576 = vld [vmem:[%s573 + $0x8] sm:$0xf]
        %v577 = vld [vmem:[%s573 + $0xc] sm:$0xf]
        %v579 = vunpack.c.l.b16 %v572
        %v580 = vpack.c.b16 %v579, %v579
        %v582 = vshrl.u32 %v580, 16
        %v584 = vshll.u32 %v580, 16
        %v586 = vrot.slane %v584, 1
        %v587 = vor.u32 %v582, %v586
        %v592 = vunpack.c.l.b16 %v574
        %v593 = vunpack.c.l.b16 %v575
        %v594 = vunpack.c.l.b16 %v576
        %v595 = vunpack.c.l.b16 %v577
        %v596 = vpack.c.b16 %v593, %v592
        %v597 = vpack.c.b16 %v595, %v594
        %v601 = vsel %vm401, %v587, 0
        %603 = vmatprep.subr.bf16.mxu0 0
        %604 = vmatpush1.bf16.msra.mxu0 %v596
        %605 = vmatprep.subr.bf16.mxu0 0
        %606 = vmatpush1.bf16.msra.mxu0 %v597
        %607 = vmatprep.subr.bf16.mxu0 0
        %608 = vmatpush1.bf16.msra.mxu0 0
        %609 = vmatprep.subr.bf16.mxu0 0
        %610 = vmatpush1.bf16.msra.mxu0 0
        %611 = vmatprep.subr.bf16.mxu0 0
        %612 = vmatpush1.bf16.msra.mxu0 0
        %613 = vmatprep.subr.bf16.mxu0 0
        %614 = vmatpush1.bf16.msra.mxu0 0
        %615 = vmatprep.subr.bf16.mxu0 0
        %616 = vmatpush1.bf16.msra.mxu0 0
        %617 = vmatprep.subr.bf16.mxu0 0
        %618 = vmatpush1.bf16.msra.mxu0 0
        %619 = vmatprep.subr.bf16.mxu0 0
        %620 = vmatpush1.bf16.msra.mxu0 0
        %621 = vmatprep.subr.bf16.mxu0 0
        %622 = vmatpush1.bf16.msra.mxu0 0
        %623 = vmatprep.subr.bf16.mxu0 0
        %624 = vmatpush1.bf16.msra.mxu0 0
        %625 = vmatprep.subr.bf16.mxu0 0
        %626 = vmatpush1.bf16.msra.mxu0 0
        %627 = vmatprep.subr.bf16.mxu0 0
        %628 = vmatpush1.bf16.msra.mxu0 0
        %629 = vmatprep.subr.bf16.mxu0 0
        %630 = vmatpush1.bf16.msra.mxu0 0
        %631 = vmatprep.subr.bf16.mxu0 0
        %632 = vmatpush1.bf16.msra.mxu0 0
        %633 = vmatprep.subr.bf16.mxu0 0
        %634 = vmatpush1.bf16.msra.mxu0 0
        %635 = vmatprep.mubr.bf16.mxu0 0
        %636 = vmatmul.mubr.bf16.gmra.mrb[0].mxu0 %v601
        %v637 = vpop.f32.mrb[0].mxu0
        %v638 = vadd.f32 0.0, %v637
        %v639 = vpop.f32.mrb[0].mxu0
        %v640 = vpop.f32.mrb[0].mxu0
        %v641 = vpop.f32.mrb[0].mxu0
        %642 = vdwg.mxu0
        %v643 = vadd.f32 %v571, %v638
        %v644 = vld [vmem:[%s2] sm:$0x1]
        %v646 = vlaneseq
        %v647 = vshrl.u32 %v646, 7
        %v648 = vsub.s32 0, %v647
        %v649 = vrot.slane %v644, %v648
        %v651 = vadd.f32 %v643, %v649
        %v652 = vpack.c.bf16 %v651, %v651
        %v653 = vld [vmem:[%s3] sm:$0xf]
        %v654 = vld [vmem:[%s3 + $0x4] sm:$0xf]
        %v655 = vld [vmem:[%s3 + $0x8] sm:$0xf]
        %v656 = vld [vmem:[%s3 + $0xc] sm:$0xf]
        %v657 = vld [vmem:[%s4] sm:$0x1]
        %v659 = vlaneseq
        %v660 = vshrl.u32 %v659, 7
        %v661 = vsub.s32 0, %v660
        %v662 = vrot.slane %v657, %v661
        %v668 = vunpack.c.l.b16 %v653
        %v669 = vunpack.c.l.b16 %v654
        %v670 = vunpack.c.l.b16 %v655
        %v671 = vunpack.c.l.b16 %v656
        %v672 = vpack.c.b16 %v669, %v668
        %v673 = vpack.c.b16 %v671, %v670
        %v677 = vsel %vm401, %v652, 0
        %679 = vmatprep.subr.bf16.mxu0 0
        %680 = vmatpush1.bf16.msra.mxu0 %v672
        %681 = vmatprep.subr.bf16.mxu0 0
        %682 = vmatpush1.bf16.msra.mxu0 %v673
        %683 = vmatprep.subr.bf16.mxu0 0
        %684 = vmatpush1.bf16.msra.mxu0 0
        %685 = vmatprep.subr.bf16.mxu0 0
        %686 = vmatpush1.bf16.msra.mxu0 0
        %687 = vmatprep.subr.bf16.mxu0 0
        %688 = vmatpush1.bf16.msra.mxu0 0
        %689 = vmatprep.subr.bf16.mxu0 0
        %690 = vmatpush1.bf16.msra.mxu0 0
        %691 = vmatprep.subr.bf16.mxu0 0
        %692 = vmatpush1.bf16.msra.mxu0 0
        %693 = vmatprep.subr.bf16.mxu0 0
        %694 = vmatpush1.bf16.msra.mxu0 0
        %695 = vmatprep.subr.bf16.mxu0 0
        %696 = vmatpush1.bf16.msra.mxu0 0
        %697 = vmatprep.subr.bf16.mxu0 0
        %698 = vmatpush1.bf16.msra.mxu0 0
        %699 = vmatprep.subr.bf16.mxu0 0
        %700 = vmatpush1.bf16.msra.mxu0 0
        %701 = vmatprep.subr.bf16.mxu0 0
        %702 = vmatpush1.bf16.msra.mxu0 0
        %703 = vmatprep.subr.bf16.mxu0 0
        %704 = vmatpush1.bf16.msra.mxu0 0
        %705 = vmatprep.subr.bf16.mxu0 0
        %706 = vmatpush1.bf16.msra.mxu0 0
        %707 = vmatprep.subr.bf16.mxu0 0
        %708 = vmatpush1.bf16.msra.mxu0 0
        %709 = vmatprep.subr.bf16.mxu0 0
        %710 = vmatpush1.bf16.msra.mxu0 0
        %711 = vmatprep.mubr.bf16.mxu0 0
        %712 = vmatmul.mubr.bf16.gmra.mrb[0].mxu0 %v677
        %v713 = vpop.f32.mrb[0].mxu0
        %v714 = vadd.f32 %v662, %v713
        %v715 = vpop.f32.mrb[0].mxu0
        %v716 = vpop.f32.mrb[0].mxu0
        %v717 = vpop.f32.mrb[0].mxu0
        %718 = vdwg.mxu0
        %v719 = vmax.f32 %v714, 0.0
        %vm720 = vcmask 257024
        %721 = vst.msk [vmem:[#allocation2] sm:$0xf] %vm720, %v719
        %722 = vst.msk [vmem:[#allocation3] sm:$0xf] %vm720, 0
        %vm723 = vcmask 257024
        %vm724 = vsmask.f32 3328
        %vm725 = vmand %vm723, %vm724
        %v726 = vld [vmem:[#allocation3 + $0x4] sm:$0xf]
        %v727 = vsel %vm725, 0, %v726
        %728 = vst [vmem:[#allocation3 + $0x4] sm:$0xf] %v727
        %v729 = vld [vmem:[#allocation2] sm:$0xf]
        %v730 = vmax.f32 %v729, 0.0
        %v731 = vpack.c.bf16 %v730, %v730
        %vm732 = vcmask 254976
        %733 = vst.msk [vmem:[#allocation3 + $0x4] sm:$0x3] %vm732, %v731
        %v734 = vld [vmem:[#allocation3] sm:$0xc]
        %v735 = vld [vmem:[#allocation3 + $0x4] sm:$0x1]
        %v736 = vld [vmem:[%s5] sm:$0xf]
        %v737 = vld [vmem:[%s5 + $0x4] sm:$0xf]
        %v738 = vld [vmem:[%s5 + $0x8] sm:$0xf]
        %v739 = vld [vmem:[%s5 + $0xc] sm:$0xf]
        %v740 = vld [vmem:[#allocation3 + $0x4] sm:$0x3]
        %s741 = scalar_lea.vmem %s5, 16
        %v742 = vld [vmem:[%s741] sm:$0xf]
        %v743 = vld [vmem:[%s741 + $0x4] sm:$0xf]
        %v744 = vld [vmem:[%s741 + $0x8] sm:$0xf]
        %v745 = vld [vmem:[%s741 + $0xc] sm:$0xf]
        %v750 = vunpack.c.l.b16 %v742
        %v751 = vunpack.c.l.b16 %v743
        %v752 = vunpack.c.l.b16 %v744
        %v753 = vunpack.c.l.b16 %v745
        %v754 = vpack.c.b16 %v751, %v750
        %v755 = vpack.c.b16 %v753, %v752
        %v759 = vsel %vm401, %v740, 0
        %761 = vmatprep.subr.bf16.mxu0 0
        %762 = vmatpush1.bf16.msra.mxu0 %v754
        %763 = vmatprep.subr.bf16.mxu0 0
        %764 = vmatpush1.bf16.msra.mxu0 %v755
        %765 = vmatprep.subr.bf16.mxu0 0
        %766 = vmatpush1.bf16.msra.mxu0 0
        %767 = vmatprep.subr.bf16.mxu0 0
        %768 = vmatpush1.bf16.msra.mxu0 0
        %769 = vmatprep.subr.bf16.mxu0 0
        %770 = vmatpush1.bf16.msra.mxu0 0
        %771 = vmatprep.subr.bf16.mxu0 0
        %772 = vmatpush1.bf16.msra.mxu0 0
        %773 = vmatprep.subr.bf16.mxu0 0
        %774 = vmatpush1.bf16.msra.mxu0 0
        %775 = vmatprep.subr.bf16.mxu0 0
        %776 = vmatpush1.bf16.msra.mxu0 0
        %777 = vmatprep.subr.bf16.mxu0 0
        %778 = vmatpush1.bf16.msra.mxu0 0
        %779 = vmatprep.subr.bf16.mxu0 0
        %780 = vmatpush1.bf16.msra.mxu0 0
        %781 = vmatprep.subr.bf16.mxu0 0
        %782 = vmatpush1.bf16.msra.mxu0 0
        %783 = vmatprep.subr.bf16.mxu0 0
        %784 = vmatpush1.bf16.msra.mxu0 0
        %785 = vmatprep.subr.bf16.mxu0 0
        %786 = vmatpush1.bf16.msra.mxu0 0
        %787 = vmatprep.subr.bf16.mxu0 0
        %788 = vmatpush1.bf16.msra.mxu0 0
        %789 = vmatprep.subr.bf16.mxu0 0
        %790 = vmatpush1.bf16.msra.mxu0 0
        %791 = vmatprep.subr.bf16.mxu0 0
        %792 = vmatpush1.bf16.msra.mxu0 0
        %793 = vmatprep.mubr.bf16.mxu0 0
        %794 = vmatmul.mubr.bf16.gmra.mrb[0].mxu0 %v759
        %v795 = vpop.f32.mrb[0].mxu0
        %v796 = vadd.f32 0.0, %v795
        %v797 = vpop.f32.mrb[0].mxu0
        %v798 = vpop.f32.mrb[0].mxu0
        %v799 = vpop.f32.mrb[0].mxu0
        %800 = vdwg.mxu0
        %v803 = vunpack.c.l.b16 %v734
        %v804 = vunpack.c.l.b16 %v735
        %v805 = vpack.c.b16 %v804, %v803
        %v807 = vshrl.u32 %v805, 16
        %v809 = vrot.slane %v807, 2
        %v810 = vshll.u32 %v805, 16
        %v812 = vrot.slane %v810, 3
        %v813 = vor.u32 %v809, %v812
        %v818 = vunpack.c.l.b16 %v736
        %v819 = vunpack.c.l.b16 %v737
        %v820 = vunpack.c.l.b16 %v738
        %v821 = vunpack.c.l.b16 %v739
        %v822 = vpack.c.b16 %v819, %v818
        %v823 = vpack.c.b16 %v821, %v820
        %v827 = vsel %vm401, %v813, 0
        %829 = vmatprep.subr.bf16.mxu0 0
        %830 = vmatpush1.bf16.msra.mxu0 %v822
        %831 = vmatprep.subr.bf16.mxu0 0
        %832 = vmatpush1.bf16.msra.mxu0 %v823
        %833 = vmatprep.subr.bf16.mxu0 0
        %834 = vmatpush1.bf16.msra.mxu0 0
        %835 = vmatprep.subr.bf16.mxu0 0
        %836 = vmatpush1.bf16.msra.mxu0 0
        %837 = vmatprep.subr.bf16.mxu0 0
        %838 = vmatpush1.bf16.msra.mxu0 0
        %839 = vmatprep.subr.bf16.mxu0 0
        %840 = vmatpush1.bf16.msra.mxu0 0
        %841 = vmatprep.subr.bf16.mxu0 0
        %842 = vmatpush1.bf16.msra.mxu0 0
        %843 = vmatprep.subr.bf16.mxu0 0
        %844 = vmatpush1.bf16.msra.mxu0 0
        %845 = vmatprep.subr.bf16.mxu0 0
        %846 = vmatpush1.bf16.msra.mxu0 0
        %847 = vmatprep.subr.bf16.mxu0 0
        %848 = vmatpush1.bf16.msra.mxu0 0
        %849 = vmatprep.subr.bf16.mxu0 0
        %850 = vmatpush1.bf16.msra.mxu0 0
        %851 = vmatprep.subr.bf16.mxu0 0
        %852 = vmatpush1.bf16.msra.mxu0 0
        %853 = vmatprep.subr.bf16.mxu0 0
        %854 = vmatpush1.bf16.msra.mxu0 0
        %855 = vmatprep.subr.bf16.mxu0 0
        %856 = vmatpush1.bf16.msra.mxu0 0
        %857 = vmatprep.subr.bf16.mxu0 0
        %858 = vmatpush1.bf16.msra.mxu0 0
        %859 = vmatprep.subr.bf16.mxu0 0
        %860 = vmatpush1.bf16.msra.mxu0 0
        %861 = vmatprep.mubr.bf16.mxu0 0
        %862 = vmatmul.mubr.bf16.gmra.mrb[0].mxu0 %v827
        %v863 = vpop.f32.mrb[0].mxu0
        %v864 = vadd.f32 %v796, %v863
        %v865 = vpop.f32.mrb[0].mxu0
        %v866 = vpop.f32.mrb[0].mxu0
        %v867 = vpop.f32.mrb[0].mxu0
        %868 = vdwg.mxu0
        %v869 = vld [vmem:[#allocation3 + $0x4] sm:$0xe]
        %s870 = scalar_lea.vmem %s5, 32
        %v871 = vld [vmem:[%s870] sm:$0xf]
        %v872 = vld [vmem:[%s870 + $0x4] sm:$0xf]
        %v873 = vld [vmem:[%s870 + $0x8] sm:$0xf]
        %v874 = vld [vmem:[%s870 + $0xc] sm:$0xf]
        %v876 = vunpack.c.l.b16 %v869
        %v877 = vpack.c.b16 %v876, %v876
        %v879 = vshrl.u32 %v877, 16
        %v881 = vrot.slane %v879, 1
        %v882 = vshll.u32 %v877, 16
        %v884 = vrot.slane %v882, 2
        %v885 = vor.u32 %v881, %v884
        %v890 = vunpack.c.l.b16 %v871
        %v891 = vunpack.c.l.b16 %v872
        %v892 = vunpack.c.l.b16 %v873
        %v893 = vunpack.c.l.b16 %v874
        %v894 = vpack.c.b16 %v891, %v890
        %v895 = vpack.c.b16 %v893, %v892
        %v899 = vsel %vm401, %v885, 0
        %901 = vmatprep.subr.bf16.mxu0 0
        %902 = vmatpush1.bf16.msra.mxu0 %v894
        %903 = vmatprep.subr.bf16.mxu0 0
        %904 = vmatpush1.bf16.msra.mxu0 %v895
        %905 = vmatprep.subr.bf16.mxu0 0
        %906 = vmatpush1.bf16.msra.mxu0 0
        %907 = vmatprep.subr.bf16.mxu0 0
        %908 = vmatpush1.bf16.msra.mxu0 0
        %909 = vmatprep.subr.bf16.mxu0 0
        %910 = vmatpush1.bf16.msra.mxu0 0
        %911 = vmatprep.subr.bf16.mxu0 0
        %912 = vmatpush1.bf16.msra.mxu0 0
        %913 = vmatprep.subr.bf16.mxu0 0
        %914 = vmatpush1.bf16.msra.mxu0 0
        %915 = vmatprep.subr.bf16.mxu0 0
        %916 = vmatpush1.bf16.msra.mxu0 0
        %917 = vmatprep.subr.bf16.mxu0 0
        %918 = vmatpush1.bf16.msra.mxu0 0
        %919 = vmatprep.subr.bf16.mxu0 0
        %920 = vmatpush1.bf16.msra.mxu0 0
        %921 = vmatprep.subr.bf16.mxu0 0
        %922 = vmatpush1.bf16.msra.mxu0 0
        %923 = vmatprep.subr.bf16.mxu0 0
        %924 = vmatpush1.bf16.msra.mxu0 0
        %925 = vmatprep.subr.bf16.mxu0 0
        %926 = vmatpush1.bf16.msra.mxu0 0
        %927 = vmatprep.subr.bf16.mxu0 0
        %928 = vmatpush1.bf16.msra.mxu0 0
        %929 = vmatprep.subr.bf16.mxu0 0
        %930 = vmatpush1.bf16.msra.mxu0 0
        %931 = vmatprep.subr.bf16.mxu0 0
        %932 = vmatpush1.bf16.msra.mxu0 0
        %933 = vmatprep.mubr.bf16.mxu0 0
        %934 = vmatmul.mubr.bf16.gmra.mrb[0].mxu0 %v899
        %v935 = vpop.f32.mrb[0].mxu0
        %v936 = vadd.f32 0.0, %v935
        %v937 = vpop.f32.mrb[0].mxu0
        %v938 = vpop.f32.mrb[0].mxu0
        %v939 = vpop.f32.mrb[0].mxu0
        %940 = vdwg.mxu0
        %v941 = vadd.f32 %v864, %v936
        %v942 = vld [vmem:[%s6] sm:$0x1]
        %v944 = vlaneseq
        %v945 = vshrl.u32 %v944, 7
        %v946 = vsub.s32 0, %v945
        %v947 = vrot.slane %v942, %v946
        %v949 = vadd.f32 %v941, %v947
        %v950 = vmax.f32 %v949, 0.0
        %v951 = vpack.c.bf16 %v950, %v950
        %v952 = vld [vmem:[%s7] sm:$0xf]
        %v953 = vld [vmem:[%s7 + $0x4] sm:$0xf]
        %v954 = vld [vmem:[%s7 + $0x8] sm:$0xf]
        %v955 = vld [vmem:[%s7 + $0xc] sm:$0xf]
        %v956 = vld [vmem:[%s8] sm:$0x1]
        %v958 = vlaneseq
        %v959 = vshrl.u32 %v958, 7
        %v960 = vsub.s32 0, %v959
        %v961 = vrot.slane %v956, %v960
        %v967 = vunpack.c.l.b16 %v952
        %v968 = vunpack.c.l.b16 %v953
        %v969 = vunpack.c.l.b16 %v954
        %v970 = vunpack.c.l.b16 %v955
        %v971 = vpack.c.b16 %v968, %v967
        %v972 = vpack.c.b16 %v970, %v969
        %v976 = vsel %vm401, %v951, 0
        %978 = vmatprep.subr.bf16.mxu0 0
        %979 = vmatpush1.bf16.msra.mxu0 %v971
        %980 = vmatprep.subr.bf16.mxu0 0
        %981 = vmatpush1.bf16.msra.mxu0 %v972
        %982 = vmatprep.subr.bf16.mxu0 0
        %983 = vmatpush1.bf16.msra.mxu0 0
        %984 = vmatprep.subr.bf16.mxu0 0
        %985 = vmatpush1.bf16.msra.mxu0 0
        %986 = vmatprep.subr.bf16.mxu0 0
        %987 = vmatpush1.bf16.msra.mxu0 0
        %988 = vmatprep.subr.bf16.mxu0 0
        %989 = vmatpush1.bf16.msra.mxu0 0
        %990 = vmatprep.subr.bf16.mxu0 0
        %991 = vmatpush1.bf16.msra.mxu0 0
        %992 = vmatprep.subr.bf16.mxu0 0
        %993 = vmatpush1.bf16.msra.mxu0 0
        %994 = vmatprep.subr.bf16.mxu0 0
        %995 = vmatpush1.bf16.msra.mxu0 0
        %996 = vmatprep.subr.bf16.mxu0 0
        %997 = vmatpush1.bf16.msra.mxu0 0
        %998 = vmatprep.subr.bf16.mxu0 0
        %999 = vmatpush1.bf16.msra.mxu0 0
        %1000 = vmatprep.subr.bf16.mxu0 0
        %1001 = vmatpush1.bf16.msra.mxu0 0
        %1002 = vmatprep.subr.bf16.mxu0 0
        %1003 = vmatpush1.bf16.msra.mxu0 0
        %1004 = vmatprep.subr.bf16.mxu0 0
        %1005 = vmatpush1.bf16.msra.mxu0 0
        %1006 = vmatprep.subr.bf16.mxu0 0
        %1007 = vmatpush1.bf16.msra.mxu0 0
        %1008 = vmatprep.subr.bf16.mxu0 0
        %1009 = vmatpush1.bf16.msra.mxu0 0
        %1010 = vmatprep.mubr.bf16.mxu0 0
        %1011 = vmatmul.mubr.bf16.gmra.mrb[0].mxu0 %v976
        %v1012 = vpop.f32.mrb[0].mxu0
        %v1013 = vadd.f32 %v961, %v1012
        %v1014 = vpop.f32.mrb[0].mxu0
        %v1015 = vpop.f32.mrb[0].mxu0
        %v1016 = vpop.f32.mrb[0].mxu0
        %1017 = vdwg.mxu0
        %v1018 = vld [vmem:[#allocation2] sm:$0xf]
        %v1019 = vadd.f32 %v1018, %v1013
        %1020 = vst.msk [vmem:[#allocation2] sm:$0xf] %vm720, %v1019
        %1021 = vst.msk [vmem:[#allocation3] sm:$0xf] %vm720, 0
        %v1022 = vld [vmem:[#allocation3 + $0x4] sm:$0xf]
        %v1023 = vsel %vm725, 0, %v1022
        %1024 = vst [vmem:[#allocation3 + $0x4] sm:$0xf] %v1023
        %v1025 = vld [vmem:[#allocation2] sm:$0xf]
        %v1026 = vmax.f32 %v1025, 0.0
        %v1027 = vpack.c.bf16 %v1026, %v1026
        %1028 = vst.msk [vmem:[#allocation3 + $0x4] sm:$0x3] %vm732, %v1027
        %v1029 = vld [vmem:[#allocation3] sm:$0x8]
        %v1030 = vld [vmem:[#allocation3 + $0x4] sm:$0x3]
        %s1031 = scalar_lea.vmem %s5, 48
        %v1032 = vld [vmem:[%s1031] sm:$0xf]
        %v1033 = vld [vmem:[%s1031 + $0x4] sm:$0xf]
        %v1034 = vld [vmem:[%s1031 + $0x8] sm:$0xf]
        %v1035 = vld [vmem:[%s1031 + $0xc] sm:$0xf]
        %s1036 = scalar_lea.vmem %s5, 64
        %v1037 = vld [vmem:[%s1036] sm:$0xf]
        %v1038 = vld [vmem:[%s1036 + $0x4] sm:$0xf]
        %v1039 = vld [vmem:[%s1036 + $0x8] sm:$0xf]
        %v1040 = vld [vmem:[%s1036 + $0xc] sm:$0xf]
        %v1045 = vunpack.c.l.b16 %v1037
        %v1046 = vunpack.c.l.b16 %v1038
        %v1047 = vunpack.c.l.b16 %v1039
        %v1048 = vunpack.c.l.b16 %v1040
        %v1049 = vpack.c.b16 %v1046, %v1045
        %v1050 = vpack.c.b16 %v1048, %v1047
        %v1054 = vsel %vm401, %v1030, 0
        %1056 = vmatprep.subr.bf16.mxu0 0
        %1057 = vmatpush1.bf16.msra.mxu0 %v1049
        %1058 = vmatprep.subr.bf16.mxu0 0
        %1059 = vmatpush1.bf16.msra.mxu0 %v1050
        %1060 = vmatprep.subr.bf16.mxu0 0
        %1061 = vmatpush1.bf16.msra.mxu0 0
        %1062 = vmatprep.subr.bf16.mxu0 0
        %1063 = vmatpush1.bf16.msra.mxu0 0
        %1064 = vmatprep.subr.bf16.mxu0 0
        %1065 = vmatpush1.bf16.msra.mxu0 0
        %1066 = vmatprep.subr.bf16.mxu0 0
        %1067 = vmatpush1.bf16.msra.mxu0 0
        %1068 = vmatprep.subr.bf16.mxu0 0
        %1069 = vmatpush1.bf16.msra.mxu0 0
        %1070 = vmatprep.subr.bf16.mxu0 0
        %1071 = vmatpush1.bf16.msra.mxu0 0
        %1072 = vmatprep.subr.bf16.mxu0 0
        %1073 = vmatpush1.bf16.msra.mxu0 0
        %1074 = vmatprep.subr.bf16.mxu0 0
        %1075 = vmatpush1.bf16.msra.mxu0 0
        %1076 = vmatprep.subr.bf16.mxu0 0
        %1077 = vmatpush1.bf16.msra.mxu0 0
        %1078 = vmatprep.subr.bf16.mxu0 0
        %1079 = vmatpush1.bf16.msra.mxu0 0
        %1080 = vmatprep.subr.bf16.mxu0 0
        %1081 = vmatpush1.bf16.msra.mxu0 0
        %1082 = vmatprep.subr.bf16.mxu0 0
        %1083 = vmatpush1.bf16.msra.mxu0 0
        %1084 = vmatprep.subr.bf16.mxu0 0
        %1085 = vmatpush1.bf16.msra.mxu0 0
        %1086 = vmatprep.subr.bf16.mxu0 0
        %1087 = vmatpush1.bf16.msra.mxu0 0
        %1088 = vmatprep.mubr.bf16.mxu0 0
        %1089 = vmatmul.mubr.bf16.gmra.mrb[0].mxu0 %v1054
        %v1090 = vpop.f32.mrb[0].mxu0
        %v1091 = vadd.f32 0.0, %v1090
        %v1092 = vpop.f32.mrb[0].mxu0
        %v1093 = vpop.f32.mrb[0].mxu0
        %v1094 = vpop.f32.mrb[0].mxu0
        %1095 = vdwg.mxu0
        %v1098 = vunpack.c.l.b16 %v1029
        %v1099 = vunpack.c.l.b16 %v1030
        %v1100 = vpack.c.b16 %v1099, %v1098
        %v1102 = vshrl.u32 %v1100, 16
        %v1104 = vrot.slane %v1102, 3
        %v1105 = vshll.u32 %v1100, 16
        %v1107 = vrot.slane %v1105, 4
        %v1108 = vor.u32 %v1104, %v1107
        %v1113 = vunpack.c.l.b16 %v1032
        %v1114 = vunpack.c.l.b16 %v1033
        %v1115 = vunpack.c.l.b16 %v1034
        %v1116 = vunpack.c.l.b16 %v1035
        %v1117 = vpack.c.b16 %v1114, %v1113
        %v1118 = vpack.c.b16 %v1116, %v1115
        %v1122 = vsel %vm401, %v1108, 0
        %1124 = vmatprep.subr.bf16.mxu0 0
        %1125 = vmatpush1.bf16.msra.mxu0 %v1117
        %1126 = vmatprep.subr.bf16.mxu0 0
        %1127 = vmatpush1.bf16.msra.mxu0 %v1118
        %1128 = vmatprep.subr.bf16.mxu0 0
        %1129 = vmatpush1.bf16.msra.mxu0 0
        %1130 = vmatprep.subr.bf16.mxu0 0
        %1131 = vmatpush1.bf16.msra.mxu0 0
        %1132 = vmatprep.subr.bf16.mxu0 0
        %1133 = vmatpush1.bf16.msra.mxu0 0
        %1134 = vmatprep.subr.bf16.mxu0 0
        %1135 = vmatpush1.bf16.msra.mxu0 0
        %1136 = vmatprep.subr.bf16.mxu0 0
        %1137 = vmatpush1.bf16.msra.mxu0 0
        %1138 = vmatprep.subr.bf16.mxu0 0
        %1139 = vmatpush1.bf16.msra.mxu0 0
        %1140 = vmatprep.subr.bf16.mxu0 0
        %1141 = vmatpush1.bf16.msra.mxu0 0
        %1142 = vmatprep.subr.bf16.mxu0 0
        %1143 = vmatpush1.bf16.msra.mxu0 0
        %1144 = vmatprep.subr.bf16.mxu0 0
        %1145 = vmatpush1.bf16.msra.mxu0 0
        %1146 = vmatprep.subr.bf16.mxu0 0
        %1147 = vmatpush1.bf16.msra.mxu0 0
        %1148 = vmatprep.subr.bf16.mxu0 0
        %1149 = vmatpush1.bf16.msra.mxu0 0
        %1150 = vmatprep.subr.bf16.mxu0 0
        %1151 = vmatpush1.bf16.msra.mxu0 0
        %1152 = vmatprep.subr.bf16.mxu0 0
        %1153 = vmatpush1.bf16.msra.mxu0 0
        %1154 = vmatprep.subr.bf16.mxu0 0
        %1155 = vmatpush1.bf16.msra.mxu0 0
        %1156 = vmatprep.mubr.bf16.mxu0 0
        %1157 = vmatmul.mubr.bf16.gmra.mrb[0].mxu0 %v1122
        %v1158 = vpop.f32.mrb[0].mxu0
        %v1159 = vadd.f32 %v1091, %v1158
        %v1160 = vpop.f32.mrb[0].mxu0
        %v1161 = vpop.f32.mrb[0].mxu0
        %v1162 = vpop.f32.mrb[0].mxu0
        %1163 = vdwg.mxu0
        %v1164 = vld [vmem:[#allocation3 + $0x4] sm:$0x7]
        %s1165 = scalar_lea.vmem %s5, 80
        %v1166 = vld [vmem:[%s1165] sm:$0xf]
        %v1167 = vld [vmem:[%s1165 + $0x4] sm:$0xf]
        %v1168 = vld [vmem:[%s1165 + $0x8] sm:$0xf]
        %v1169 = vld [vmem:[%s1165 + $0xc] sm:$0xf]
        %v1171 = vunpack.c.l.b16 %v1164
        %v1172 = vpack.c.b16 %v1171, %v1171
        %v1174 = vshrl.u32 %v1172, 16
        %v1176 = vshll.u32 %v1172, 16
        %v1178 = vrot.slane %v1176, 1
        %v1179 = vor.u32 %v1174, %v1178
        %v1184 = vunpack.c.l.b16 %v1166
        %v1185 = vunpack.c.l.b16 %v1167
        %v1186 = vunpack.c.l.b16 %v1168
        %v1187 = vunpack.c.l.b16 %v1169
        %v1188 = vpack.c.b16 %v1185, %v1184
        %v1189 = vpack.c.b16 %v1187, %v1186
        %v1193 = vsel %vm401, %v1179, 0
        %1195 = vmatprep.subr.bf16.mxu0 0
        %1196 = vmatpush1.bf16.msra.mxu0 %v1188
        %1197 = vmatprep.subr.bf16.mxu0 0
        %1198 = vmatpush1.bf16.msra.mxu0 %v1189
        %1199 = vmatprep.subr.bf16.mxu0 0
        %1200 = vmatpush1.bf16.msra.mxu0 0
        %1201 = vmatprep.subr.bf16.mxu0 0
        %1202 = vmatpush1.bf16.msra.mxu0 0
        %1203 = vmatprep.subr.bf16.mxu0 0
        %1204 = vmatpush1.bf16.msra.mxu0 0
        %1205 = vmatprep.subr.bf16.mxu0 0
        %1206 = vmatpush1.bf16.msra.mxu0 0
        %1207 = vmatprep.subr.bf16.mxu0 0
        %1208 = vmatpush1.bf16.msra.mxu0 0
        %1209 = vmatprep.subr.bf16.mxu0 0
        %1210 = vmatpush1.bf16.msra.mxu0 0
        %1211 = vmatprep.subr.bf16.mxu0 0
        %1212 = vmatpush1.bf16.msra.mxu0 0
        %1213 = vmatprep.subr.bf16.mxu0 0
        %1214 = vmatpush1.bf16.msra.mxu0 0
        %1215 = vmatprep.subr.bf16.mxu0 0
        %1216 = vmatpush1.bf16.msra.mxu0 0
        %1217 = vmatprep.subr.bf16.mxu0 0
        %1218 = vmatpush1.bf16.msra.mxu0 0
        %1219 = vmatprep.subr.bf16.mxu0 0
        %1220 = vmatpush1.bf16.msra.mxu0 0
        %1221 = vmatprep.subr.bf16.mxu0 0
        %1222 = vmatpush1.bf16.msra.mxu0 0
        %1223 = vmatprep.subr.bf16.mxu0 0
        %1224 = vmatpush1.bf16.msra.mxu0 0
        %1225 = vmatprep.subr.bf16.mxu0 0
        %1226 = vmatpush1.bf16.msra.mxu0 0
        %1227 = vmatprep.mubr.bf16.mxu0 0
        %1228 = vmatmul.mubr.bf16.gmra.mrb[0].mxu0 %v1193
        %v1229 = vpop.f32.mrb[0].mxu0
        %v1230 = vadd.f32 0.0, %v1229
        %v1231 = vpop.f32.mrb[0].mxu0
        %v1232 = vpop.f32.mrb[0].mxu0
        %v1233 = vpop.f32.mrb[0].mxu0
        %1234 = vdwg.mxu0
        %v1235 = vadd.f32 %v1159, %v1230
        %s1236 = scalar_lea.vmem %s6, 1
        %v1237 = vld [vmem:[%s1236] sm:$0x1]
        %v1239 = vlaneseq
        %v1240 = vshrl.u32 %v1239, 7
        %v1241 = vsub.s32 0, %v1240
        %v1242 = vrot.slane %v1237, %v1241
        %v1244 = vadd.f32 %v1235, %v1242
        %v1245 = vmax.f32 %v1244, 0.0
        %v1246 = vpack.c.bf16 %v1245, %v1245
        %s1247 = scalar_lea.vmem %s7, 16
        %v1248 = vld [vmem:[%s1247] sm:$0xf]
        %v1249 = vld [vmem:[%s1247 + $0x4] sm:$0xf]
        %v1250 = vld [vmem:[%s1247 + $0x8] sm:$0xf]
        %v1251 = vld [vmem:[%s1247 + $0xc] sm:$0xf]
        %s1252 = scalar_lea.vmem %s8, 1
        %v1253 = vld [vmem:[%s1252] sm:$0x1]
        %v1255 = vlaneseq
        %v1256 = vshrl.u32 %v1255, 7
        %v1257 = vsub.s32 0, %v1256
        %v1258 = vrot.slane %v1253, %v1257
        %v1264 = vunpack.c.l.b16 %v1248
        %v1265 = vunpack.c.l.b16 %v1249
        %v1266 = vunpack.c.l.b16 %v1250
        %v1267 = vunpack.c.l.b16 %v1251
        %v1268 = vpack.c.b16 %v1265, %v1264
        %v1269 = vpack.c.b16 %v1267, %v1266
        %v1273 = vsel %vm401, %v1246, 0
        %1275 = vmatprep.subr.bf16.mxu0 0
        %1276 = vmatpush1.bf16.msra.mxu0 %v1268
        %1277 = vmatprep.subr.bf16.mxu0 0
        %1278 = vmatpush1.bf16.msra.mxu0 %v1269
        %1279 = vmatprep.subr.bf16.mxu0 0
        %1280 = vmatpush1.bf16.msra.mxu0 0
        %1281 = vmatprep.subr.bf16.mxu0 0
        %1282 = vmatpush1.bf16.msra.mxu0 0
        %1283 = vmatprep.subr.bf16.mxu0 0
        %1284 = vmatpush1.bf16.msra.mxu0 0
        %1285 = vmatprep.subr.bf16.mxu0 0
        %1286 = vmatpush1.bf16.msra.mxu0 0
        %1287 = vmatprep.subr.bf16.mxu0 0
        %1288 = vmatpush1.bf16.msra.mxu0 0
        %1289 = vmatprep.subr.bf16.mxu0 0
        %1290 = vmatpush1.bf16.msra.mxu0 0
        %1291 = vmatprep.subr.bf16.mxu0 0
        %1292 = vmatpush1.bf16.msra.mxu0 0
        %1293 = vmatprep.subr.bf16.mxu0 0
        %1294 = vmatpush1.bf16.msra.mxu0 0
        %1295 = vmatprep.subr.bf16.mxu0 0
        %1296 = vmatpush1.bf16.msra.mxu0 0
        %1297 = vmatprep.subr.bf16.mxu0 0
        %1298 = vmatpush1.bf16.msra.mxu0 0
        %1299 = vmatprep.subr.bf16.mxu0 0
        %1300 = vmatpush1.bf16.msra.mxu0 0
        %1301 = vmatprep.subr.bf16.mxu0 0
        %1302 = vmatpush1.bf16.msra.mxu0 0
        %1303 = vmatprep.subr.bf16.mxu0 0
        %1304 = vmatpush1.bf16.msra.mxu0 0
        %1305 = vmatprep.subr.bf16.mxu0 0
        %1306 = vmatpush1.bf16.msra.mxu0 0
        %1307 = vmatprep.mubr.bf16.mxu0 0
        %1308 = vmatmul.mubr.bf16.gmra.mrb[0].mxu0 %v1273
        %v1309 = vpop.f32.mrb[0].mxu0
        %v1310 = vadd.f32 %v1258, %v1309
        %v1311 = vpop.f32.mrb[0].mxu0
        %v1312 = vpop.f32.mrb[0].mxu0
        %v1313 = vpop.f32.mrb[0].mxu0
        %1314 = vdwg.mxu0
        %v1315 = vld [vmem:[#allocation2] sm:$0xf]
        %v1316 = vadd.f32 %v1315, %v1310
        %1317 = vst.msk [vmem:[#allocation2] sm:$0xf] %vm720, %v1316
        %v1318 = vld [vmem:[#allocation2] sm:$0xf]
        %v1319 = vpack.c.bf16 %v1318, %v1318
        %1320 = vst.msk [vmem:[%s375] sm:$0x3] %vm732, %v1319
        %p1321 = scmp.lt.s32.totalorder %s20, 1
        %s1322 = scalar_select %p1321, %s20, 1
        %s1323 = smul.addr %s1322, 2
        %s1324 = scalar_lea.vmem %s9, %s1323
        // Predicated region
        $region98: #{spatial_mlp_encoder.6} parent=92 // pred_check
          %p1325 = pneg %p232
        $region99: #{spatial_mlp_encoder.6} parent=92 // pred_check_branch
          %1327 = sbr.rel (%p1325) target = $region101
        $region100: #{spatial_mlp_encoder.6} parent=92 // pred_region
          _
        $region101: #{spatial_mlp_encoder.6} parent=92 // pred_fallthru
          _
      $region93: #{spatial_mlp_encoder.6} parent=5 // pred_fallthru
        _
      %p1328 = scmp.le.s32.totalorder 2, %s15
      // Predicated region
      $region102: #{spatial_mlp_encoder.6} parent=5 // pred_check
        %p1329 = pneg %p1328
      $region103: #{spatial_mlp_encoder.6} parent=5 // pred_check_branch
        %1331 = sbr.rel (%p1329) target = $region105
      $region104: #{spatial_mlp_encoder.6} parent=5 // pred_region
        %s1332 = ssub.s32 %s15, 2
        // Predicated region
        $region106: #{spatial_mlp_encoder.6} parent=104 // pred_check
          %p1333 = pneg %p238
        $region107: #{spatial_mlp_encoder.6} parent=104 // pred_check_branch
          %1335 = sbr.rel (%p1333) target = $region109
        $region108: #{spatial_mlp_encoder.6} parent=104 // pred_region
          %p1336 = scmp.lt.s32.totalorder %s21, 1
          %s1337 = scalar_select %p1336, %s21, 1
          %s1338 = smul.addr %s1337, 2
          %s1339 = scalar_lea.vmem %s9, %s1338
        $region109: #{spatial_mlp_encoder.6} parent=104 // pred_fallthru
          _
      $region105: #{spatial_mlp_encoder.6} parent=5 // pred_fallthru
        _
    $region6: #{spatial_mlp_encoder.6} parent=1 // loop_footer
      %s19 = sadd.s32 1, %s15
    $region7: #{spatial_mlp_encoder.6} parent=1 // loop_footer_branch
      %14 = sbr.rel target = $region3
    $region8: #{spatial_mlp_encoder.6} parent=1 // loop_exit
      _

</llo_original>
